<compile_context>
chip_gen: v7x
topology: tpu7x:2x2x1
jax: 0.10.0
libtpu: 0.0.40
codegen_flags: <defaults>
</compile_context>

<pallas_src>
import math
from functools import partial

import jax
import jax.numpy as jnp
import numpy as np
from jax.experimental import pallas as pl
from jax.experimental.pallas import tpu as pltpu

NEG = -1e30            # additive "minus infinity" for key-padding masks
EPS = 1e-5             # LayerNorm eps (PyTorch default)
VMEM_LIMIT = 32 * 1024 * 1024


def _ln(x, g, b):
    mean = jnp.mean(x, axis=-1, keepdims=True)
    var = jnp.mean((x - mean) ** 2, axis=-1, keepdims=True)
    return (x - mean) * jax.lax.rsqrt(var + EPS) * g + b


# ----------------------------------------------------------------------------
# The single fused Pallas kernel
# ----------------------------------------------------------------------------

def _fused_forward_kernel(
        x_ref, pos_ref, mk_ref, mp_ref,
        emb_w_ref, emb_b_ref, ln0_g_ref, ln0_b_ref,
        wqkv_ref, bqkv_ref, wo_ref, bo_ref, ln1_g_ref, ln1_b_ref,
        w1_ref, b1_ref, w2_ref, b2_ref, ln2_g_ref, ln2_b_ref,
        attw_ref, attb_ref, clsw_ref, clsb_ref,
        o_ref, *, nhead, num_layers, bblk, seq):
    cdt = emb_w_ref.dtype                     # matmul/MXU compute dtype
    D = emb_w_ref.shape[1]
    dh = D // nhead
    M = bblk * seq                            # flattened batch*seq rows

    # ---- embedding: Linear -> ReLU -> LayerNorm -> + positional embedding ----
    x2d = x_ref[...]                                                  # (M, F)
    h = jnp.dot(x2d.astype(cdt), emb_w_ref[...],
                preferred_element_type=jnp.float32) + emb_b_ref[...]
    h = jnp.maximum(h, 0.0)
    h = _ln(h, ln0_g_ref[...], ln0_b_ref[...])
    h = h + pos_ref[...]                                              # (M, D) fp32

    # Additive key-padding mask, broadcast once (hoisted out of all loops).
    mask_keys = jnp.broadcast_to(mk_ref[...], (bblk, seq, seq))       # fp32

    # ---- post-norm Transformer encoder layers (all weights VMEM-resident) ----
    for l in range(num_layers):
        # fused QKV projection; 1/sqrt(dh) folded into W_q / b_q at prep time
        qkv = jnp.dot(h.astype(cdt), wqkv_ref[l],
                      preferred_element_type=jnp.float32) + bqkv_ref[l]
        q = qkv[:, :D]
        k = qkv[:, D:2 * D]
        v = qkv[:, 2 * D:]

        # attention batched over the batch-block inside each head
        ctx_heads = []
        for hh in range(nhead):
            lo = hh * dh
            qh = q[:, lo:lo + dh].reshape(bblk, seq, dh).astype(cdt)
            kh = k[:, lo:lo + dh].reshape(bblk, seq, dh).astype(cdt)
            vh = v[:, lo:lo + dh].reshape(bblk, seq, dh)              # fp32
            s = jnp.einsum('bqd,bkd->bqk', qh, kh,
                           preferred_element_type=jnp.float32)
            s = s + mask_keys
            s = s - jnp.max(s, axis=-1, keepdims=True)                # stable
            p = jnp.exp(s)
            p = p * pl.reciprocal(jnp.sum(p, axis=-1, keepdims=True),
                                  approx=True)
            # keep P in fp32 for P·V (review correctness note)
            ctx = jnp.einsum('bqk,bkd->bqd', p, vh,
                             preferred_element_type=jnp.float32)
            ctx_heads.append(ctx.reshape(M, dh))
        ctx2d = jnp.concatenate(ctx_heads, axis=-1)                   # (M, D)

        # single full-width output projection
        attn = jnp.dot(ctx2d.astype(cdt), wo_ref[l],
                       preferred_element_type=jnp.float32) + bo_ref[l]

        # residual + LN1, FF (ReLU), residual + LN2 — all in VMEM
        h1 = _ln(h + attn, ln1_g_ref[l], ln1_b_ref[l])
        ff = jnp.dot(h1.astype(cdt), w1_ref[l],
                     preferred_element_type=jnp.float32) + b1_ref[l]
        ff = jnp.maximum(ff, 0.0)
        ff = jnp.dot(ff.astype(cdt), w2_ref[l],
                     preferred_element_type=jnp.float32) + b2_ref[l]
        h = _ln(h1 + ff, ln2_g_ref[l], ln2_b_ref[l])

    # ---- attention pooling + classifier ----
    h3 = h.reshape(bblk, seq, D)
    # VPU reduce instead of an [S,D]x[D,1] MXU pass
    scores = jnp.sum(h3 * attw_ref[...], axis=-1, keepdims=True) + attb_ref[...]
    scores = scores + mp_ref[...]                                     # (Bblk,S,1)
    scores = scores - jnp.max(scores, axis=1, keepdims=True)
    p = jnp.exp(scores)
    w = p * pl.reciprocal(jnp.sum(p, axis=1, keepdims=True), approx=True)
    pooled = jnp.sum(w * h3, axis=1)                                  # (Bblk, D)
    logits = jnp.dot(pooled.astype(cdt), clsw_ref[...],
                     preferred_element_type=jnp.float32) + clsb_ref[...]
    o_ref[...] = logits.reshape(bblk, 1, -1)                          # lane-dense (Cp=128)


# ----------------------------------------------------------------------------
# pallas_call wrapper
# ----------------------------------------------------------------------------

def fused_forward_call(x, pos, mask_keys, mask_pool, prep, *, nhead, num_blocks):
    B, S, F = x.shape
    D = prep["emb_w"].shape[1]
    L = prep["wqkv"].shape[0]
    dff = prep["w1"].shape[2]
    Cp = prep["cls_w"].shape[1]

    assert B % num_blocks == 0, "batch must be divisible by num_blocks"
    bblk = B // num_blocks
    Mb = bblk * S

    # flatten batch*seq so every matmul sees M = bblk*S rows
    x2d = x.reshape(B * S, F)
    pos2d = pos.reshape(B * S, D)

    const = lambda shape: pl.BlockSpec(shape, lambda g, _s=shape: (0,) * len(_s))

    out = pl.pallas_call(
        partial(_fused_forward_kernel, nhead=nhead, num_layers=L,
                bblk=bblk, seq=S),
        out_shape=jax.ShapeDtypeStruct((B, 1, Cp), jnp.float32),
        grid=(num_blocks,),
        in_specs=[
            pl.BlockSpec((Mb, F), lambda g: (g, 0)),              # x (flattened)
            pl.BlockSpec((Mb, D), lambda g: (g, 0)),              # pos (flattened)
            pl.BlockSpec((bblk, 1, S), lambda g: (g, 0, 0)),      # additive key mask
            pl.BlockSpec((bblk, S, 1), lambda g: (g, 0, 0)),      # additive pool mask
            const((F, D)), const((1, D)), const((1, D)), const((1, D)),   # embed + LN0
            const((L, D, 3 * D)), const((L, 1, 3 * D)),           # wqkv, bqkv
            const((L, D, D)), const((L, 1, D)),                   # wo, bo
            const((L, 1, D)), const((L, 1, D)),                   # ln1 g, b
            const((L, D, dff)), const((L, 1, dff)),               # w1, b1
            const((L, dff, D)), const((L, 1, D)),                 # w2, b2
            const((L, 1, D)), const((L, 1, D)),                   # ln2 g, b
            const((1, D)), const((1, 1)),                         # att_w_row, att_b
            const((D, Cp)), const((1, Cp)),                       # cls_w, cls_b
        ],
        out_specs=pl.BlockSpec((bblk, 1, Cp), lambda g: (g, 0, 0)),
        compiler_params=pltpu.CompilerParams(
            dimension_semantics=("parallel",),
            vmem_limit_bytes=VMEM_LIMIT),
    )(x2d, pos2d, mask_keys, mask_pool,
      prep["emb_w"], prep["emb_b"], prep["ln0_g"], prep["ln0_b"],
      prep["wqkv"], prep["bqkv"], prep["wo"], prep["bo"],
      prep["ln1_g"], prep["ln1_b"],
      prep["w1"], prep["b1"], prep["w2"], prep["b2"],
      prep["ln2_g"], prep["ln2_b"],
      prep["att_w_row"], prep["att_b"], prep["cls_w"], prep["cls_b"])
    return out[:, 0, :]


# ----------------------------------------------------------------------------
# Parameters (PyTorch layout) + prep (fusion / stacking / padding / dtype)
# ----------------------------------------------------------------------------

def init_params(key, feature_size, num_classes, d_model, nhead, num_layers,
                window_size, dff):
    def nxt():
        nonlocal key
        key, sub = jax.random.split(key)
        return sub

    def w(shape, scale=0.02):
        return jax.random.normal(nxt(), shape, jnp.float32) * scale

    params = {
        "emb_w": w((feature_size, d_model)),
        "emb_b": w((1, d_model)),
        "ln0_g": jnp.ones((1, d_model), jnp.float32),
        "ln0_b": jnp.zeros((1, d_model), jnp.float32),
        "pos_table": w((window_size, d_model)),
        "att_w": w((d_model, 1)),
        "att_b": w((1, 1)),
        "cls_w": w((d_model, num_classes)),
        "cls_b": w((1, num_classes)),
        "layers": [],
    }
    for _ in range(num_layers):
        params["layers"].append({
            "wq": w((d_model, d_model)), "bq": w((1, d_model)),
            "wk": w((d_model, d_model)), "bk": w((1, d_model)),
            "wv": w((d_model, d_model)), "bv": w((1, d_model)),
            "wo": w((d_model, d_model)), "bo": w((1, d_model)),
            "ln1_g": jnp.ones((1, d_model), jnp.float32),
            "ln1_b": jnp.zeros((1, d_model), jnp.float32),
            "w1": w((d_model, dff)), "b1": w((1, dff)),
            "w2": w((dff, d_model)), "b2": w((1, d_model)),
            "ln2_g": jnp.ones((1, d_model), jnp.float32),
            "ln2_b": jnp.zeros((1, d_model), jnp.float32),
        })
    return params


def prepare_params(params, nhead, compute_dtype=jnp.float32):
    """Fuse QKV (folding 1/sqrt(dh) into W_q/b_q), stack all layers on a
    leading axis (single kernel holds them all), pad the classifier output to
    128 lanes, and cast matmul weights to the compute dtype (biases /
    LayerNorm params stay fp32)."""
    D = params["emb_w"].shape[1]
    dh = D // nhead
    scale = 1.0 / math.sqrt(dh)
    C = params["cls_w"].shape[1]
    Cp = ((C + 127) // 128) * 128
    cdt = compute_dtype

    def stack(name):
        return jnp.stack([lyr[name] for lyr in params["layers"]], axis=0)

    wqkv = jnp.stack(
        [jnp.concatenate([l["wq"] * scale, l["wk"], l["wv"]], axis=1)
         for l in params["layers"]], axis=0).astype(cdt)
    bqkv = jnp.stack(
        [jnp.concatenate([l["bq"] * scale, l["bk"], l["bv"]], axis=1)
         for l in params["layers"]], axis=0)

    return {
        "emb_w": params["emb_w"].astype(cdt),
        "emb_b": params["emb_b"],
        "ln0_g": params["ln0_g"], "ln0_b": params["ln0_b"],
        "pos_table": params["pos_table"],
        "att_w_row": params["att_w"].T,                     # [1, D] for VPU reduce
        "att_b": params["att_b"],
        "cls_w": jnp.pad(params["cls_w"], ((0, 0), (0, Cp - C))).astype(cdt),
        "cls_b": jnp.pad(params["cls_b"], ((0, 0), (0, Cp - C))),
        "wqkv": wqkv, "bqkv": bqkv,
        "wo": stack("wo").astype(cdt), "bo": stack("bo"),
        "ln1_g": stack("ln1_g"), "ln1_b": stack("ln1_b"),
        "w1": stack("w1").astype(cdt), "b1": stack("b1"),
        "w2": stack("w2").astype(cdt), "b2": stack("b2"),
        "ln2_g": stack("ln2_g"), "ln2_b": stack("ln2_b"),
    }


# ----------------------------------------------------------------------------
# Forward pass (one fused Pallas kernel + wrapper glue)
# ----------------------------------------------------------------------------

def forward(prep, x, position_ids, pad_mask, *, nhead, num_classes,
            num_blocks=None):
    """Pallas implementation of TrajectoryTransformer.forward (inference).
    TODO(synk): dropout layers are identity at inference and are omitted."""
    B, S, _ = x.shape
    if num_blocks is None:
        # 2 grid steps -> both v7x TensorCores; 1 step otherwise (v5e/v6e
        # prefer fewer serial steps; overhead ~0.35 us/step).
        num_blocks = 2 if (B >= 2 and B % 2 == 0) else 1

    # positional-embedding gather is glue, done in plain JAX
    pos = jnp.take(prep["pos_table"], position_ids, axis=0)        # [B, S, D]

    mask_add = jnp.where(pad_mask, NEG, 0.0).astype(jnp.float32)   # [B, S]
    mask_keys = mask_add[:, None, :]                               # [B, 1, S]
    mask_pool = mask_add[:, :, None]                               # [B, S, 1]

    logits = fused_forward_call(x, pos, mask_keys, mask_pool, prep,
                                nhead=nhead, num_blocks=num_blocks)
    return logits[:, :num_classes]


# ----------------------------------------------------------------------------
# Pure-JAX reference (same math) for correctness check
# ----------------------------------------------------------------------------

def ref_forward(params, x, position_ids, pad_mask, nhead):
    B, S, F = x.shape
    D = params["emb_w"].shape[1]
    dh = D // nhead
    h = jnp.maximum(x @ params["emb_w"] + params["emb_b"], 0.0)
    h = _ln(h, params["ln0_g"], params["ln0_b"])
    h = h + jnp.take(params["pos_table"], position_ids, axis=0)
    mask_add = jnp.where(pad_mask, NEG, 0.0).astype(jnp.float32)

    for layer in params["layers"]:
        q = h @ layer["wq"] + layer["bq"]
        k = h @ layer["wk"] + layer["bk"]
        v = h @ layer["wv"] + layer["bv"]
        q = q.reshape(B, S, nhead, dh).transpose(0, 2, 1, 3) / math.sqrt(dh)
        k = k.reshape(B, S, nhead, dh).transpose(0, 2, 1, 3)
        v = v.reshape(B, S, nhead, dh).transpose(0, 2, 1, 3)
        s = jnp.einsum("bhqd,bhkd->bhqk", q, k) + mask_add[:, None, None, :]
        s = s - jnp.max(s, axis=-1, keepdims=True)
        p = jnp.exp(s)
        p = p / jnp.sum(p, axis=-1, keepdims=True)
        ctx = jnp.einsum("bhqk,bhkd->bhqd", p, v)
        ctx = ctx.transpose(0, 2, 1, 3).reshape(B, S, D)
        attn = ctx @ layer["wo"] + layer["bo"]
        h = _ln(h + attn, layer["ln1_g"], layer["ln1_b"])
        ff = jnp.maximum(h @ layer["w1"] + layer["b1"], 0.0) @ layer["w2"] + layer["b2"]
        h = _ln(h + ff, layer["ln2_g"], layer["ln2_b"])

    scores = (h @ params["att_w"])[..., 0] + params["att_b"][0, 0]
    scores = scores + mask_add
    scores = scores - jnp.max(scores, axis=-1, keepdims=True)
    p = jnp.exp(scores)
    w = p / jnp.sum(p, axis=-1, keepdims=True)
    pooled = jnp.einsum("bs,bsd->bd", w, h)
    return pooled @ params["cls_w"] + params["cls_b"]


# ----------------------------------------------------------------------------
# Demo
# ----------------------------------------------------------------------------

if __name__ == "__main__":
    batch = 2
    window_size = 8        # seq length
    feature_size = 16
    d_model = 32
    nhead = 4
    num_layers = 2
    num_classes = 5
    dim_feedforward = 512  # hard-coded in the PyTorch module

    key = jax.random.PRNGKey(0)
    key, kx = jax.random.split(key)
    params = init_params(key, feature_size, num_classes, d_model, nhead,
                         num_layers, window_size, dim_feedforward)

    x = jax.random.normal(kx, (batch, window_size, feature_size), jnp.float32)
    position_ids = jnp.broadcast_to(jnp.arange(window_size, dtype=jnp.int32),
                                    (batch, window_size))
    # True = PAD. Batch 0 has no padding; batch 1 pads the last 3 positions.
    lengths = jnp.array([window_size, window_size - 3], dtype=jnp.int32)
    pad_mask = jnp.arange(window_size)[None, :] >= lengths[:, None]

    ref = ref_forward(params, x, position_ids, pad_mask, nhead)

    # fp32 path (default).  Tolerance 5e-3 because the in-kernel softmax uses
    # the EUP approximate reciprocal (pl.reciprocal(approx=True)).
    prep_f32 = prepare_params(params, nhead, jnp.float32)
    fwd = jax.jit(partial(forward, nhead=nhead, num_classes=num_classes))
    logits = jax.block_until_ready(fwd(prep_f32, x, position_ids, pad_mask))
    np.testing.assert_allclose(np.asarray(logits), np.asarray(ref),
                               rtol=5e-3, atol=5e-3)
    assert logits.shape == (batch, num_classes)

    # bf16 matmul path (recommended on v6e/v7x): bf16 MXU operands,
    # fp32 accumulation + fp32 LN/softmax/attention-probabilities.
    prep_bf16 = prepare_params(params, nhead, jnp.bfloat16)
    logits_bf16 = jax.block_until_ready(fwd(prep_bf16, x, position_ids, pad_mask))
    assert bool(jnp.all(jnp.isfinite(logits_bf16)))
    np.testing.assert_allclose(np.asarray(logits_bf16), np.asarray(ref),
                               rtol=1e-1, atol=1e-1)

    print("KERNEL_OK")
</pallas_src>

<mosaic_0001>
module attributes {stable_mosaic.version = 11 : i64} {
  func.func @_fused_forward_kernel(%arg0: i32, %arg1: memref<8x16xf32, #tpu.memory_space<vmem>>, %arg2: memref<8x32xf32, #tpu.memory_space<vmem>>, %arg3: memref<1x1x8xf32, #tpu.memory_space<vmem>>, %arg4: memref<1x8x1xf32, #tpu.memory_space<vmem>>, %arg5: memref<16x32xf32, #tpu.memory_space<vmem>>, %arg6: memref<1x32xf32, #tpu.memory_space<vmem>>, %arg7: memref<1x32xf32, #tpu.memory_space<vmem>>, %arg8: memref<1x32xf32, #tpu.memory_space<vmem>>, %arg9: memref<2x32x96xf32, #tpu.memory_space<vmem>>, %arg10: memref<2x1x96xf32, #tpu.memory_space<vmem>>, %arg11: memref<2x32x32xf32, #tpu.memory_space<vmem>>, %arg12: memref<2x1x32xf32, #tpu.memory_space<vmem>>, %arg13: memref<2x1x32xf32, #tpu.memory_space<vmem>>, %arg14: memref<2x1x32xf32, #tpu.memory_space<vmem>>, %arg15: memref<2x32x512xf32, #tpu.memory_space<vmem>>, %arg16: memref<2x1x512xf32, #tpu.memory_space<vmem>>, %arg17: memref<2x512x32xf32, #tpu.memory_space<vmem>>, %arg18: memref<2x1x32xf32, #tpu.memory_space<vmem>>, %arg19: memref<2x1x32xf32, #tpu.memory_space<vmem>>, %arg20: memref<2x1x32xf32, #tpu.memory_space<vmem>>, %arg21: memref<1x32xf32, #tpu.memory_space<vmem>>, %arg22: memref<1x1xf32, #tpu.memory_space<vmem>>, %arg23: memref<32x128xf32, #tpu.memory_space<vmem>>, %arg24: memref<1x128xf32, #tpu.memory_space<vmem>>, %arg25: memref<1x1x128xf32, #tpu.memory_space<vmem>>) attributes {dimension_semantics = [#tpu.dimension_semantics<parallel>], iteration_bounds = array<i64: 2>, scalar_prefetch = 0 : i64, scratch_operands = 0 : i64, tpu.core_type = #tpu.core_type<tc>, window_params = [{transform_indices = @transform_0, window_bounds = array<i64: 8, 16>}, {transform_indices = @transform_1, window_bounds = array<i64: 8, 32>}, {transform_indices = @transform_2, window_bounds = array<i64: 1, 1, 8>}, {transform_indices = @transform_3, window_bounds = array<i64: 1, 8, 1>}, {pipeline_mode = #tpu.pipeline_mode<synchronous>, transform_indices = @transform_4, window_bounds = array<i64: 16, 32>}, {pipeline_mode = #tpu.pipeline_mode<synchronous>, transform_indices = @transform_5, window_bounds = array<i64: 1, 32>}, {pipeline_mode = #tpu.pipeline_mode<synchronous>, transform_indices = @transform_6, window_bounds = array<i64: 1, 32>}, {pipeline_mode = #tpu.pipeline_mode<synchronous>, transform_indices = @transform_7, window_bounds = array<i64: 1, 32>}, {pipeline_mode = #tpu.pipeline_mode<synchronous>, transform_indices = @transform_8, window_bounds = array<i64: 2, 32, 96>}, {pipeline_mode = #tpu.pipeline_mode<synchronous>, transform_indices = @transform_9, window_bounds = array<i64: 2, 1, 96>}, {pipeline_mode = #tpu.pipeline_mode<synchronous>, transform_indices = @transform_10, window_bounds = array<i64: 2, 32, 32>}, {pipeline_mode = #tpu.pipeline_mode<synchronous>, transform_indices = @transform_11, window_bounds = array<i64: 2, 1, 32>}, {pipeline_mode = #tpu.pipeline_mode<synchronous>, transform_indices = @transform_12, window_bounds = array<i64: 2, 1, 32>}, {pipeline_mode = #tpu.pipeline_mode<synchronous>, transform_indices = @transform_13, window_bounds = array<i64: 2, 1, 32>}, {pipeline_mode = #tpu.pipeline_mode<synchronous>, transform_indices = @transform_14, window_bounds = array<i64: 2, 32, 512>}, {pipeline_mode = #tpu.pipeline_mode<synchronous>, transform_indices = @transform_15, window_bounds = array<i64: 2, 1, 512>}, {pipeline_mode = #tpu.pipeline_mode<synchronous>, transform_indices = @transform_16, window_bounds = array<i64: 2, 512, 32>}, {pipeline_mode = #tpu.pipeline_mode<synchronous>, transform_indices = @transform_17, window_bounds = array<i64: 2, 1, 32>}, {pipeline_mode = #tpu.pipeline_mode<synchronous>, transform_indices = @transform_18, window_bounds = array<i64: 2, 1, 32>}, {pipeline_mode = #tpu.pipeline_mode<synchronous>, transform_indices = @transform_19, window_bounds = array<i64: 2, 1, 32>}, {pipeline_mode = #tpu.pipeline_mode<synchronous>, transform_indices = @transform_20, window_bounds = array<i64: 1, 32>}, {pipeline_mode = #tpu.pipeline_mode<synchronous>, transform_indices = @transform_21, window_bounds = array<i64: 1, 1>}, {pipeline_mode = #tpu.pipeline_mode<synchronous>, transform_indices = @transform_22, window_bounds = array<i64: 32, 128>}, {pipeline_mode = #tpu.pipeline_mode<synchronous>, transform_indices = @transform_23, window_bounds = array<i64: 1, 128>}, {transform_indices = @transform_24, window_bounds = array<i64: 1, 1, 128>}]} {
    %c0 = arith.constant 0 : index
    %c0_0 = arith.constant 0 : index
    %0 = vector.load %arg1[%c0, %c0_0] : memref<8x16xf32, #tpu.memory_space<vmem>>, vector<8x16xf32>
    %c0_1 = arith.constant 0 : index
    %c0_2 = arith.constant 0 : index
    %1 = vector.load %arg5[%c0_1, %c0_2] : memref<16x32xf32, #tpu.memory_space<vmem>>, vector<16x32xf32>
    %cst = arith.constant dense<0.000000e+00> : vector<8x32xf32>
    %2 = tpu.matmul %0, %1, %cst {dimension_numbers = #tpu.dot_dimension_numbers<[1], [0], [0], [1], [0, 0, 1, 1], [], []>} : vector<8x16xf32>, vector<16x32xf32>, vector<8x32xf32> -> vector<8x32xf32>
    %c0_3 = arith.constant 0 : index
    %c0_4 = arith.constant 0 : index
    %3 = vector.load %arg6[%c0_3, %c0_4] : memref<1x32xf32, #tpu.memory_space<vmem>>, vector<1x32xf32>
    %4 = vector.broadcast %3 : vector<1x32xf32> to vector<8x32xf32>
    %5 = arith.addf %2, %4 : vector<8x32xf32>
    %cst_5 = arith.constant 0.000000e+00 : f32
    %6 = vector.broadcast %cst_5 : f32 to vector<8x32xf32>
    %7 = arith.maximumf %5, %6 : vector<8x32xf32>
    %c0_6 = arith.constant 0 : index
    %c0_7 = arith.constant 0 : index
    %8 = vector.load %arg7[%c0_6, %c0_7] : memref<1x32xf32, #tpu.memory_space<vmem>>, vector<1x32xf32>
    %c0_8 = arith.constant 0 : index
    %c0_9 = arith.constant 0 : index
    %9 = vector.load %arg8[%c0_8, %c0_9] : memref<1x32xf32, #tpu.memory_space<vmem>>, vector<1x32xf32>
    %cst_10 = arith.constant dense<0.000000e+00> : vector<8xf32>
    %10 = vector.multi_reduction <add>, %7, %cst_10 [1] : vector<8x32xf32> to vector<8xf32>
    %11 = vector.shape_cast %10 : vector<8xf32> to vector<8x1xf32>
    %cst_11 = arith.constant 3.200000e+01 : f32
    %12 = vector.broadcast %cst_11 : f32 to vector<8x1xf32>
    %13 = arith.divf %11, %12 : vector<8x1xf32>
    %14 = vector.broadcast %13 : vector<8x1xf32> to vector<8x32xf32>
    %15 = arith.subf %7, %14 : vector<8x32xf32>
    %16 = arith.mulf %15, %15 : vector<8x32xf32>
    %cst_12 = arith.constant dense<0.000000e+00> : vector<8xf32>
    %17 = vector.multi_reduction <add>, %16, %cst_12 [1] : vector<8x32xf32> to vector<8xf32>
    %18 = vector.shape_cast %17 : vector<8xf32> to vector<8x1xf32>
    %cst_13 = arith.constant 3.200000e+01 : f32
    %19 = vector.broadcast %cst_13 : f32 to vector<8x1xf32>
    %20 = arith.divf %18, %19 : vector<8x1xf32>
    %21 = vector.broadcast %13 : vector<8x1xf32> to vector<8x32xf32>
    %22 = arith.subf %7, %21 : vector<8x32xf32>
    %cst_14 = arith.constant 9.99999974E-6 : f32
    %23 = vector.broadcast %cst_14 : f32 to vector<8x1xf32>
    %24 = arith.addf %20, %23 : vector<8x1xf32>
    %25 = math.rsqrt %24 : vector<8x1xf32>
    %26 = vector.broadcast %25 : vector<8x1xf32> to vector<8x32xf32>
    %27 = arith.mulf %22, %26 : vector<8x32xf32>
    %28 = vector.broadcast %8 : vector<1x32xf32> to vector<8x32xf32>
    %29 = arith.mulf %27, %28 : vector<8x32xf32>
    %30 = vector.broadcast %9 : vector<1x32xf32> to vector<8x32xf32>
    %31 = arith.addf %29, %30 : vector<8x32xf32>
    %c0_15 = arith.constant 0 : index
    %c0_16 = arith.constant 0 : index
    %32 = vector.load %arg2[%c0_15, %c0_16] : memref<8x32xf32, #tpu.memory_space<vmem>>, vector<8x32xf32>
    %33 = arith.addf %31, %32 : vector<8x32xf32>
    %c0_17 = arith.constant 0 : index
    %c0_18 = arith.constant 0 : index
    %c0_19 = arith.constant 0 : index
    %34 = vector.load %arg3[%c0_17, %c0_18, %c0_19] : memref<1x1x8xf32, #tpu.memory_space<vmem>>, vector<1x1x8xf32>
    %35 = vector.shape_cast %34 : vector<1x1x8xf32> to vector<1x1x8xf32>
    %36 = vector.broadcast %35 : vector<1x1x8xf32> to vector<1x8x8xf32>
    %c0_20 = arith.constant 0 : index
    %c0_21 = arith.constant 0 : index
    %c0_22 = arith.constant 0 : index
    %37 = vector.load %arg9[%c0_20, %c0_21, %c0_22] : memref<2x32x96xf32, #tpu.memory_space<vmem>>, vector<1x32x96xf32>
    %38 = vector.shape_cast %37 : vector<1x32x96xf32> to vector<32x96xf32>
    %cst_23 = arith.constant dense<0.000000e+00> : vector<8x96xf32>
    %39 = tpu.matmul %33, %38, %cst_23 {dimension_numbers = #tpu.dot_dimension_numbers<[1], [0], [0], [1], [0, 0, 1, 1], [], []>} : vector<8x32xf32>, vector<32x96xf32>, vector<8x96xf32> -> vector<8x96xf32>
    %c0_24 = arith.constant 0 : index
    %c0_25 = arith.constant 0 : index
    %c0_26 = arith.constant 0 : index
    %40 = vector.load %arg10[%c0_24, %c0_25, %c0_26] : memref<2x1x96xf32, #tpu.memory_space<vmem>>, vector<1x1x96xf32>
    %41 = vector.shape_cast %40 : vector<1x1x96xf32> to vector<1x96xf32>
    %42 = vector.broadcast %41 : vector<1x96xf32> to vector<8x96xf32>
    %43 = arith.addf %39, %42 : vector<8x96xf32>
    %44 = vector.extract_strided_slice %43 {offsets = [0, 0], sizes = [8, 32], strides = [1, 1]} : vector<8x96xf32> to vector<8x32xf32>
    %45 = vector.extract_strided_slice %43 {offsets = [0, 32], sizes = [8, 32], strides = [1, 1]} : vector<8x96xf32> to vector<8x32xf32>
    %46 = vector.extract_strided_slice %43 {offsets = [0, 64], sizes = [8, 32], strides = [1, 1]} : vector<8x96xf32> to vector<8x32xf32>
    %47 = vector.extract_strided_slice %44 {offsets = [0, 0], sizes = [8, 8], strides = [1, 1]} : vector<8x32xf32> to vector<8x8xf32>
    %48 = vector.shape_cast %47 : vector<8x8xf32> to vector<1x8x8xf32>
    %49 = vector.extract_strided_slice %45 {offsets = [0, 0], sizes = [8, 8], strides = [1, 1]} : vector<8x32xf32> to vector<8x8xf32>
    %50 = vector.shape_cast %49 : vector<8x8xf32> to vector<1x8x8xf32>
    %51 = vector.extract_strided_slice %46 {offsets = [0, 0], sizes = [8, 8], strides = [1, 1]} : vector<8x32xf32> to vector<8x8xf32>
    %52 = vector.shape_cast %51 : vector<8x8xf32> to vector<1x8x8xf32>
    "tpu.trace_start"() <{level = 10 : i32, message = "bqd,bkd->bqk"}> : () -> ()
    %cst_27 = arith.constant dense<0.000000e+00> : vector<1x8x8xf32>
    %53 = tpu.matmul %48, %50, %cst_27 {dimension_numbers = #tpu.dot_dimension_numbers<[2], [2], [1], [1], [0, 0, 0, 1, 1, 1], [0], [0]>} : vector<1x8x8xf32>, vector<1x8x8xf32>, vector<1x8x8xf32> -> vector<1x8x8xf32>
    "tpu.trace_stop"() : () -> ()
    %54 = arith.addf %53, %36 : vector<1x8x8xf32>
    %cst_28 = arith.constant dense<0xFF800000> : vector<1x8xf32>
    %55 = vector.multi_reduction <maximumf>, %54, %cst_28 [2] : vector<1x8x8xf32> to vector<1x8xf32>
    %56 = vector.shape_cast %55 : vector<1x8xf32> to vector<1x8x1xf32>
    %57 = vector.broadcast %56 : vector<1x8x1xf32> to vector<1x8x8xf32>
    %58 = arith.subf %54, %57 : vector<1x8x8xf32>
    %59 = math.exp %58 : vector<1x8x8xf32>
    %cst_29 = arith.constant dense<0.000000e+00> : vector<1x8xf32>
    %60 = vector.multi_reduction <add>, %59, %cst_29 [2] : vector<1x8x8xf32> to vector<1x8xf32>
    %61 = vector.shape_cast %60 : vector<1x8xf32> to vector<1x8x1xf32>
    %62 = tpu.reciprocal %61 {approx = true} : vector<1x8x1xf32> -> vector<1x8x1xf32>
    %63 = vector.broadcast %62 : vector<1x8x1xf32> to vector<1x8x8xf32>
    %64 = arith.mulf %59, %63 : vector<1x8x8xf32>
    "tpu.trace_start"() <{level = 10 : i32, message = "bqk,bkd->bqd"}> : () -> ()
    %cst_30 = arith.constant dense<0.000000e+00> : vector<1x8x8xf32>
    %65 = tpu.matmul %64, %52, %cst_30 {dimension_numbers = #tpu.dot_dimension_numbers<[2], [1], [1], [2], [0, 0, 0, 1, 1, 2], [0], [0]>} : vector<1x8x8xf32>, vector<1x8x8xf32>, vector<1x8x8xf32> -> vector<1x8x8xf32>
    "tpu.trace_stop"() : () -> ()
    %66 = vector.shape_cast %65 : vector<1x8x8xf32> to vector<8x8xf32>
    %67 = vector.extract_strided_slice %44 {offsets = [0, 8], sizes = [8, 8], strides = [1, 1]} : vector<8x32xf32> to vector<8x8xf32>
    %68 = vector.shape_cast %67 : vector<8x8xf32> to vector<1x8x8xf32>
    %69 = vector.extract_strided_slice %45 {offsets = [0, 8], sizes = [8, 8], strides = [1, 1]} : vector<8x32xf32> to vector<8x8xf32>
    %70 = vector.shape_cast %69 : vector<8x8xf32> to vector<1x8x8xf32>
    %71 = vector.extract_strided_slice %46 {offsets = [0, 8], sizes = [8, 8], strides = [1, 1]} : vector<8x32xf32> to vector<8x8xf32>
    %72 = vector.shape_cast %71 : vector<8x8xf32> to vector<1x8x8xf32>
    "tpu.trace_start"() <{level = 10 : i32, message = "bqd,bkd->bqk"}> : () -> ()
    %cst_31 = arith.constant dense<0.000000e+00> : vector<1x8x8xf32>
    %73 = tpu.matmul %68, %70, %cst_31 {dimension_numbers = #tpu.dot_dimension_numbers<[2], [2], [1], [1], [0, 0, 0, 1, 1, 1], [0], [0]>} : vector<1x8x8xf32>, vector<1x8x8xf32>, vector<1x8x8xf32> -> vector<1x8x8xf32>
    "tpu.trace_stop"() : () -> ()
    %74 = arith.addf %73, %36 : vector<1x8x8xf32>
    %cst_32 = arith.constant dense<0xFF800000> : vector<1x8xf32>
    %75 = vector.multi_reduction <maximumf>, %74, %cst_32 [2] : vector<1x8x8xf32> to vector<1x8xf32>
    %76 = vector.shape_cast %75 : vector<1x8xf32> to vector<1x8x1xf32>
    %77 = vector.broadcast %76 : vector<1x8x1xf32> to vector<1x8x8xf32>
    %78 = arith.subf %74, %77 : vector<1x8x8xf32>
    %79 = math.exp %78 : vector<1x8x8xf32>
    %cst_33 = arith.constant dense<0.000000e+00> : vector<1x8xf32>
    %80 = vector.multi_reduction <add>, %79, %cst_33 [2] : vector<1x8x8xf32> to vector<1x8xf32>
    %81 = vector.shape_cast %80 : vector<1x8xf32> to vector<1x8x1xf32>
    %82 = tpu.reciprocal %81 {approx = true} : vector<1x8x1xf32> -> vector<1x8x1xf32>
    %83 = vector.broadcast %82 : vector<1x8x1xf32> to vector<1x8x8xf32>
    %84 = arith.mulf %79, %83 : vector<1x8x8xf32>
    "tpu.trace_start"() <{level = 10 : i32, message = "bqk,bkd->bqd"}> : () -> ()
    %cst_34 = arith.constant dense<0.000000e+00> : vector<1x8x8xf32>
    %85 = tpu.matmul %84, %72, %cst_34 {dimension_numbers = #tpu.dot_dimension_numbers<[2], [1], [1], [2], [0, 0, 0, 1, 1, 2], [0], [0]>} : vector<1x8x8xf32>, vector<1x8x8xf32>, vector<1x8x8xf32> -> vector<1x8x8xf32>
    "tpu.trace_stop"() : () -> ()
    %86 = vector.shape_cast %85 : vector<1x8x8xf32> to vector<8x8xf32>
    %87 = vector.extract_strided_slice %44 {offsets = [0, 16], sizes = [8, 8], strides = [1, 1]} : vector<8x32xf32> to vector<8x8xf32>
    %88 = vector.shape_cast %87 : vector<8x8xf32> to vector<1x8x8xf32>
    %89 = vector.extract_strided_slice %45 {offsets = [0, 16], sizes = [8, 8], strides = [1, 1]} : vector<8x32xf32> to vector<8x8xf32>
    %90 = vector.shape_cast %89 : vector<8x8xf32> to vector<1x8x8xf32>
    %91 = vector.extract_strided_slice %46 {offsets = [0, 16], sizes = [8, 8], strides = [1, 1]} : vector<8x32xf32> to vector<8x8xf32>
    %92 = vector.shape_cast %91 : vector<8x8xf32> to vector<1x8x8xf32>
    "tpu.trace_start"() <{level = 10 : i32, message = "bqd,bkd->bqk"}> : () -> ()
    %cst_35 = arith.constant dense<0.000000e+00> : vector<1x8x8xf32>
    %93 = tpu.matmul %88, %90, %cst_35 {dimension_numbers = #tpu.dot_dimension_numbers<[2], [2], [1], [1], [0, 0, 0, 1, 1, 1], [0], [0]>} : vector<1x8x8xf32>, vector<1x8x8xf32>, vector<1x8x8xf32> -> vector<1x8x8xf32>
    "tpu.trace_stop"() : () -> ()
    %94 = arith.addf %93, %36 : vector<1x8x8xf32>
    %cst_36 = arith.constant dense<0xFF800000> : vector<1x8xf32>
    %95 = vector.multi_reduction <maximumf>, %94, %cst_36 [2] : vector<1x8x8xf32> to vector<1x8xf32>
    %96 = vector.shape_cast %95 : vector<1x8xf32> to vector<1x8x1xf32>
    %97 = vector.broadcast %96 : vector<1x8x1xf32> to vector<1x8x8xf32>
    %98 = arith.subf %94, %97 : vector<1x8x8xf32>
    %99 = math.exp %98 : vector<1x8x8xf32>
    %cst_37 = arith.constant dense<0.000000e+00> : vector<1x8xf32>
    %100 = vector.multi_reduction <add>, %99, %cst_37 [2] : vector<1x8x8xf32> to vector<1x8xf32>
    %101 = vector.shape_cast %100 : vector<1x8xf32> to vector<1x8x1xf32>
    %102 = tpu.reciprocal %101 {approx = true} : vector<1x8x1xf32> -> vector<1x8x1xf32>
    %103 = vector.broadcast %102 : vector<1x8x1xf32> to vector<1x8x8xf32>
    %104 = arith.mulf %99, %103 : vector<1x8x8xf32>
    "tpu.trace_start"() <{level = 10 : i32, message = "bqk,bkd->bqd"}> : () -> ()
    %cst_38 = arith.constant dense<0.000000e+00> : vector<1x8x8xf32>
    %105 = tpu.matmul %104, %92, %cst_38 {dimension_numbers = #tpu.dot_dimension_numbers<[2], [1], [1], [2], [0, 0, 0, 1, 1, 2], [0], [0]>} : vector<1x8x8xf32>, vector<1x8x8xf32>, vector<1x8x8xf32> -> vector<1x8x8xf32>
    "tpu.trace_stop"() : () -> ()
    %106 = vector.shape_cast %105 : vector<1x8x8xf32> to vector<8x8xf32>
    %107 = vector.extract_strided_slice %44 {offsets = [0, 24], sizes = [8, 8], strides = [1, 1]} : vector<8x32xf32> to vector<8x8xf32>
    %108 = vector.shape_cast %107 : vector<8x8xf32> to vector<1x8x8xf32>
    %109 = vector.extract_strided_slice %45 {offsets = [0, 24], sizes = [8, 8], strides = [1, 1]} : vector<8x32xf32> to vector<8x8xf32>
    %110 = vector.shape_cast %109 : vector<8x8xf32> to vector<1x8x8xf32>
    %111 = vector.extract_strided_slice %46 {offsets = [0, 24], sizes = [8, 8], strides = [1, 1]} : vector<8x32xf32> to vector<8x8xf32>
    %112 = vector.shape_cast %111 : vector<8x8xf32> to vector<1x8x8xf32>
    "tpu.trace_start"() <{level = 10 : i32, message = "bqd,bkd->bqk"}> : () -> ()
    %cst_39 = arith.constant dense<0.000000e+00> : vector<1x8x8xf32>
    %113 = tpu.matmul %108, %110, %cst_39 {dimension_numbers = #tpu.dot_dimension_numbers<[2], [2], [1], [1], [0, 0, 0, 1, 1, 1], [0], [0]>} : vector<1x8x8xf32>, vector<1x8x8xf32>, vector<1x8x8xf32> -> vector<1x8x8xf32>
    "tpu.trace_stop"() : () -> ()
    %114 = arith.addf %113, %36 : vector<1x8x8xf32>
    %cst_40 = arith.constant dense<0xFF800000> : vector<1x8xf32>
    %115 = vector.multi_reduction <maximumf>, %114, %cst_40 [2] : vector<1x8x8xf32> to vector<1x8xf32>
    %116 = vector.shape_cast %115 : vector<1x8xf32> to vector<1x8x1xf32>
    %117 = vector.broadcast %116 : vector<1x8x1xf32> to vector<1x8x8xf32>
    %118 = arith.subf %114, %117 : vector<1x8x8xf32>
    %119 = math.exp %118 : vector<1x8x8xf32>
    %cst_41 = arith.constant dense<0.000000e+00> : vector<1x8xf32>
    %120 = vector.multi_reduction <add>, %119, %cst_41 [2] : vector<1x8x8xf32> to vector<1x8xf32>
    %121 = vector.shape_cast %120 : vector<1x8xf32> to vector<1x8x1xf32>
    %122 = tpu.reciprocal %121 {approx = true} : vector<1x8x1xf32> -> vector<1x8x1xf32>
    %123 = vector.broadcast %122 : vector<1x8x1xf32> to vector<1x8x8xf32>
    %124 = arith.mulf %119, %123 : vector<1x8x8xf32>
    "tpu.trace_start"() <{level = 10 : i32, message = "bqk,bkd->bqd"}> : () -> ()
    %cst_42 = arith.constant dense<0.000000e+00> : vector<1x8x8xf32>
    %125 = tpu.matmul %124, %112, %cst_42 {dimension_numbers = #tpu.dot_dimension_numbers<[2], [1], [1], [2], [0, 0, 0, 1, 1, 2], [0], [0]>} : vector<1x8x8xf32>, vector<1x8x8xf32>, vector<1x8x8xf32> -> vector<1x8x8xf32>
    "tpu.trace_stop"() : () -> ()
    %126 = vector.shape_cast %125 : vector<1x8x8xf32> to vector<8x8xf32>
    %127 = tpu.concatenate %66, %86, %106, %126 in 1 : vector<8x8xf32>, vector<8x8xf32>, vector<8x8xf32>, vector<8x8xf32> -> vector<8x32xf32>
    %c0_43 = arith.constant 0 : index
    %c0_44 = arith.constant 0 : index
    %c0_45 = arith.constant 0 : index
    %128 = vector.load %arg11[%c0_43, %c0_44, %c0_45] : memref<2x32x32xf32, #tpu.memory_space<vmem>>, vector<1x32x32xf32>
    %129 = vector.shape_cast %128 : vector<1x32x32xf32> to vector<32x32xf32>
    %cst_46 = arith.constant dense<0.000000e+00> : vector<8x32xf32>
    %130 = tpu.matmul %127, %129, %cst_46 {dimension_numbers = #tpu.dot_dimension_numbers<[1], [0], [0], [1], [0, 0, 1, 1], [], []>} : vector<8x32xf32>, vector<32x32xf32>, vector<8x32xf32> -> vector<8x32xf32>
    %c0_47 = arith.constant 0 : index
    %c0_48 = arith.constant 0 : index
    %c0_49 = arith.constant 0 : index
    %131 = vector.load %arg12[%c0_47, %c0_48, %c0_49] : memref<2x1x32xf32, #tpu.memory_space<vmem>>, vector<1x1x32xf32>
    %132 = vector.shape_cast %131 : vector<1x1x32xf32> to vector<1x32xf32>
    %133 = vector.broadcast %132 : vector<1x32xf32> to vector<8x32xf32>
    %134 = arith.addf %130, %133 : vector<8x32xf32>
    %135 = arith.addf %33, %134 : vector<8x32xf32>
    %c0_50 = arith.constant 0 : index
    %c0_51 = arith.constant 0 : index
    %c0_52 = arith.constant 0 : index
    %136 = vector.load %arg13[%c0_50, %c0_51, %c0_52] : memref<2x1x32xf32, #tpu.memory_space<vmem>>, vector<1x1x32xf32>
    %137 = vector.shape_cast %136 : vector<1x1x32xf32> to vector<1x32xf32>
    %c0_53 = arith.constant 0 : index
    %c0_54 = arith.constant 0 : index
    %c0_55 = arith.constant 0 : index
    %138 = vector.load %arg14[%c0_53, %c0_54, %c0_55] : memref<2x1x32xf32, #tpu.memory_space<vmem>>, vector<1x1x32xf32>
    %139 = vector.shape_cast %138 : vector<1x1x32xf32> to vector<1x32xf32>
    %cst_56 = arith.constant dense<0.000000e+00> : vector<8xf32>
    %140 = vector.multi_reduction <add>, %135, %cst_56 [1] : vector<8x32xf32> to vector<8xf32>
    %141 = vector.shape_cast %140 : vector<8xf32> to vector<8x1xf32>
    %cst_57 = arith.constant 3.200000e+01 : f32
    %142 = vector.broadcast %cst_57 : f32 to vector<8x1xf32>
    %143 = arith.divf %141, %142 : vector<8x1xf32>
    %144 = vector.broadcast %143 : vector<8x1xf32> to vector<8x32xf32>
    %145 = arith.subf %135, %144 : vector<8x32xf32>
    %146 = arith.mulf %145, %145 : vector<8x32xf32>
    %cst_58 = arith.constant dense<0.000000e+00> : vector<8xf32>
    %147 = vector.multi_reduction <add>, %146, %cst_58 [1] : vector<8x32xf32> to vector<8xf32>
    %148 = vector.shape_cast %147 : vector<8xf32> to vector<8x1xf32>
    %cst_59 = arith.constant 3.200000e+01 : f32
    %149 = vector.broadcast %cst_59 : f32 to vector<8x1xf32>
    %150 = arith.divf %148, %149 : vector<8x1xf32>
    %151 = vector.broadcast %143 : vector<8x1xf32> to vector<8x32xf32>
    %152 = arith.subf %135, %151 : vector<8x32xf32>
    %cst_60 = arith.constant 9.99999974E-6 : f32
    %153 = vector.broadcast %cst_60 : f32 to vector<8x1xf32>
    %154 = arith.addf %150, %153 : vector<8x1xf32>
    %155 = math.rsqrt %154 : vector<8x1xf32>
    %156 = vector.broadcast %155 : vector<8x1xf32> to vector<8x32xf32>
    %157 = arith.mulf %152, %156 : vector<8x32xf32>
    %158 = vector.broadcast %137 : vector<1x32xf32> to vector<8x32xf32>
    %159 = arith.mulf %157, %158 : vector<8x32xf32>
    %160 = vector.broadcast %139 : vector<1x32xf32> to vector<8x32xf32>
    %161 = arith.addf %159, %160 : vector<8x32xf32>
    %c0_61 = arith.constant 0 : index
    %c0_62 = arith.constant 0 : index
    %c0_63 = arith.constant 0 : index
    %162 = vector.load %arg15[%c0_61, %c0_62, %c0_63] : memref<2x32x512xf32, #tpu.memory_space<vmem>>, vector<1x32x512xf32>
    %163 = vector.shape_cast %162 : vector<1x32x512xf32> to vector<32x512xf32>
    %cst_64 = arith.constant dense<0.000000e+00> : vector<8x512xf32>
    %164 = tpu.matmul %161, %163, %cst_64 {dimension_numbers = #tpu.dot_dimension_numbers<[1], [0], [0], [1], [0, 0, 1, 1], [], []>} : vector<8x32xf32>, vector<32x512xf32>, vector<8x512xf32> -> vector<8x512xf32>
    %c0_65 = arith.constant 0 : index
    %c0_66 = arith.constant 0 : index
    %c0_67 = arith.constant 0 : index
    %165 = vector.load %arg16[%c0_65, %c0_66, %c0_67] : memref<2x1x512xf32, #tpu.memory_space<vmem>>, vector<1x1x512xf32>
    %166 = vector.shape_cast %165 : vector<1x1x512xf32> to vector<1x512xf32>
    %167 = vector.broadcast %166 : vector<1x512xf32> to vector<8x512xf32>
    %168 = arith.addf %164, %167 : vector<8x512xf32>
    %cst_68 = arith.constant 0.000000e+00 : f32
    %169 = vector.broadcast %cst_68 : f32 to vector<8x512xf32>
    %170 = arith.maximumf %168, %169 : vector<8x512xf32>
    %c0_69 = arith.constant 0 : index
    %c0_70 = arith.constant 0 : index
    %c0_71 = arith.constant 0 : index
    %171 = vector.load %arg17[%c0_69, %c0_70, %c0_71] : memref<2x512x32xf32, #tpu.memory_space<vmem>>, vector<1x512x32xf32>
    %172 = vector.shape_cast %171 : vector<1x512x32xf32> to vector<512x32xf32>
    %cst_72 = arith.constant dense<0.000000e+00> : vector<8x32xf32>
    %173 = tpu.matmul %170, %172, %cst_72 {dimension_numbers = #tpu.dot_dimension_numbers<[1], [0], [0], [1], [0, 0, 1, 1], [], []>} : vector<8x512xf32>, vector<512x32xf32>, vector<8x32xf32> -> vector<8x32xf32>
    %c0_73 = arith.constant 0 : index
    %c0_74 = arith.constant 0 : index
    %c0_75 = arith.constant 0 : index
    %174 = vector.load %arg18[%c0_73, %c0_74, %c0_75] : memref<2x1x32xf32, #tpu.memory_space<vmem>>, vector<1x1x32xf32>
    %175 = vector.shape_cast %174 : vector<1x1x32xf32> to vector<1x32xf32>
    %176 = vector.broadcast %175 : vector<1x32xf32> to vector<8x32xf32>
    %177 = arith.addf %173, %176 : vector<8x32xf32>
    %178 = arith.addf %161, %177 : vector<8x32xf32>
    %c0_76 = arith.constant 0 : index
    %c0_77 = arith.constant 0 : index
    %c0_78 = arith.constant 0 : index
    %179 = vector.load %arg19[%c0_76, %c0_77, %c0_78] : memref<2x1x32xf32, #tpu.memory_space<vmem>>, vector<1x1x32xf32>
    %180 = vector.shape_cast %179 : vector<1x1x32xf32> to vector<1x32xf32>
    %c0_79 = arith.constant 0 : index
    %c0_80 = arith.constant 0 : index
    %c0_81 = arith.constant 0 : index
    %181 = vector.load %arg20[%c0_79, %c0_80, %c0_81] : memref<2x1x32xf32, #tpu.memory_space<vmem>>, vector<1x1x32xf32>
    %182 = vector.shape_cast %181 : vector<1x1x32xf32> to vector<1x32xf32>
    %cst_82 = arith.constant dense<0.000000e+00> : vector<8xf32>
    %183 = vector.multi_reduction <add>, %178, %cst_82 [1] : vector<8x32xf32> to vector<8xf32>
    %184 = vector.shape_cast %183 : vector<8xf32> to vector<8x1xf32>
    %cst_83 = arith.constant 3.200000e+01 : f32
    %185 = vector.broadcast %cst_83 : f32 to vector<8x1xf32>
    %186 = arith.divf %184, %185 : vector<8x1xf32>
    %187 = vector.broadcast %186 : vector<8x1xf32> to vector<8x32xf32>
    %188 = arith.subf %178, %187 : vector<8x32xf32>
    %189 = arith.mulf %188, %188 : vector<8x32xf32>
    %cst_84 = arith.constant dense<0.000000e+00> : vector<8xf32>
    %190 = vector.multi_reduction <add>, %189, %cst_84 [1] : vector<8x32xf32> to vector<8xf32>
    %191 = vector.shape_cast %190 : vector<8xf32> to vector<8x1xf32>
    %cst_85 = arith.constant 3.200000e+01 : f32
    %192 = vector.broadcast %cst_85 : f32 to vector<8x1xf32>
    %193 = arith.divf %191, %192 : vector<8x1xf32>
    %194 = vector.broadcast %186 : vector<8x1xf32> to vector<8x32xf32>
    %195 = arith.subf %178, %194 : vector<8x32xf32>
    %cst_86 = arith.constant 9.99999974E-6 : f32
    %196 = vector.broadcast %cst_86 : f32 to vector<8x1xf32>
    %197 = arith.addf %193, %196 : vector<8x1xf32>
    %198 = math.rsqrt %197 : vector<8x1xf32>
    %199 = vector.broadcast %198 : vector<8x1xf32> to vector<8x32xf32>
    %200 = arith.mulf %195, %199 : vector<8x32xf32>
    %201 = vector.broadcast %180 : vector<1x32xf32> to vector<8x32xf32>
    %202 = arith.mulf %200, %201 : vector<8x32xf32>
    %203 = vector.broadcast %182 : vector<1x32xf32> to vector<8x32xf32>
    %204 = arith.addf %202, %203 : vector<8x32xf32>
    %c1 = arith.constant 1 : index
    %c0_87 = arith.constant 0 : index
    %c0_88 = arith.constant 0 : index
    %205 = vector.load %arg9[%c1, %c0_87, %c0_88] : memref<2x32x96xf32, #tpu.memory_space<vmem>>, vector<1x32x96xf32>
    %206 = vector.shape_cast %205 : vector<1x32x96xf32> to vector<32x96xf32>
    %cst_89 = arith.constant dense<0.000000e+00> : vector<8x96xf32>
    %207 = tpu.matmul %204, %206, %cst_89 {dimension_numbers = #tpu.dot_dimension_numbers<[1], [0], [0], [1], [0, 0, 1, 1], [], []>} : vector<8x32xf32>, vector<32x96xf32>, vector<8x96xf32> -> vector<8x96xf32>
    %c1_90 = arith.constant 1 : index
    %c0_91 = arith.constant 0 : index
    %c0_92 = arith.constant 0 : index
    %208 = vector.load %arg10[%c1_90, %c0_91, %c0_92] : memref<2x1x96xf32, #tpu.memory_space<vmem>>, vector<1x1x96xf32>
    %209 = vector.shape_cast %208 : vector<1x1x96xf32> to vector<1x96xf32>
    %210 = vector.broadcast %209 : vector<1x96xf32> to vector<8x96xf32>
    %211 = arith.addf %207, %210 : vector<8x96xf32>
    %212 = vector.extract_strided_slice %211 {offsets = [0, 0], sizes = [8, 32], strides = [1, 1]} : vector<8x96xf32> to vector<8x32xf32>
    %213 = vector.extract_strided_slice %211 {offsets = [0, 32], sizes = [8, 32], strides = [1, 1]} : vector<8x96xf32> to vector<8x32xf32>
    %214 = vector.extract_strided_slice %211 {offsets = [0, 64], sizes = [8, 32], strides = [1, 1]} : vector<8x96xf32> to vector<8x32xf32>
    %215 = vector.extract_strided_slice %212 {offsets = [0, 0], sizes = [8, 8], strides = [1, 1]} : vector<8x32xf32> to vector<8x8xf32>
    %216 = vector.shape_cast %215 : vector<8x8xf32> to vector<1x8x8xf32>
    %217 = vector.extract_strided_slice %213 {offsets = [0, 0], sizes = [8, 8], strides = [1, 1]} : vector<8x32xf32> to vector<8x8xf32>
    %218 = vector.shape_cast %217 : vector<8x8xf32> to vector<1x8x8xf32>
    %219 = vector.extract_strided_slice %214 {offsets = [0, 0], sizes = [8, 8], strides = [1, 1]} : vector<8x32xf32> to vector<8x8xf32>
    %220 = vector.shape_cast %219 : vector<8x8xf32> to vector<1x8x8xf32>
    "tpu.trace_start"() <{level = 10 : i32, message = "bqd,bkd->bqk"}> : () -> ()
    %cst_93 = arith.constant dense<0.000000e+00> : vector<1x8x8xf32>
    %221 = tpu.matmul %216, %218, %cst_93 {dimension_numbers = #tpu.dot_dimension_numbers<[2], [2], [1], [1], [0, 0, 0, 1, 1, 1], [0], [0]>} : vector<1x8x8xf32>, vector<1x8x8xf32>, vector<1x8x8xf32> -> vector<1x8x8xf32>
    "tpu.trace_stop"() : () -> ()
    %222 = arith.addf %221, %36 : vector<1x8x8xf32>
    %cst_94 = arith.constant dense<0xFF800000> : vector<1x8xf32>
    %223 = vector.multi_reduction <maximumf>, %222, %cst_94 [2] : vector<1x8x8xf32> to vector<1x8xf32>
    %224 = vector.shape_cast %223 : vector<1x8xf32> to vector<1x8x1xf32>
    %225 = vector.broadcast %224 : vector<1x8x1xf32> to vector<1x8x8xf32>
    %226 = arith.subf %222, %225 : vector<1x8x8xf32>
    %227 = math.exp %226 : vector<1x8x8xf32>
    %cst_95 = arith.constant dense<0.000000e+00> : vector<1x8xf32>
    %228 = vector.multi_reduction <add>, %227, %cst_95 [2] : vector<1x8x8xf32> to vector<1x8xf32>
    %229 = vector.shape_cast %228 : vector<1x8xf32> to vector<1x8x1xf32>
    %230 = tpu.reciprocal %229 {approx = true} : vector<1x8x1xf32> -> vector<1x8x1xf32>
    %231 = vector.broadcast %230 : vector<1x8x1xf32> to vector<1x8x8xf32>
    %232 = arith.mulf %227, %231 : vector<1x8x8xf32>
    "tpu.trace_start"() <{level = 10 : i32, message = "bqk,bkd->bqd"}> : () -> ()
    %cst_96 = arith.constant dense<0.000000e+00> : vector<1x8x8xf32>
    %233 = tpu.matmul %232, %220, %cst_96 {dimension_numbers = #tpu.dot_dimension_numbers<[2], [1], [1], [2], [0, 0, 0, 1, 1, 2], [0], [0]>} : vector<1x8x8xf32>, vector<1x8x8xf32>, vector<1x8x8xf32> -> vector<1x8x8xf32>
    "tpu.trace_stop"() : () -> ()
    %234 = vector.shape_cast %233 : vector<1x8x8xf32> to vector<8x8xf32>
    %235 = vector.extract_strided_slice %212 {offsets = [0, 8], sizes = [8, 8], strides = [1, 1]} : vector<8x32xf32> to vector<8x8xf32>
    %236 = vector.shape_cast %235 : vector<8x8xf32> to vector<1x8x8xf32>
    %237 = vector.extract_strided_slice %213 {offsets = [0, 8], sizes = [8, 8], strides = [1, 1]} : vector<8x32xf32> to vector<8x8xf32>
    %238 = vector.shape_cast %237 : vector<8x8xf32> to vector<1x8x8xf32>
    %239 = vector.extract_strided_slice %214 {offsets = [0, 8], sizes = [8, 8], strides = [1, 1]} : vector<8x32xf32> to vector<8x8xf32>
    %240 = vector.shape_cast %239 : vector<8x8xf32> to vector<1x8x8xf32>
    "tpu.trace_start"() <{level = 10 : i32, message = "bqd,bkd->bqk"}> : () -> ()
    %cst_97 = arith.constant dense<0.000000e+00> : vector<1x8x8xf32>
    %241 = tpu.matmul %236, %238, %cst_97 {dimension_numbers = #tpu.dot_dimension_numbers<[2], [2], [1], [1], [0, 0, 0, 1, 1, 1], [0], [0]>} : vector<1x8x8xf32>, vector<1x8x8xf32>, vector<1x8x8xf32> -> vector<1x8x8xf32>
    "tpu.trace_stop"() : () -> ()
    %242 = arith.addf %241, %36 : vector<1x8x8xf32>
    %cst_98 = arith.constant dense<0xFF800000> : vector<1x8xf32>
    %243 = vector.multi_reduction <maximumf>, %242, %cst_98 [2] : vector<1x8x8xf32> to vector<1x8xf32>
    %244 = vector.shape_cast %243 : vector<1x8xf32> to vector<1x8x1xf32>
    %245 = vector.broadcast %244 : vector<1x8x1xf32> to vector<1x8x8xf32>
    %246 = arith.subf %242, %245 : vector<1x8x8xf32>
    %247 = math.exp %246 : vector<1x8x8xf32>
    %cst_99 = arith.constant dense<0.000000e+00> : vector<1x8xf32>
    %248 = vector.multi_reduction <add>, %247, %cst_99 [2] : vector<1x8x8xf32> to vector<1x8xf32>
    %249 = vector.shape_cast %248 : vector<1x8xf32> to vector<1x8x1xf32>
    %250 = tpu.reciprocal %249 {approx = true} : vector<1x8x1xf32> -> vector<1x8x1xf32>
    %251 = vector.broadcast %250 : vector<1x8x1xf32> to vector<1x8x8xf32>
    %252 = arith.mulf %247, %251 : vector<1x8x8xf32>
    "tpu.trace_start"() <{level = 10 : i32, message = "bqk,bkd->bqd"}> : () -> ()
    %cst_100 = arith.constant dense<0.000000e+00> : vector<1x8x8xf32>
    %253 = tpu.matmul %252, %240, %cst_100 {dimension_numbers = #tpu.dot_dimension_numbers<[2], [1], [1], [2], [0, 0, 0, 1, 1, 2], [0], [0]>} : vector<1x8x8xf32>, vector<1x8x8xf32>, vector<1x8x8xf32> -> vector<1x8x8xf32>
    "tpu.trace_stop"() : () -> ()
    %254 = vector.shape_cast %253 : vector<1x8x8xf32> to vector<8x8xf32>
    %255 = vector.extract_strided_slice %212 {offsets = [0, 16], sizes = [8, 8], strides = [1, 1]} : vector<8x32xf32> to vector<8x8xf32>
    %256 = vector.shape_cast %255 : vector<8x8xf32> to vector<1x8x8xf32>
    %257 = vector.extract_strided_slice %213 {offsets = [0, 16], sizes = [8, 8], strides = [1, 1]} : vector<8x32xf32> to vector<8x8xf32>
    %258 = vector.shape_cast %257 : vector<8x8xf32> to vector<1x8x8xf32>
    %259 = vector.extract_strided_slice %214 {offsets = [0, 16], sizes = [8, 8], strides = [1, 1]} : vector<8x32xf32> to vector<8x8xf32>
    %260 = vector.shape_cast %259 : vector<8x8xf32> to vector<1x8x8xf32>
    "tpu.trace_start"() <{level = 10 : i32, message = "bqd,bkd->bqk"}> : () -> ()
    %cst_101 = arith.constant dense<0.000000e+00> : vector<1x8x8xf32>
    %261 = tpu.matmul %256, %258, %cst_101 {dimension_numbers = #tpu.dot_dimension_numbers<[2], [2], [1], [1], [0, 0, 0, 1, 1, 1], [0], [0]>} : vector<1x8x8xf32>, vector<1x8x8xf32>, vector<1x8x8xf32> -> vector<1x8x8xf32>
    "tpu.trace_stop"() : () -> ()
    %262 = arith.addf %261, %36 : vector<1x8x8xf32>
    %cst_102 = arith.constant dense<0xFF800000> : vector<1x8xf32>
    %263 = vector.multi_reduction <maximumf>, %262, %cst_102 [2] : vector<1x8x8xf32> to vector<1x8xf32>
    %264 = vector.shape_cast %263 : vector<1x8xf32> to vector<1x8x1xf32>
    %265 = vector.broadcast %264 : vector<1x8x1xf32> to vector<1x8x8xf32>
    %266 = arith.subf %262, %265 : vector<1x8x8xf32>
    %267 = math.exp %266 : vector<1x8x8xf32>
    %cst_103 = arith.constant dense<0.000000e+00> : vector<1x8xf32>
    %268 = vector.multi_reduction <add>, %267, %cst_103 [2] : vector<1x8x8xf32> to vector<1x8xf32>
    %269 = vector.shape_cast %268 : vector<1x8xf32> to vector<1x8x1xf32>
    %270 = tpu.reciprocal %269 {approx = true} : vector<1x8x1xf32> -> vector<1x8x1xf32>
    %271 = vector.broadcast %270 : vector<1x8x1xf32> to vector<1x8x8xf32>
    %272 = arith.mulf %267, %271 : vector<1x8x8xf32>
    "tpu.trace_start"() <{level = 10 : i32, message = "bqk,bkd->bqd"}> : () -> ()
    %cst_104 = arith.constant dense<0.000000e+00> : vector<1x8x8xf32>
    %273 = tpu.matmul %272, %260, %cst_104 {dimension_numbers = #tpu.dot_dimension_numbers<[2], [1], [1], [2], [0, 0, 0, 1, 1, 2], [0], [0]>} : vector<1x8x8xf32>, vector<1x8x8xf32>, vector<1x8x8xf32> -> vector<1x8x8xf32>
    "tpu.trace_stop"() : () -> ()
    %274 = vector.shape_cast %273 : vector<1x8x8xf32> to vector<8x8xf32>
    %275 = vector.extract_strided_slice %212 {offsets = [0, 24], sizes = [8, 8], strides = [1, 1]} : vector<8x32xf32> to vector<8x8xf32>
    %276 = vector.shape_cast %275 : vector<8x8xf32> to vector<1x8x8xf32>
    %277 = vector.extract_strided_slice %213 {offsets = [0, 24], sizes = [8, 8], strides = [1, 1]} : vector<8x32xf32> to vector<8x8xf32>
    %278 = vector.shape_cast %277 : vector<8x8xf32> to vector<1x8x8xf32>
    %279 = vector.extract_strided_slice %214 {offsets = [0, 24], sizes = [8, 8], strides = [1, 1]} : vector<8x32xf32> to vector<8x8xf32>
    %280 = vector.shape_cast %279 : vector<8x8xf32> to vector<1x8x8xf32>
    "tpu.trace_start"() <{level = 10 : i32, message = "bqd,bkd->bqk"}> : () -> ()
    %cst_105 = arith.constant dense<0.000000e+00> : vector<1x8x8xf32>
    %281 = tpu.matmul %276, %278, %cst_105 {dimension_numbers = #tpu.dot_dimension_numbers<[2], [2], [1], [1], [0, 0, 0, 1, 1, 1], [0], [0]>} : vector<1x8x8xf32>, vector<1x8x8xf32>, vector<1x8x8xf32> -> vector<1x8x8xf32>
    "tpu.trace_stop"() : () -> ()
    %282 = arith.addf %281, %36 : vector<1x8x8xf32>
    %cst_106 = arith.constant dense<0xFF800000> : vector<1x8xf32>
    %283 = vector.multi_reduction <maximumf>, %282, %cst_106 [2] : vector<1x8x8xf32> to vector<1x8xf32>
    %284 = vector.shape_cast %283 : vector<1x8xf32> to vector<1x8x1xf32>
    %285 = vector.broadcast %284 : vector<1x8x1xf32> to vector<1x8x8xf32>
    %286 = arith.subf %282, %285 : vector<1x8x8xf32>
    %287 = math.exp %286 : vector<1x8x8xf32>
    %cst_107 = arith.constant dense<0.000000e+00> : vector<1x8xf32>
    %288 = vector.multi_reduction <add>, %287, %cst_107 [2] : vector<1x8x8xf32> to vector<1x8xf32>
    %289 = vector.shape_cast %288 : vector<1x8xf32> to vector<1x8x1xf32>
    %290 = tpu.reciprocal %289 {approx = true} : vector<1x8x1xf32> -> vector<1x8x1xf32>
    %291 = vector.broadcast %290 : vector<1x8x1xf32> to vector<1x8x8xf32>
    %292 = arith.mulf %287, %291 : vector<1x8x8xf32>
    "tpu.trace_start"() <{level = 10 : i32, message = "bqk,bkd->bqd"}> : () -> ()
    %cst_108 = arith.constant dense<0.000000e+00> : vector<1x8x8xf32>
    %293 = tpu.matmul %292, %280, %cst_108 {dimension_numbers = #tpu.dot_dimension_numbers<[2], [1], [1], [2], [0, 0, 0, 1, 1, 2], [0], [0]>} : vector<1x8x8xf32>, vector<1x8x8xf32>, vector<1x8x8xf32> -> vector<1x8x8xf32>
    "tpu.trace_stop"() : () -> ()
    %294 = vector.shape_cast %293 : vector<1x8x8xf32> to vector<8x8xf32>
    %295 = tpu.concatenate %234, %254, %274, %294 in 1 : vector<8x8xf32>, vector<8x8xf32>, vector<8x8xf32>, vector<8x8xf32> -> vector<8x32xf32>
    %c1_109 = arith.constant 1 : index
    %c0_110 = arith.constant 0 : index
    %c0_111 = arith.constant 0 : index
    %296 = vector.load %arg11[%c1_109, %c0_110, %c0_111] : memref<2x32x32xf32, #tpu.memory_space<vmem>>, vector<1x32x32xf32>
    %297 = vector.shape_cast %296 : vector<1x32x32xf32> to vector<32x32xf32>
    %cst_112 = arith.constant dense<0.000000e+00> : vector<8x32xf32>
    %298 = tpu.matmul %295, %297, %cst_112 {dimension_numbers = #tpu.dot_dimension_numbers<[1], [0], [0], [1], [0, 0, 1, 1], [], []>} : vector<8x32xf32>, vector<32x32xf32>, vector<8x32xf32> -> vector<8x32xf32>
    %c1_113 = arith.constant 1 : index
    %c0_114 = arith.constant 0 : index
    %c0_115 = arith.constant 0 : index
    %299 = vector.load %arg12[%c1_113, %c0_114, %c0_115] : memref<2x1x32xf32, #tpu.memory_space<vmem>>, vector<1x1x32xf32>
    %300 = vector.shape_cast %299 : vector<1x1x32xf32> to vector<1x32xf32>
    %301 = vector.broadcast %300 : vector<1x32xf32> to vector<8x32xf32>
    %302 = arith.addf %298, %301 : vector<8x32xf32>
    %303 = arith.addf %204, %302 : vector<8x32xf32>
    %c1_116 = arith.constant 1 : index
    %c0_117 = arith.constant 0 : index
    %c0_118 = arith.constant 0 : index
    %304 = vector.load %arg13[%c1_116, %c0_117, %c0_118] : memref<2x1x32xf32, #tpu.memory_space<vmem>>, vector<1x1x32xf32>
    %305 = vector.shape_cast %304 : vector<1x1x32xf32> to vector<1x32xf32>
    %c1_119 = arith.constant 1 : index
    %c0_120 = arith.constant 0 : index
    %c0_121 = arith.constant 0 : index
    %306 = vector.load %arg14[%c1_119, %c0_120, %c0_121] : memref<2x1x32xf32, #tpu.memory_space<vmem>>, vector<1x1x32xf32>
    %307 = vector.shape_cast %306 : vector<1x1x32xf32> to vector<1x32xf32>
    %cst_122 = arith.constant dense<0.000000e+00> : vector<8xf32>
    %308 = vector.multi_reduction <add>, %303, %cst_122 [1] : vector<8x32xf32> to vector<8xf32>
    %309 = vector.shape_cast %308 : vector<8xf32> to vector<8x1xf32>
    %cst_123 = arith.constant 3.200000e+01 : f32
    %310 = vector.broadcast %cst_123 : f32 to vector<8x1xf32>
    %311 = arith.divf %309, %310 : vector<8x1xf32>
    %312 = vector.broadcast %311 : vector<8x1xf32> to vector<8x32xf32>
    %313 = arith.subf %303, %312 : vector<8x32xf32>
    %314 = arith.mulf %313, %313 : vector<8x32xf32>
    %cst_124 = arith.constant dense<0.000000e+00> : vector<8xf32>
    %315 = vector.multi_reduction <add>, %314, %cst_124 [1] : vector<8x32xf32> to vector<8xf32>
    %316 = vector.shape_cast %315 : vector<8xf32> to vector<8x1xf32>
    %cst_125 = arith.constant 3.200000e+01 : f32
    %317 = vector.broadcast %cst_125 : f32 to vector<8x1xf32>
    %318 = arith.divf %316, %317 : vector<8x1xf32>
    %319 = vector.broadcast %311 : vector<8x1xf32> to vector<8x32xf32>
    %320 = arith.subf %303, %319 : vector<8x32xf32>
    %cst_126 = arith.constant 9.99999974E-6 : f32
    %321 = vector.broadcast %cst_126 : f32 to vector<8x1xf32>
    %322 = arith.addf %318, %321 : vector<8x1xf32>
    %323 = math.rsqrt %322 : vector<8x1xf32>
    %324 = vector.broadcast %323 : vector<8x1xf32> to vector<8x32xf32>
    %325 = arith.mulf %320, %324 : vector<8x32xf32>
    %326 = vector.broadcast %305 : vector<1x32xf32> to vector<8x32xf32>
    %327 = arith.mulf %325, %326 : vector<8x32xf32>
    %328 = vector.broadcast %307 : vector<1x32xf32> to vector<8x32xf32>
    %329 = arith.addf %327, %328 : vector<8x32xf32>
    %c1_127 = arith.constant 1 : index
    %c0_128 = arith.constant 0 : index
    %c0_129 = arith.constant 0 : index
    %330 = vector.load %arg15[%c1_127, %c0_128, %c0_129] : memref<2x32x512xf32, #tpu.memory_space<vmem>>, vector<1x32x512xf32>
    %331 = vector.shape_cast %330 : vector<1x32x512xf32> to vector<32x512xf32>
    %cst_130 = arith.constant dense<0.000000e+00> : vector<8x512xf32>
    %332 = tpu.matmul %329, %331, %cst_130 {dimension_numbers = #tpu.dot_dimension_numbers<[1], [0], [0], [1], [0, 0, 1, 1], [], []>} : vector<8x32xf32>, vector<32x512xf32>, vector<8x512xf32> -> vector<8x512xf32>
    %c1_131 = arith.constant 1 : index
    %c0_132 = arith.constant 0 : index
    %c0_133 = arith.constant 0 : index
    %333 = vector.load %arg16[%c1_131, %c0_132, %c0_133] : memref<2x1x512xf32, #tpu.memory_space<vmem>>, vector<1x1x512xf32>
    %334 = vector.shape_cast %333 : vector<1x1x512xf32> to vector<1x512xf32>
    %335 = vector.broadcast %334 : vector<1x512xf32> to vector<8x512xf32>
    %336 = arith.addf %332, %335 : vector<8x512xf32>
    %cst_134 = arith.constant 0.000000e+00 : f32
    %337 = vector.broadcast %cst_134 : f32 to vector<8x512xf32>
    %338 = arith.maximumf %336, %337 : vector<8x512xf32>
    %c1_135 = arith.constant 1 : index
    %c0_136 = arith.constant 0 : index
    %c0_137 = arith.constant 0 : index
    %339 = vector.load %arg17[%c1_135, %c0_136, %c0_137] : memref<2x512x32xf32, #tpu.memory_space<vmem>>, vector<1x512x32xf32>
    %340 = vector.shape_cast %339 : vector<1x512x32xf32> to vector<512x32xf32>
    %cst_138 = arith.constant dense<0.000000e+00> : vector<8x32xf32>
    %341 = tpu.matmul %338, %340, %cst_138 {dimension_numbers = #tpu.dot_dimension_numbers<[1], [0], [0], [1], [0, 0, 1, 1], [], []>} : vector<8x512xf32>, vector<512x32xf32>, vector<8x32xf32> -> vector<8x32xf32>
    %c1_139 = arith.constant 1 : index
    %c0_140 = arith.constant 0 : index
    %c0_141 = arith.constant 0 : index
    %342 = vector.load %arg18[%c1_139, %c0_140, %c0_141] : memref<2x1x32xf32, #tpu.memory_space<vmem>>, vector<1x1x32xf32>
    %343 = vector.shape_cast %342 : vector<1x1x32xf32> to vector<1x32xf32>
    %344 = vector.broadcast %343 : vector<1x32xf32> to vector<8x32xf32>
    %345 = arith.addf %341, %344 : vector<8x32xf32>
    %346 = arith.addf %329, %345 : vector<8x32xf32>
    %c1_142 = arith.constant 1 : index
    %c0_143 = arith.constant 0 : index
    %c0_144 = arith.constant 0 : index
    %347 = vector.load %arg19[%c1_142, %c0_143, %c0_144] : memref<2x1x32xf32, #tpu.memory_space<vmem>>, vector<1x1x32xf32>
    %348 = vector.shape_cast %347 : vector<1x1x32xf32> to vector<1x32xf32>
    %c1_145 = arith.constant 1 : index
    %c0_146 = arith.constant 0 : index
    %c0_147 = arith.constant 0 : index
    %349 = vector.load %arg20[%c1_145, %c0_146, %c0_147] : memref<2x1x32xf32, #tpu.memory_space<vmem>>, vector<1x1x32xf32>
    %350 = vector.shape_cast %349 : vector<1x1x32xf32> to vector<1x32xf32>
    %cst_148 = arith.constant dense<0.000000e+00> : vector<8xf32>
    %351 = vector.multi_reduction <add>, %346, %cst_148 [1] : vector<8x32xf32> to vector<8xf32>
    %352 = vector.shape_cast %351 : vector<8xf32> to vector<8x1xf32>
    %cst_149 = arith.constant 3.200000e+01 : f32
    %353 = vector.broadcast %cst_149 : f32 to vector<8x1xf32>
    %354 = arith.divf %352, %353 : vector<8x1xf32>
    %355 = vector.broadcast %354 : vector<8x1xf32> to vector<8x32xf32>
    %356 = arith.subf %346, %355 : vector<8x32xf32>
    %357 = arith.mulf %356, %356 : vector<8x32xf32>
    %cst_150 = arith.constant dense<0.000000e+00> : vector<8xf32>
    %358 = vector.multi_reduction <add>, %357, %cst_150 [1] : vector<8x32xf32> to vector<8xf32>
    %359 = vector.shape_cast %358 : vector<8xf32> to vector<8x1xf32>
    %cst_151 = arith.constant 3.200000e+01 : f32
    %360 = vector.broadcast %cst_151 : f32 to vector<8x1xf32>
    %361 = arith.divf %359, %360 : vector<8x1xf32>
    %362 = vector.broadcast %354 : vector<8x1xf32> to vector<8x32xf32>
    %363 = arith.subf %346, %362 : vector<8x32xf32>
    %cst_152 = arith.constant 9.99999974E-6 : f32
    %364 = vector.broadcast %cst_152 : f32 to vector<8x1xf32>
    %365 = arith.addf %361, %364 : vector<8x1xf32>
    %366 = math.rsqrt %365 : vector<8x1xf32>
    %367 = vector.broadcast %366 : vector<8x1xf32> to vector<8x32xf32>
    %368 = arith.mulf %363, %367 : vector<8x32xf32>
    %369 = vector.broadcast %348 : vector<1x32xf32> to vector<8x32xf32>
    %370 = arith.mulf %368, %369 : vector<8x32xf32>
    %371 = vector.broadcast %350 : vector<1x32xf32> to vector<8x32xf32>
    %372 = arith.addf %370, %371 : vector<8x32xf32>
    %373 = vector.shape_cast %372 : vector<8x32xf32> to vector<1x8x32xf32>
    %c0_153 = arith.constant 0 : index
    %c0_154 = arith.constant 0 : index
    %374 = vector.load %arg21[%c0_153, %c0_154] : memref<1x32xf32, #tpu.memory_space<vmem>>, vector<1x32xf32>
    %375 = vector.shape_cast %374 : vector<1x32xf32> to vector<1x1x32xf32>
    %376 = vector.broadcast %375 : vector<1x1x32xf32> to vector<1x8x32xf32>
    %377 = arith.mulf %373, %376 : vector<1x8x32xf32>
    %cst_155 = arith.constant dense<0.000000e+00> : vector<1x8xf32>
    %378 = vector.multi_reduction <add>, %377, %cst_155 [2] : vector<1x8x32xf32> to vector<1x8xf32>
    %379 = vector.shape_cast %378 : vector<1x8xf32> to vector<1x8x1xf32>
    %c0_156 = arith.constant 0 : index
    %c0_157 = arith.constant 0 : index
    %380 = vector.load %arg22[%c0_156, %c0_157] : memref<1x1xf32, #tpu.memory_space<vmem>>, vector<1x1xf32>
    %381 = vector.shape_cast %380 : vector<1x1xf32> to vector<1x1x1xf32>
    %382 = vector.broadcast %381 : vector<1x1x1xf32> to vector<1x8x1xf32>
    %383 = arith.addf %379, %382 : vector<1x8x1xf32>
    %c0_158 = arith.constant 0 : index
    %c0_159 = arith.constant 0 : index
    %c0_160 = arith.constant 0 : index
    %384 = vector.load %arg4[%c0_158, %c0_159, %c0_160] : memref<1x8x1xf32, #tpu.memory_space<vmem>>, vector<1x8x1xf32>
    %385 = arith.addf %383, %384 : vector<1x8x1xf32>
    %cst_161 = arith.constant dense<0xFF800000> : vector<1x1xf32>
    %386 = vector.multi_reduction <maximumf>, %385, %cst_161 [1] : vector<1x8x1xf32> to vector<1x1xf32>
    %387 = vector.shape_cast %386 : vector<1x1xf32> to vector<1x1x1xf32>
    %388 = vector.broadcast %387 : vector<1x1x1xf32> to vector<1x8x1xf32>
    %389 = arith.subf %385, %388 : vector<1x8x1xf32>
    %390 = math.exp %389 : vector<1x8x1xf32>
    %cst_162 = arith.constant dense<0.000000e+00> : vector<1x1xf32>
    %391 = vector.multi_reduction <add>, %390, %cst_162 [1] : vector<1x8x1xf32> to vector<1x1xf32>
    %392 = vector.shape_cast %391 : vector<1x1xf32> to vector<1x1x1xf32>
    %393 = tpu.reciprocal %392 {approx = true} : vector<1x1x1xf32> -> vector<1x1x1xf32>
    %394 = vector.broadcast %393 : vector<1x1x1xf32> to vector<1x8x1xf32>
    %395 = arith.mulf %390, %394 : vector<1x8x1xf32>
    %396 = vector.broadcast %395 : vector<1x8x1xf32> to vector<1x8x32xf32>
    %397 = arith.mulf %396, %373 : vector<1x8x32xf32>
    %cst_163 = arith.constant dense<0.000000e+00> : vector<1x32xf32>
    %398 = vector.multi_reduction <add>, %397, %cst_163 [1] : vector<1x8x32xf32> to vector<1x32xf32>
    %c0_164 = arith.constant 0 : index
    %c0_165 = arith.constant 0 : index
    %399 = vector.load %arg23[%c0_164, %c0_165] : memref<32x128xf32, #tpu.memory_space<vmem>>, vector<32x128xf32>
    %cst_166 = arith.constant dense<0.000000e+00> : vector<1x128xf32>
    %400 = tpu.matmul %398, %399, %cst_166 {dimension_numbers = #tpu.dot_dimension_numbers<[1], [0], [0], [1], [0, 0, 1, 1], [], []>} : vector<1x32xf32>, vector<32x128xf32>, vector<1x128xf32> -> vector<1x128xf32>
    %c0_167 = arith.constant 0 : index
    %c0_168 = arith.constant 0 : index
    %401 = vector.load %arg24[%c0_167, %c0_168] : memref<1x128xf32, #tpu.memory_space<vmem>>, vector<1x128xf32>
    %402 = arith.addf %400, %401 : vector<1x128xf32>
    %403 = vector.shape_cast %402 : vector<1x128xf32> to vector<1x1x128xf32>
    %c0_169 = arith.constant 0 : index
    %c0_170 = arith.constant 0 : index
    %c0_171 = arith.constant 0 : index
    %404 = vector.load %arg25[%c0_169, %c0_170, %c0_171] : memref<1x1x128xf32, #tpu.memory_space<vmem>>, vector<1x1x128xf32>
    tpu.vector_store %arg25[%c0_169, %c0_170, %c0_171], %403 {strides = array<i32>} : memref<1x1x128xf32, #tpu.memory_space<vmem>>, vector<1x1x128xf32>,
    return
  }
  func.func @transform_0(%arg0: i32) -> (i32, i32) {
    %c0_i32 = arith.constant 0 : i32
    %c0_i32_0 = arith.constant 0 : i32
    return %arg0, %c0_i32 : i32, i32
  }
  func.func @transform_1(%arg0: i32) -> (i32, i32) {
    %c0_i32 = arith.constant 0 : i32
    %c0_i32_0 = arith.constant 0 : i32
    return %arg0, %c0_i32 : i32, i32
  }
  func.func @transform_2(%arg0: i32) -> (i32, i32, i32) {
    %c0_i32 = arith.constant 0 : i32
    %c0_i32_0 = arith.constant 0 : i32
    %c0_i32_1 = arith.constant 0 : i32
    return %arg0, %c0_i32, %c0_i32_0 : i32, i32, i32
  }
  func.func @transform_3(%arg0: i32) -> (i32, i32, i32) {
    %c0_i32 = arith.constant 0 : i32
    %c0_i32_0 = arith.constant 0 : i32
    %c0_i32_1 = arith.constant 0 : i32
    return %arg0, %c0_i32, %c0_i32_0 : i32, i32, i32
  }
  func.func @transform_4(%arg0: i32) -> (i32, i32) {
    %c0_i32 = arith.constant 0 : i32
    %c0_i32_0 = arith.constant 0 : i32
    %c0_i32_1 = arith.constant 0 : i32
    return %c0_i32, %c0_i32_0 : i32, i32
  }
  func.func @transform_5(%arg0: i32) -> (i32, i32) {
    %c0_i32 = arith.constant 0 : i32
    %c0_i32_0 = arith.constant 0 : i32
    %c0_i32_1 = arith.constant 0 : i32
    return %c0_i32, %c0_i32_0 : i32, i32
  }
  func.func @transform_6(%arg0: i32) -> (i32, i32) {
    %c0_i32 = arith.constant 0 : i32
    %c0_i32_0 = arith.constant 0 : i32
    %c0_i32_1 = arith.constant 0 : i32
    return %c0_i32, %c0_i32_0 : i32, i32
  }
  func.func @transform_7(%arg0: i32) -> (i32, i32) {
    %c0_i32 = arith.constant 0 : i32
    %c0_i32_0 = arith.constant 0 : i32
    %c0_i32_1 = arith.constant 0 : i32
    return %c0_i32, %c0_i32_0 : i32, i32
  }
  func.func @transform_8(%arg0: i32) -> (i32, i32, i32) {
    %c0_i32 = arith.constant 0 : i32
    %c0_i32_0 = arith.constant 0 : i32
    %c0_i32_1 = arith.constant 0 : i32
    %c0_i32_2 = arith.constant 0 : i32
    return %c0_i32, %c0_i32_0, %c0_i32_1 : i32, i32, i32
  }
  func.func @transform_9(%arg0: i32) -> (i32, i32, i32) {
    %c0_i32 = arith.constant 0 : i32
    %c0_i32_0 = arith.constant 0 : i32
    %c0_i32_1 = arith.constant 0 : i32
    %c0_i32_2 = arith.constant 0 : i32
    return %c0_i32, %c0_i32_0, %c0_i32_1 : i32, i32, i32
  }
  func.func @transform_10(%arg0: i32) -> (i32, i32, i32) {
    %c0_i32 = arith.constant 0 : i32
    %c0_i32_0 = arith.constant 0 : i32
    %c0_i32_1 = arith.constant 0 : i32
    %c0_i32_2 = arith.constant 0 : i32
    return %c0_i32, %c0_i32_0, %c0_i32_1 : i32, i32, i32
  }
  func.func @transform_11(%arg0: i32) -> (i32, i32, i32) {
    %c0_i32 = arith.constant 0 : i32
    %c0_i32_0 = arith.constant 0 : i32
    %c0_i32_1 = arith.constant 0 : i32
    %c0_i32_2 = arith.constant 0 : i32
    return %c0_i32, %c0_i32_0, %c0_i32_1 : i32, i32, i32
  }
  func.func @transform_12(%arg0: i32) -> (i32, i32, i32) {
    %c0_i32 = arith.constant 0 : i32
    %c0_i32_0 = arith.constant 0 : i32
    %c0_i32_1 = arith.constant 0 : i32
    %c0_i32_2 = arith.constant 0 : i32
    return %c0_i32, %c0_i32_0, %c0_i32_1 : i32, i32, i32
  }
  func.func @transform_13(%arg0: i32) -> (i32, i32, i32) {
    %c0_i32 = arith.constant 0 : i32
    %c0_i32_0 = arith.constant 0 : i32
    %c0_i32_1 = arith.constant 0 : i32
    %c0_i32_2 = arith.constant 0 : i32
    return %c0_i32, %c0_i32_0, %c0_i32_1 : i32, i32, i32
  }
  func.func @transform_14(%arg0: i32) -> (i32, i32, i32) {
    %c0_i32 = arith.constant 0 : i32
    %c0_i32_0 = arith.constant 0 : i32
    %c0_i32_1 = arith.constant 0 : i32
    %c0_i32_2 = arith.constant 0 : i32
    return %c0_i32, %c0_i32_0, %c0_i32_1 : i32, i32, i32
  }
  func.func @transform_15(%arg0: i32) -> (i32, i32, i32) {
    %c0_i32 = arith.constant 0 : i32
    %c0_i32_0 = arith.constant 0 : i32
    %c0_i32_1 = arith.constant 0 : i32
    %c0_i32_2 = arith.constant 0 : i32
    return %c0_i32, %c0_i32_0, %c0_i32_1 : i32, i32, i32
  }
  func.func @transform_16(%arg0: i32) -> (i32, i32, i32) {
    %c0_i32 = arith.constant 0 : i32
    %c0_i32_0 = arith.constant 0 : i32
    %c0_i32_1 = arith.constant 0 : i32
    %c0_i32_2 = arith.constant 0 : i32
    return %c0_i32, %c0_i32_0, %c0_i32_1 : i32, i32, i32
  }
  func.func @transform_17(%arg0: i32) -> (i32, i32, i32) {
    %c0_i32 = arith.constant 0 : i32
    %c0_i32_0 = arith.constant 0 : i32
    %c0_i32_1 = arith.constant 0 : i32
    %c0_i32_2 = arith.constant 0 : i32
    return %c0_i32, %c0_i32_0, %c0_i32_1 : i32, i32, i32
  }
  func.func @transform_18(%arg0: i32) -> (i32, i32, i32) {
    %c0_i32 = arith.constant 0 : i32
    %c0_i32_0 = arith.constant 0 : i32
    %c0_i32_1 = arith.constant 0 : i32
    %c0_i32_2 = arith.constant 0 : i32
    return %c0_i32, %c0_i32_0, %c0_i32_1 : i32, i32, i32
  }
  func.func @transform_19(%arg0: i32) -> (i32, i32, i32) {
    %c0_i32 = arith.constant 0 : i32
    %c0_i32_0 = arith.constant 0 : i32
    %c0_i32_1 = arith.constant 0 : i32
    %c0_i32_2 = arith.constant 0 : i32
    return %c0_i32, %c0_i32_0, %c0_i32_1 : i32, i32, i32
  }
  func.func @transform_20(%arg0: i32) -> (i32, i32) {
    %c0_i32 = arith.constant 0 : i32
    %c0_i32_0 = arith.constant 0 : i32
    %c0_i32_1 = arith.constant 0 : i32
    return %c0_i32, %c0_i32_0 : i32, i32
  }
  func.func @transform_21(%arg0: i32) -> (i32, i32) {
    %c0_i32 = arith.constant 0 : i32
    %c0_i32_0 = arith.constant 0 : i32
    %c0_i32_1 = arith.constant 0 : i32
    return %c0_i32, %c0_i32_0 : i32, i32
  }
  func.func @transform_22(%arg0: i32) -> (i32, i32) {
    %c0_i32 = arith.constant 0 : i32
    %c0_i32_0 = arith.constant 0 : i32
    %c0_i32_1 = arith.constant 0 : i32
    return %c0_i32, %c0_i32_0 : i32, i32
  }
  func.func @transform_23(%arg0: i32) -> (i32, i32) {
    %c0_i32 = arith.constant 0 : i32
    %c0_i32_0 = arith.constant 0 : i32
    %c0_i32_1 = arith.constant 0 : i32
    return %c0_i32, %c0_i32_0 : i32, i32
  }
  func.func @transform_24(%arg0: i32) -> (i32, i32, i32) {
    %c0_i32 = arith.constant 0 : i32
    %c0_i32_0 = arith.constant 0 : i32
    %c0_i32_1 = arith.constant 0 : i32
    return %arg0, %c0_i32, %c0_i32_0 : i32, i32, i32
  }
}

</mosaic_0001>

<llo_original>
// kernel: forward.1
$region0: #{forward.1}
  #allocation0 [shape = 'u32[]', space=smem, size = 0x4, offset = 0x4, fixed_abs, tag = 'smem constant byte address 0x4 - core index']
  #allocation1 [shape = 'u32[144,128]{1,0:T(1,128)}', space=vmem, size = 0x12000, scoped, tag = 'internal scratch']
  #allocation2 [shape = 'f32[1,1]{1,0:T(1,128)S(1)}', space=vmem, size = 0x200, scoped, tag = 'scoped memory for forward.1']
  %s0 = inlined_call_operand.vmem [shape: f32[16,16], index: 0, kind: input, shape index: {}]
  %s1 = inlined_call_operand.vmem [shape: f32[16,32], index: 1, kind: input, shape index: {}]
  %s2 = inlined_call_operand.vmem [shape: f32[2,1,8], index: 2, kind: input, shape index: {}]
  %s3 = inlined_call_operand.vmem [shape: f32[2,8,1], index: 3, kind: input, shape index: {}]
  %s4 = inlined_call_operand.vmem [shape: f32[16,32], index: 4, kind: input, shape index: {}]
  %s5 = inlined_call_operand.vmem [shape: f32[1,32], index: 5, kind: input, shape index: {}]
  %s6 = inlined_call_operand.vmem [shape: f32[1,32], index: 6, kind: input, shape index: {}]
  %s7 = inlined_call_operand.vmem [shape: f32[1,32], index: 7, kind: input, shape index: {}]
  %s8 = inlined_call_operand.vmem [shape: f32[2,32,96], index: 8, kind: input, shape index: {}]
  %s9 = inlined_call_operand.vmem [shape: f32[2,1,96], index: 9, kind: input, shape index: {}]
  %s10 = inlined_call_operand.vmem [shape: f32[2,32,32], index: 10, kind: input, shape index: {}]
  %s11 = inlined_call_operand.vmem [shape: f32[2,1,32], index: 11, kind: input, shape index: {}]
  %s12 = inlined_call_operand.vmem [shape: f32[2,1,32], index: 12, kind: input, shape index: {}]
  %s13 = inlined_call_operand.vmem [shape: f32[2,1,32], index: 13, kind: input, shape index: {}]
  %s14 = inlined_call_operand.vmem [shape: f32[2,32,512], index: 14, kind: input, shape index: {}]
  %s15 = inlined_call_operand.vmem [shape: f32[2,1,512], index: 15, kind: input, shape index: {}]
  %s16 = inlined_call_operand.vmem [shape: f32[2,512,32], index: 16, kind: input, shape index: {}]
  %s17 = inlined_call_operand.vmem [shape: f32[2,1,32], index: 17, kind: input, shape index: {}]
  %s18 = inlined_call_operand.vmem [shape: f32[2,1,32], index: 18, kind: input, shape index: {}]
  %s19 = inlined_call_operand.vmem [shape: f32[2,1,32], index: 19, kind: input, shape index: {}]
  %s20 = inlined_call_operand.vmem [shape: f32[1,32], index: 20, kind: input, shape index: {}]
  %s21 = inlined_call_operand.<no memory space> [shape: f32[1,1], index: 21, kind: input, shape index: {}]
  %s22 = inlined_call_operand.vmem [shape: f32[32,128], index: 22, kind: input, shape index: {}]
  %s23 = inlined_call_operand.vmem [shape: f32[1,128], index: 23, kind: input, shape index: {}]
  %s24 = inlined_call_operand.hbm [shape: f32[2,1,128], index: 24, kind: output, shape index: {}]
  %s25 = sld [smem:[#allocation0]]
  $region129: #{forward.1} parent=0
    _
  %s27 = ssub.s32 1, %s25
  %s28 = scalar_select 0, %s27, %s25
  %v29 = vstv %s21
  %30 = vst [vmem:[#allocation2] sm:$0x1] %v29
  $region1: #{forward.1} parent=0
    #allocation3 [shape = 'u8[1024]{0}', space=vmem, size = 0x400, scoped, tag = 'output window, operand 0']
    #allocation4 [shape = 's32[2]{0}', space=sflag, size = 0x8, scoped, tag = 'scoped memory for forward.1']
    %31 = vsyncpa [#allocation4], 0
    %s32 = scalar_lea.sflag [#allocation4], 1
    %33 = vsyncpa %s32, 0
    loop: start=0, step=1, limit=4
    $region2: #{forward.1} parent=1 // loop_pre_header
      _
    $region3: #{forward.1} parent=1 // loop_header
      %s35 = sphi 0, %s39
      %p36 = scmp.ge.s32.totalorder %s35, 4
      %s45 = sphi 0, %s47
      %s48 = sphi 0, %s45
      %s49 = sphi 0, %s48
      %s65 = sphi 0, %s49
      %s71 = sphi 0, %s73
      %s74 = sphi 0, %s71
      %s75 = sphi 0, %s74
      %s91 = sphi 0, %s75
      %s97 = sphi 0, %s99
      %s100 = sphi 0, %s97
      %s101 = sphi 0, %s100
      %s117 = sphi 0, %s101
      %s123 = sphi 0, %s125
      %s126 = sphi 0, %s123
      %s127 = sphi 0, %s126
      %s143 = sphi 0, %s127
      %s147 = sphi 0, %s147
      %s149 = sphi 0, %s147
      %s150 = sphi 0, %s149
      %s164 = sphi 0, %s150
      %s168 = sphi 0, %s168
      %s170 = sphi 0, %s168
      %s171 = sphi 0, %s170
      %s185 = sphi 0, %s171
      %s189 = sphi 0, %s189
      %s191 = sphi 0, %s189
      %s192 = sphi 0, %s191
      %s206 = sphi 0, %s192
      %s210 = sphi 0, %s210
      %s212 = sphi 0, %s210
      %s213 = sphi 0, %s212
      %s227 = sphi 0, %s213
      %s231 = sphi 0, %s231
      %s233 = sphi 0, %s231
      %s234 = sphi 0, %s233
      %s248 = sphi 0, %s234
      %s252 = sphi 0, %s252
      %s254 = sphi 0, %s252
      %s255 = sphi 0, %s254
      %s269 = sphi 0, %s255
      %s273 = sphi 0, %s273
      %s275 = sphi 0, %s273
      %s276 = sphi 0, %s275
      %s290 = sphi 0, %s276
      %s294 = sphi 0, %s294
      %s296 = sphi 0, %s294
      %s297 = sphi 0, %s296
      %s311 = sphi 0, %s297
      %s315 = sphi 0, %s315
      %s317 = sphi 0, %s315
      %s318 = sphi 0, %s317
      %s332 = sphi 0, %s318
      %s336 = sphi 0, %s336
      %s338 = sphi 0, %s336
      %s339 = sphi 0, %s338
      %s353 = sphi 0, %s339
      %s357 = sphi 0, %s357
      %s359 = sphi 0, %s357
      %s360 = sphi 0, %s359
      %s374 = sphi 0, %s360
      %s378 = sphi 0, %s378
      %s380 = sphi 0, %s378
      %s381 = sphi 0, %s380
      %s395 = sphi 0, %s381
      %s399 = sphi 0, %s399
      %s401 = sphi 0, %s399
      %s402 = sphi 0, %s401
      %s416 = sphi 0, %s402
      %s420 = sphi 0, %s420
      %s422 = sphi 0, %s420
      %s423 = sphi 0, %s422
      %s437 = sphi 0, %s423
      %s441 = sphi 0, %s441
      %s443 = sphi 0, %s441
      %s444 = sphi 0, %s443
      %s458 = sphi 0, %s444
      %s462 = sphi 0, %s462
      %s464 = sphi 0, %s462
      %s465 = sphi 0, %s464
      %s479 = sphi 0, %s465
      %s483 = sphi 0, %s483
      %s485 = sphi 0, %s483
      %s486 = sphi 0, %s485
      %s500 = sphi 0, %s486
      %s504 = sphi 0, %s504
      %s506 = sphi 0, %s504
      %s507 = sphi 0, %s506
      %s521 = sphi 0, %s507
      %s525 = sphi 0, %s525
      %s527 = sphi 0, %s525
      %s528 = sphi 0, %s527
      %s542 = sphi 0, %s528
      %s546 = sphi 0, %s546
      %s548 = sphi 0, %s546
      %s549 = sphi 0, %s548
      %s563 = sphi 0, %s549
      %s569 = sphi 0, %s571
      %s572 = sphi 0, %s569
      %s573 = sphi 0, %s572
      %s589 = sphi 0, %s573
    $region4: #{forward.1} parent=1 // loop_header_branch
      %38 = sbr.rel (%p36) target = $region8
    $region5: #{forward.1} parent=1 // loop_body
      %s40 = ssub.s32 %s35, 1
      %s41 = ssub.s32 %s35, 2
      %s42 = sadd.s32 %s35, 1
      %s43 = ssub.s32 %s35, %s42
      %p44 = scmp.eq.s32.totalorder %s43, 0
      %s46 = sadd.s32 %s45, 1
      %s47 = scalar_select %p44, %s45, %s46
      %p50 = pneg %p44
      %p51 = scmp.eq.s32.totalorder %s35, 1
      %p52 = por %p50, %p51
      %p53 = scmp.ne.s32.totalorder %s45, %s48
      %p54 = scmp.eq.s32.totalorder %s35, 0
      %p55 = por %p53, %p54
      %p56 = scmp.ne.s32.totalorder %s45, %s48
      %p57 = scmp.eq.s32.totalorder %s40, 1
      %p58 = por %p56, %p57
      %p59 = scmp.ne.s32.totalorder %s48, %s49
      %p60 = scmp.eq.s32.totalorder %s40, 0
      %p61 = por %p59, %p60
      %p62 = scmp.ne.s32.totalorder %s48, %s49
      %p63 = scmp.eq.s32.totalorder %s41, 1
      %p64 = por %p62, %p63
      %p66 = scmp.ne.s32.totalorder %s49, %s65
      %p67 = scmp.eq.s32.totalorder %s41, 0
      %p68 = por %p66, %p67
      %s69 = ssub.s32 %s35, %s42
      %p70 = scmp.eq.s32.totalorder %s69, 0
      %s72 = sadd.s32 %s71, 1
      %s73 = scalar_select %p70, %s71, %s72
      %p76 = pneg %p70
      %p77 = scmp.eq.s32.totalorder %s35, 1
      %p78 = por %p76, %p77
      %p79 = scmp.ne.s32.totalorder %s71, %s74
      %p80 = scmp.eq.s32.totalorder %s35, 0
      %p81 = por %p79, %p80
      %p82 = scmp.ne.s32.totalorder %s71, %s74
      %p83 = scmp.eq.s32.totalorder %s40, 1
      %p84 = por %p82, %p83
      %p85 = scmp.ne.s32.totalorder %s74, %s75
      %p86 = scmp.eq.s32.totalorder %s40, 0
      %p87 = por %p85, %p86
      %p88 = scmp.ne.s32.totalorder %s74, %s75
      %p89 = scmp.eq.s32.totalorder %s41, 1
      %p90 = por %p88, %p89
      %p92 = scmp.ne.s32.totalorder %s75, %s91
      %p93 = scmp.eq.s32.totalorder %s41, 0
      %p94 = por %p92, %p93
      %s95 = ssub.s32 %s35, %s42
      %p96 = scmp.eq.s32.totalorder %s95, 0
      %s98 = sadd.s32 %s97, 1
      %s99 = scalar_select %p96, %s97, %s98
      %p102 = pneg %p96
      %p103 = scmp.eq.s32.totalorder %s35, 1
      %p104 = por %p102, %p103
      %p105 = scmp.ne.s32.totalorder %s97, %s100
      %p106 = scmp.eq.s32.totalorder %s35, 0
      %p107 = por %p105, %p106
      %p108 = scmp.ne.s32.totalorder %s97, %s100
      %p109 = scmp.eq.s32.totalorder %s40, 1
      %p110 = por %p108, %p109
      %p111 = scmp.ne.s32.totalorder %s100, %s101
      %p112 = scmp.eq.s32.totalorder %s40, 0
      %p113 = por %p111, %p112
      %p114 = scmp.ne.s32.totalorder %s100, %s101
      %p115 = scmp.eq.s32.totalorder %s41, 1
      %p116 = por %p114, %p115
      %p118 = scmp.ne.s32.totalorder %s101, %s117
      %p119 = scmp.eq.s32.totalorder %s41, 0
      %p120 = por %p118, %p119
      %s121 = ssub.s32 %s35, %s42
      %p122 = scmp.eq.s32.totalorder %s121, 0
      %s124 = sadd.s32 %s123, 1
      %s125 = scalar_select %p122, %s123, %s124
      %p128 = pneg %p122
      %p129 = scmp.eq.s32.totalorder %s35, 1
      %p130 = por %p128, %p129
      %p131 = scmp.ne.s32.totalorder %s123, %s126
      %p132 = scmp.eq.s32.totalorder %s35, 0
      %p133 = por %p131, %p132
      %p134 = scmp.ne.s32.totalorder %s123, %s126
      %p135 = scmp.eq.s32.totalorder %s40, 1
      %p136 = por %p134, %p135
      %p137 = scmp.ne.s32.totalorder %s126, %s127
      %p138 = scmp.eq.s32.totalorder %s40, 0
      %p139 = por %p137, %p138
      %p140 = scmp.ne.s32.totalorder %s126, %s127
      %p141 = scmp.eq.s32.totalorder %s41, 1
      %p142 = por %p140, %p141
      %p144 = scmp.ne.s32.totalorder %s127, %s143
      %p145 = scmp.eq.s32.totalorder %s41, 0
      %p146 = por %p144, %p145
      %s148 = sadd.s32 %s147, 1
      %p151 = scmp.eq.s32.totalorder %s35, 1
      %p152 = scmp.ne.s32.totalorder %s147, %s149
      %p153 = scmp.eq.s32.totalorder %s35, 0
      %p154 = por %p152, %p153
      %p155 = scmp.ne.s32.totalorder %s147, %s149
      %p156 = scmp.eq.s32.totalorder %s40, 1
      %p157 = por %p155, %p156
      %p158 = scmp.ne.s32.totalorder %s149, %s150
      %p159 = scmp.eq.s32.totalorder %s40, 0
      %p160 = por %p158, %p159
      %p161 = scmp.ne.s32.totalorder %s149, %s150
      %p162 = scmp.eq.s32.totalorder %s41, 1
      %p163 = por %p161, %p162
      %p165 = scmp.ne.s32.totalorder %s150, %s164
      %p166 = scmp.eq.s32.totalorder %s41, 0
      %p167 = por %p165, %p166
      %s169 = sadd.s32 %s168, 1
      %p172 = scmp.eq.s32.totalorder %s35, 1
      %p173 = scmp.ne.s32.totalorder %s168, %s170
      %p174 = scmp.eq.s32.totalorder %s35, 0
      %p175 = por %p173, %p174
      %p176 = scmp.ne.s32.totalorder %s168, %s170
      %p177 = scmp.eq.s32.totalorder %s40, 1
      %p178 = por %p176, %p177
      %p179 = scmp.ne.s32.totalorder %s170, %s171
      %p180 = scmp.eq.s32.totalorder %s40, 0
      %p181 = por %p179, %p180
      %p182 = scmp.ne.s32.totalorder %s170, %s171
      %p183 = scmp.eq.s32.totalorder %s41, 1
      %p184 = por %p182, %p183
      %p186 = scmp.ne.s32.totalorder %s171, %s185
      %p187 = scmp.eq.s32.totalorder %s41, 0
      %p188 = por %p186, %p187
      %s190 = sadd.s32 %s189, 1
      %p193 = scmp.eq.s32.totalorder %s35, 1
      %p194 = scmp.ne.s32.totalorder %s189, %s191
      %p195 = scmp.eq.s32.totalorder %s35, 0
      %p196 = por %p194, %p195
      %p197 = scmp.ne.s32.totalorder %s189, %s191
      %p198 = scmp.eq.s32.totalorder %s40, 1
      %p199 = por %p197, %p198
      %p200 = scmp.ne.s32.totalorder %s191, %s192
      %p201 = scmp.eq.s32.totalorder %s40, 0
      %p202 = por %p200, %p201
      %p203 = scmp.ne.s32.totalorder %s191, %s192
      %p204 = scmp.eq.s32.totalorder %s41, 1
      %p205 = por %p203, %p204
      %p207 = scmp.ne.s32.totalorder %s192, %s206
      %p208 = scmp.eq.s32.totalorder %s41, 0
      %p209 = por %p207, %p208
      %s211 = sadd.s32 %s210, 1
      %p214 = scmp.eq.s32.totalorder %s35, 1
      %p215 = scmp.ne.s32.totalorder %s210, %s212
      %p216 = scmp.eq.s32.totalorder %s35, 0
      %p217 = por %p215, %p216
      %p218 = scmp.ne.s32.totalorder %s210, %s212
      %p219 = scmp.eq.s32.totalorder %s40, 1
      %p220 = por %p218, %p219
      %p221 = scmp.ne.s32.totalorder %s212, %s213
      %p222 = scmp.eq.s32.totalorder %s40, 0
      %p223 = por %p221, %p222
      %p224 = scmp.ne.s32.totalorder %s212, %s213
      %p225 = scmp.eq.s32.totalorder %s41, 1
      %p226 = por %p224, %p225
      %p228 = scmp.ne.s32.totalorder %s213, %s227
      %p229 = scmp.eq.s32.totalorder %s41, 0
      %p230 = por %p228, %p229
      %s232 = sadd.s32 %s231, 1
      %p235 = scmp.eq.s32.totalorder %s35, 1
      %p236 = scmp.ne.s32.totalorder %s231, %s233
      %p237 = scmp.eq.s32.totalorder %s35, 0
      %p238 = por %p236, %p237
      %p239 = scmp.ne.s32.totalorder %s231, %s233
      %p240 = scmp.eq.s32.totalorder %s40, 1
      %p241 = por %p239, %p240
      %p242 = scmp.ne.s32.totalorder %s233, %s234
      %p243 = scmp.eq.s32.totalorder %s40, 0
      %p244 = por %p242, %p243
      %p245 = scmp.ne.s32.totalorder %s233, %s234
      %p246 = scmp.eq.s32.totalorder %s41, 1
      %p247 = por %p245, %p246
      %p249 = scmp.ne.s32.totalorder %s234, %s248
      %p250 = scmp.eq.s32.totalorder %s41, 0
      %p251 = por %p249, %p250
      %s253 = sadd.s32 %s252, 1
      %p256 = scmp.eq.s32.totalorder %s35, 1
      %p257 = scmp.ne.s32.totalorder %s252, %s254
      %p258 = scmp.eq.s32.totalorder %s35, 0
      %p259 = por %p257, %p258
      %p260 = scmp.ne.s32.totalorder %s252, %s254
      %p261 = scmp.eq.s32.totalorder %s40, 1
      %p262 = por %p260, %p261
      %p263 = scmp.ne.s32.totalorder %s254, %s255
      %p264 = scmp.eq.s32.totalorder %s40, 0
      %p265 = por %p263, %p264
      %p266 = scmp.ne.s32.totalorder %s254, %s255
      %p267 = scmp.eq.s32.totalorder %s41, 1
      %p268 = por %p266, %p267
      %p270 = scmp.ne.s32.totalorder %s255, %s269
      %p271 = scmp.eq.s32.totalorder %s41, 0
      %p272 = por %p270, %p271
      %s274 = sadd.s32 %s273, 1
      %p277 = scmp.eq.s32.totalorder %s35, 1
      %p278 = scmp.ne.s32.totalorder %s273, %s275
      %p279 = scmp.eq.s32.totalorder %s35, 0
      %p280 = por %p278, %p279
      %p281 = scmp.ne.s32.totalorder %s273, %s275
      %p282 = scmp.eq.s32.totalorder %s40, 1
      %p283 = por %p281, %p282
      %p284 = scmp.ne.s32.totalorder %s275, %s276
      %p285 = scmp.eq.s32.totalorder %s40, 0
      %p286 = por %p284, %p285
      %p287 = scmp.ne.s32.totalorder %s275, %s276
      %p288 = scmp.eq.s32.totalorder %s41, 1
      %p289 = por %p287, %p288
      %p291 = scmp.ne.s32.totalorder %s276, %s290
      %p292 = scmp.eq.s32.totalorder %s41, 0
      %p293 = por %p291, %p292
      %s295 = sadd.s32 %s294, 1
      %p298 = scmp.eq.s32.totalorder %s35, 1
      %p299 = scmp.ne.s32.totalorder %s294, %s296
      %p300 = scmp.eq.s32.totalorder %s35, 0
      %p301 = por %p299, %p300
      %p302 = scmp.ne.s32.totalorder %s294, %s296
      %p303 = scmp.eq.s32.totalorder %s40, 1
      %p304 = por %p302, %p303
      %p305 = scmp.ne.s32.totalorder %s296, %s297
      %p306 = scmp.eq.s32.totalorder %s40, 0
      %p307 = por %p305, %p306
      %p308 = scmp.ne.s32.totalorder %s296, %s297
      %p309 = scmp.eq.s32.totalorder %s41, 1
      %p310 = por %p308, %p309
      %p312 = scmp.ne.s32.totalorder %s297, %s311
      %p313 = scmp.eq.s32.totalorder %s41, 0
      %p314 = por %p312, %p313
      %s316 = sadd.s32 %s315, 1
      %p319 = scmp.eq.s32.totalorder %s35, 1
      %p320 = scmp.ne.s32.totalorder %s315, %s317
      %p321 = scmp.eq.s32.totalorder %s35, 0
      %p322 = por %p320, %p321
      %p323 = scmp.ne.s32.totalorder %s315, %s317
      %p324 = scmp.eq.s32.totalorder %s40, 1
      %p325 = por %p323, %p324
      %p326 = scmp.ne.s32.totalorder %s317, %s318
      %p327 = scmp.eq.s32.totalorder %s40, 0
      %p328 = por %p326, %p327
      %p329 = scmp.ne.s32.totalorder %s317, %s318
      %p330 = scmp.eq.s32.totalorder %s41, 1
      %p331 = por %p329, %p330
      %p333 = scmp.ne.s32.totalorder %s318, %s332
      %p334 = scmp.eq.s32.totalorder %s41, 0
      %p335 = por %p333, %p334
      %s337 = sadd.s32 %s336, 1
      %p340 = scmp.eq.s32.totalorder %s35, 1
      %p341 = scmp.ne.s32.totalorder %s336, %s338
      %p342 = scmp.eq.s32.totalorder %s35, 0
      %p343 = por %p341, %p342
      %p344 = scmp.ne.s32.totalorder %s336, %s338
      %p345 = scmp.eq.s32.totalorder %s40, 1
      %p346 = por %p344, %p345
      %p347 = scmp.ne.s32.totalorder %s338, %s339
      %p348 = scmp.eq.s32.totalorder %s40, 0
      %p349 = por %p347, %p348
      %p350 = scmp.ne.s32.totalorder %s338, %s339
      %p351 = scmp.eq.s32.totalorder %s41, 1
      %p352 = por %p350, %p351
      %p354 = scmp.ne.s32.totalorder %s339, %s353
      %p355 = scmp.eq.s32.totalorder %s41, 0
      %p356 = por %p354, %p355
      %s358 = sadd.s32 %s357, 1
      %p361 = scmp.eq.s32.totalorder %s35, 1
      %p362 = scmp.ne.s32.totalorder %s357, %s359
      %p363 = scmp.eq.s32.totalorder %s35, 0
      %p364 = por %p362, %p363
      %p365 = scmp.ne.s32.totalorder %s357, %s359
      %p366 = scmp.eq.s32.totalorder %s40, 1
      %p367 = por %p365, %p366
      %p368 = scmp.ne.s32.totalorder %s359, %s360
      %p369 = scmp.eq.s32.totalorder %s40, 0
      %p370 = por %p368, %p369
      %p371 = scmp.ne.s32.totalorder %s359, %s360
      %p372 = scmp.eq.s32.totalorder %s41, 1
      %p373 = por %p371, %p372
      %p375 = scmp.ne.s32.totalorder %s360, %s374
      %p376 = scmp.eq.s32.totalorder %s41, 0
      %p377 = por %p375, %p376
      %s379 = sadd.s32 %s378, 1
      %p382 = scmp.eq.s32.totalorder %s35, 1
      %p383 = scmp.ne.s32.totalorder %s378, %s380
      %p384 = scmp.eq.s32.totalorder %s35, 0
      %p385 = por %p383, %p384
      %p386 = scmp.ne.s32.totalorder %s378, %s380
      %p387 = scmp.eq.s32.totalorder %s40, 1
      %p388 = por %p386, %p387
      %p389 = scmp.ne.s32.totalorder %s380, %s381
      %p390 = scmp.eq.s32.totalorder %s40, 0
      %p391 = por %p389, %p390
      %p392 = scmp.ne.s32.totalorder %s380, %s381
      %p393 = scmp.eq.s32.totalorder %s41, 1
      %p394 = por %p392, %p393
      %p396 = scmp.ne.s32.totalorder %s381, %s395
      %p397 = scmp.eq.s32.totalorder %s41, 0
      %p398 = por %p396, %p397
      %s400 = sadd.s32 %s399, 1
      %p403 = scmp.eq.s32.totalorder %s35, 1
      %p404 = scmp.ne.s32.totalorder %s399, %s401
      %p405 = scmp.eq.s32.totalorder %s35, 0
      %p406 = por %p404, %p405
      %p407 = scmp.ne.s32.totalorder %s399, %s401
      %p408 = scmp.eq.s32.totalorder %s40, 1
      %p409 = por %p407, %p408
      %p410 = scmp.ne.s32.totalorder %s401, %s402
      %p411 = scmp.eq.s32.totalorder %s40, 0
      %p412 = por %p410, %p411
      %p413 = scmp.ne.s32.totalorder %s401, %s402
      %p414 = scmp.eq.s32.totalorder %s41, 1
      %p415 = por %p413, %p414
      %p417 = scmp.ne.s32.totalorder %s402, %s416
      %p418 = scmp.eq.s32.totalorder %s41, 0
      %p419 = por %p417, %p418
      %s421 = sadd.s32 %s420, 1
      %p424 = scmp.eq.s32.totalorder %s35, 1
      %p425 = scmp.ne.s32.totalorder %s420, %s422
      %p426 = scmp.eq.s32.totalorder %s35, 0
      %p427 = por %p425, %p426
      %p428 = scmp.ne.s32.totalorder %s420, %s422
      %p429 = scmp.eq.s32.totalorder %s40, 1
      %p430 = por %p428, %p429
      %p431 = scmp.ne.s32.totalorder %s422, %s423
      %p432 = scmp.eq.s32.totalorder %s40, 0
      %p433 = por %p431, %p432
      %p434 = scmp.ne.s32.totalorder %s422, %s423
      %p435 = scmp.eq.s32.totalorder %s41, 1
      %p436 = por %p434, %p435
      %p438 = scmp.ne.s32.totalorder %s423, %s437
      %p439 = scmp.eq.s32.totalorder %s41, 0
      %p440 = por %p438, %p439
      %s442 = sadd.s32 %s441, 1
      %p445 = scmp.eq.s32.totalorder %s35, 1
      %p446 = scmp.ne.s32.totalorder %s441, %s443
      %p447 = scmp.eq.s32.totalorder %s35, 0
      %p448 = por %p446, %p447
      %p449 = scmp.ne.s32.totalorder %s441, %s443
      %p450 = scmp.eq.s32.totalorder %s40, 1
      %p451 = por %p449, %p450
      %p452 = scmp.ne.s32.totalorder %s443, %s444
      %p453 = scmp.eq.s32.totalorder %s40, 0
      %p454 = por %p452, %p453
      %p455 = scmp.ne.s32.totalorder %s443, %s444
      %p456 = scmp.eq.s32.totalorder %s41, 1
      %p457 = por %p455, %p456
      %p459 = scmp.ne.s32.totalorder %s444, %s458
      %p460 = scmp.eq.s32.totalorder %s41, 0
      %p461 = por %p459, %p460
      %s463 = sadd.s32 %s462, 1
      %p466 = scmp.eq.s32.totalorder %s35, 1
      %p467 = scmp.ne.s32.totalorder %s462, %s464
      %p468 = scmp.eq.s32.totalorder %s35, 0
      %p469 = por %p467, %p468
      %p470 = scmp.ne.s32.totalorder %s462, %s464
      %p471 = scmp.eq.s32.totalorder %s40, 1
      %p472 = por %p470, %p471
      %p473 = scmp.ne.s32.totalorder %s464, %s465
      %p474 = scmp.eq.s32.totalorder %s40, 0
      %p475 = por %p473, %p474
      %p476 = scmp.ne.s32.totalorder %s464, %s465
      %p477 = scmp.eq.s32.totalorder %s41, 1
      %p478 = por %p476, %p477
      %p480 = scmp.ne.s32.totalorder %s465, %s479
      %p481 = scmp.eq.s32.totalorder %s41, 0
      %p482 = por %p480, %p481
      %s484 = sadd.s32 %s483, 1
      %p487 = scmp.eq.s32.totalorder %s35, 1
      %p488 = scmp.ne.s32.totalorder %s483, %s485
      %p489 = scmp.eq.s32.totalorder %s35, 0
      %p490 = por %p488, %p489
      %p491 = scmp.ne.s32.totalorder %s483, %s485
      %p492 = scmp.eq.s32.totalorder %s40, 1
      %p493 = por %p491, %p492
      %p494 = scmp.ne.s32.totalorder %s485, %s486
      %p495 = scmp.eq.s32.totalorder %s40, 0
      %p496 = por %p494, %p495
      %p497 = scmp.ne.s32.totalorder %s485, %s486
      %p498 = scmp.eq.s32.totalorder %s41, 1
      %p499 = por %p497, %p498
      %p501 = scmp.ne.s32.totalorder %s486, %s500
      %p502 = scmp.eq.s32.totalorder %s41, 0
      %p503 = por %p501, %p502
      %s505 = sadd.s32 %s504, 1
      %p508 = scmp.eq.s32.totalorder %s35, 1
      %p509 = scmp.ne.s32.totalorder %s504, %s506
      %p510 = scmp.eq.s32.totalorder %s35, 0
      %p511 = por %p509, %p510
      %p512 = scmp.ne.s32.totalorder %s504, %s506
      %p513 = scmp.eq.s32.totalorder %s40, 1
      %p514 = por %p512, %p513
      %p515 = scmp.ne.s32.totalorder %s506, %s507
      %p516 = scmp.eq.s32.totalorder %s40, 0
      %p517 = por %p515, %p516
      %p518 = scmp.ne.s32.totalorder %s506, %s507
      %p519 = scmp.eq.s32.totalorder %s41, 1
      %p520 = por %p518, %p519
      %p522 = scmp.ne.s32.totalorder %s507, %s521
      %p523 = scmp.eq.s32.totalorder %s41, 0
      %p524 = por %p522, %p523
      %s526 = sadd.s32 %s525, 1
      %p529 = scmp.eq.s32.totalorder %s35, 1
      %p530 = scmp.ne.s32.totalorder %s525, %s527
      %p531 = scmp.eq.s32.totalorder %s35, 0
      %p532 = por %p530, %p531
      %p533 = scmp.ne.s32.totalorder %s525, %s527
      %p534 = scmp.eq.s32.totalorder %s40, 1
      %p535 = por %p533, %p534
      %p536 = scmp.ne.s32.totalorder %s527, %s528
      %p537 = scmp.eq.s32.totalorder %s40, 0
      %p538 = por %p536, %p537
      %p539 = scmp.ne.s32.totalorder %s527, %s528
      %p540 = scmp.eq.s32.totalorder %s41, 1
      %p541 = por %p539, %p540
      %p543 = scmp.ne.s32.totalorder %s528, %s542
      %p544 = scmp.eq.s32.totalorder %s41, 0
      %p545 = por %p543, %p544
      %s547 = sadd.s32 %s546, 1
      %p550 = scmp.eq.s32.totalorder %s35, 1
      %p551 = scmp.ne.s32.totalorder %s546, %s548
      %p552 = scmp.eq.s32.totalorder %s35, 0
      %p553 = por %p551, %p552
      %p554 = scmp.ne.s32.totalorder %s546, %s548
      %p555 = scmp.eq.s32.totalorder %s40, 1
      %p556 = por %p554, %p555
      %p557 = scmp.ne.s32.totalorder %s548, %s549
      %p558 = scmp.eq.s32.totalorder %s40, 0
      %p559 = por %p557, %p558
      %p560 = scmp.ne.s32.totalorder %s548, %s549
      %p561 = scmp.eq.s32.totalorder %s41, 1
      %p562 = por %p560, %p561
      %p564 = scmp.ne.s32.totalorder %s549, %s563
      %p565 = scmp.eq.s32.totalorder %s41, 0
      %p566 = por %p564, %p565
      %s567 = ssub.s32 %s35, %s42
      %p568 = scmp.eq.s32.totalorder %s567, 0
      %s570 = sadd.s32 %s569, 1
      %s571 = scalar_select %p568, %s569, %s570
      %p574 = pneg %p568
      %p575 = scmp.eq.s32.totalorder %s35, 1
      %p576 = por %p574, %p575
      %p577 = scmp.ne.s32.totalorder %s569, %s572
      %p578 = scmp.eq.s32.totalorder %s35, 0
      %p579 = por %p577, %p578
      %p580 = scmp.ne.s32.totalorder %s569, %s572
      %p581 = scmp.eq.s32.totalorder %s40, 1
      %p582 = por %p580, %p581
      %p583 = scmp.ne.s32.totalorder %s572, %s573
      %p584 = scmp.eq.s32.totalorder %s40, 0
      %p585 = por %p583, %p584
      %p586 = scmp.ne.s32.totalorder %s572, %s573
      %p587 = scmp.eq.s32.totalorder %s41, 1
      %p588 = por %p586, %p587
      %p590 = scmp.ne.s32.totalorder %s573, %s589
      %p591 = scmp.eq.s32.totalorder %s41, 0
      %p592 = por %p590, %p591
      %p593 = scmp.le.s32.totalorder 1, %s35
      %p594 = scmp.lt.s32.totalorder %s35, 3
      %p595 = pnand %p593, %p594
      %p596 = pneg %p595
      // Predicated region
      $region9: #{forward.1} parent=5 // pred_check
        _
      $region10: #{forward.1} parent=5 // pred_check_branch
        %598 = sbr.rel (%p595) target = $region12
      $region11: #{forward.1} parent=5 // pred_region
        %s599 = ssub.s32 %s35, 1
        // Predicated region
        $region13: #{forward.1} parent=11 // pred_check
          %p600 = pneg %p160
        $region14: #{forward.1} parent=11 // pred_check_branch
          %602 = sbr.rel (%p600) target = $region16
        $region15: #{forward.1} parent=11 // pred_region
          _
        $region16: #{forward.1} parent=11 // pred_fallthru
          _
        // Predicated region
        $region17: #{forward.1} parent=11 // pred_check
          %p603 = pneg %p181
        $region18: #{forward.1} parent=11 // pred_check_branch
          %605 = sbr.rel (%p603) target = $region20
        $region19: #{forward.1} parent=11 // pred_region
          _
        $region20: #{forward.1} parent=11 // pred_fallthru
          _
        // Predicated region
        $region21: #{forward.1} parent=11 // pred_check
          %p606 = pneg %p202
        $region22: #{forward.1} parent=11 // pred_check_branch
          %608 = sbr.rel (%p606) target = $region24
        $region23: #{forward.1} parent=11 // pred_region
          _
        $region24: #{forward.1} parent=11 // pred_fallthru
          _
        // Predicated region
        $region25: #{forward.1} parent=11 // pred_check
          %p609 = pneg %p223
        $region26: #{forward.1} parent=11 // pred_check_branch
          %611 = sbr.rel (%p609) target = $region28
        $region27: #{forward.1} parent=11 // pred_region
          _
        $region28: #{forward.1} parent=11 // pred_fallthru
          _
        // Predicated region
        $region29: #{forward.1} parent=11 // pred_check
          %p612 = pneg %p244
        $region30: #{forward.1} parent=11 // pred_check_branch
          %614 = sbr.rel (%p612) target = $region32
        $region31: #{forward.1} parent=11 // pred_region
          _
        $region32: #{forward.1} parent=11 // pred_fallthru
          _
        // Predicated region
        $region33: #{forward.1} parent=11 // pred_check
          %p615 = pneg %p265
        $region34: #{forward.1} parent=11 // pred_check_branch
          %617 = sbr.rel (%p615) target = $region36
        $region35: #{forward.1} parent=11 // pred_region
          _
        $region36: #{forward.1} parent=11 // pred_fallthru
          _
        // Predicated region
        $region37: #{forward.1} parent=11 // pred_check
          %p618 = pneg %p286
        $region38: #{forward.1} parent=11 // pred_check_branch
          %620 = sbr.rel (%p618) target = $region40
        $region39: #{forward.1} parent=11 // pred_region
          _
        $region40: #{forward.1} parent=11 // pred_fallthru
          _
        // Predicated region
        $region41: #{forward.1} parent=11 // pred_check
          %p621 = pneg %p307
        $region42: #{forward.1} parent=11 // pred_check_branch
          %623 = sbr.rel (%p621) target = $region44
        $region43: #{forward.1} parent=11 // pred_region
          _
        $region44: #{forward.1} parent=11 // pred_fallthru
          _
        // Predicated region
        $region45: #{forward.1} parent=11 // pred_check
          %p624 = pneg %p328
        $region46: #{forward.1} parent=11 // pred_check_branch
          %626 = sbr.rel (%p624) target = $region48
        $region47: #{forward.1} parent=11 // pred_region
          _
        $region48: #{forward.1} parent=11 // pred_fallthru
          _
        // Predicated region
        $region49: #{forward.1} parent=11 // pred_check
          %p627 = pneg %p349
        $region50: #{forward.1} parent=11 // pred_check_branch
          %629 = sbr.rel (%p627) target = $region52
        $region51: #{forward.1} parent=11 // pred_region
          _
        $region52: #{forward.1} parent=11 // pred_fallthru
          _
        // Predicated region
        $region53: #{forward.1} parent=11 // pred_check
          %p630 = pneg %p370
        $region54: #{forward.1} parent=11 // pred_check_branch
          %632 = sbr.rel (%p630) target = $region56
        $region55: #{forward.1} parent=11 // pred_region
          _
        $region56: #{forward.1} parent=11 // pred_fallthru
          _
        // Predicated region
        $region57: #{forward.1} parent=11 // pred_check
          %p633 = pneg %p391
        $region58: #{forward.1} parent=11 // pred_check_branch
          %635 = sbr.rel (%p633) target = $region60
        $region59: #{forward.1} parent=11 // pred_region
          _
        $region60: #{forward.1} parent=11 // pred_fallthru
          _
        // Predicated region
        $region61: #{forward.1} parent=11 // pred_check
          %p636 = pneg %p412
        $region62: #{forward.1} parent=11 // pred_check_branch
          %638 = sbr.rel (%p636) target = $region64
        $region63: #{forward.1} parent=11 // pred_region
          _
        $region64: #{forward.1} parent=11 // pred_fallthru
          _
        // Predicated region
        $region65: #{forward.1} parent=11 // pred_check
          %p639 = pneg %p433
        $region66: #{forward.1} parent=11 // pred_check_branch
          %641 = sbr.rel (%p639) target = $region68
        $region67: #{forward.1} parent=11 // pred_region
          _
        $region68: #{forward.1} parent=11 // pred_fallthru
          _
        // Predicated region
        $region69: #{forward.1} parent=11 // pred_check
          %p642 = pneg %p454
        $region70: #{forward.1} parent=11 // pred_check_branch
          %644 = sbr.rel (%p642) target = $region72
        $region71: #{forward.1} parent=11 // pred_region
          _
        $region72: #{forward.1} parent=11 // pred_fallthru
          _
        // Predicated region
        $region73: #{forward.1} parent=11 // pred_check
          %p645 = pneg %p475
        $region74: #{forward.1} parent=11 // pred_check_branch
          %647 = sbr.rel (%p645) target = $region76
        $region75: #{forward.1} parent=11 // pred_region
          _
        $region76: #{forward.1} parent=11 // pred_fallthru
          _
        // Predicated region
        $region77: #{forward.1} parent=11 // pred_check
          %p648 = pneg %p496
        $region78: #{forward.1} parent=11 // pred_check_branch
          %650 = sbr.rel (%p648) target = $region80
        $region79: #{forward.1} parent=11 // pred_region
          _
        $region80: #{forward.1} parent=11 // pred_fallthru
          _
        // Predicated region
        $region81: #{forward.1} parent=11 // pred_check
          %p651 = pneg %p517
        $region82: #{forward.1} parent=11 // pred_check_branch
          %653 = sbr.rel (%p651) target = $region84
        $region83: #{forward.1} parent=11 // pred_region
          _
        $region84: #{forward.1} parent=11 // pred_fallthru
          _
        // Predicated region
        $region85: #{forward.1} parent=11 // pred_check
          %p654 = pneg %p538
        $region86: #{forward.1} parent=11 // pred_check_branch
          %656 = sbr.rel (%p654) target = $region88
        $region87: #{forward.1} parent=11 // pred_region
          _
        $region88: #{forward.1} parent=11 // pred_fallthru
          _
        // Predicated region
        $region89: #{forward.1} parent=11 // pred_check
          %p657 = pneg %p559
        $region90: #{forward.1} parent=11 // pred_check_branch
          %659 = sbr.rel (%p657) target = $region92
        $region91: #{forward.1} parent=11 // pred_region
          _
        $region92: #{forward.1} parent=11 // pred_fallthru
          _
      $region12: #{forward.1} parent=5 // pred_fallthru
        _
      %p660 = scmp.lt.s32.totalorder %s35, 2
      // Predicated region
      $region93: #{forward.1} parent=5 // pred_check
        %p661 = pneg %p660
      $region94: #{forward.1} parent=5 // pred_check_branch
        %663 = sbr.rel (%p661) target = $region96
      $region95: #{forward.1} parent=5 // pred_region
        // Predicated region
        $region97: #{forward.1} parent=95 // pred_check
          %p664 = pneg %p55
        $region98: #{forward.1} parent=95 // pred_check_branch
          %666 = sbr.rel (%p664) target = $region100
        $region99: #{forward.1} parent=95 // pred_region
          %p667 = scmp.lt.s32.totalorder %s35, 1
          %s668 = scalar_select %p667, %s35, 1
          %s669 = smul.addr %s668, 8
          %s670 = scalar_lea.vmem %s0, %s669
        $region100: #{forward.1} parent=95 // pred_fallthru
          _
        // Predicated region
        $region101: #{forward.1} parent=95 // pred_check
          %p671 = pneg %p81
        $region102: #{forward.1} parent=95 // pred_check_branch
          %673 = sbr.rel (%p671) target = $region104
        $region103: #{forward.1} parent=95 // pred_region
          %p674 = scmp.lt.s32.totalorder %s35, 1
          %s675 = scalar_select %p674, %s35, 1
          %s676 = smul.addr %s675, 8
          %s677 = scalar_lea.vmem %s1, %s676
        $region104: #{forward.1} parent=95 // pred_fallthru
          _
        // Predicated region
        $region105: #{forward.1} parent=95 // pred_check
          %p678 = pneg %p107
        $region106: #{forward.1} parent=95 // pred_check_branch
          %680 = sbr.rel (%p678) target = $region108
        $region107: #{forward.1} parent=95 // pred_region
          %p681 = scmp.lt.s32.totalorder %s35, 1
          %s682 = scalar_select %p681, %s35, 1
          %s683 = scalar_lea.vmem %s2, %s682
        $region108: #{forward.1} parent=95 // pred_fallthru
          _
        // Predicated region
        $region109: #{forward.1} parent=95 // pred_check
          %p684 = pneg %p133
        $region110: #{forward.1} parent=95 // pred_check_branch
          %686 = sbr.rel (%p684) target = $region112
        $region111: #{forward.1} parent=95 // pred_region
          %p687 = scmp.lt.s32.totalorder %s35, 1
          %s688 = scalar_select %p687, %s35, 1
          %s689 = smul.addr %s688, 8
          %s690 = scalar_lea.vmem %s3, %s689
        $region112: #{forward.1} parent=95 // pred_fallthru
          _
      $region96: #{forward.1} parent=5 // pred_fallthru
        _
      %p691 = scmp.le.s32.totalorder 1, %s35
      %p692 = scmp.lt.s32.totalorder %s35, 3
      %p693 = pnand %p691, %p692
      %p694 = pneg %p693
      // Predicated region
      $region113: #{forward.1} parent=5 // pred_check
        _
      $region114: #{forward.1} parent=5 // pred_check_branch
        %696 = sbr.rel (%p693) target = $region116
      $region115: #{forward.1} parent=5 // pred_region
        %s697 = ssub.s32 %s35, 1
        %p698 = scmp.lt.s32.totalorder %s40, 1
        %s699 = scalar_select %p698, %s40, 1
        %s700 = smul.addr %s699, 8
        %s701 = scalar_lea.vmem %s0, %s700
        %p702 = pneg %p61
        %p703 = pneg %p58
        %p704 = scmp.lt.s32.totalorder %s40, 1
        %s705 = scalar_select %p704, %s40, 1
        %s706 = smul.addr %s705, 8
        %s707 = scalar_lea.vmem %s1, %s706
        %p708 = pneg %p87
        %p709 = pneg %p84
        %p710 = scmp.lt.s32.totalorder %s40, 1
        %s711 = scalar_select %p710, %s40, 1
        %s712 = scalar_lea.vmem %s2, %s711
        %p713 = pneg %p113
        %p714 = pneg %p110
        %p715 = scmp.lt.s32.totalorder %s40, 1
        %s716 = scalar_select %p715, %s40, 1
        %s717 = smul.addr %s716, 8
        %s718 = scalar_lea.vmem %s3, %s717
        %p719 = pneg %p139
        %p720 = pneg %p136
        %p721 = pneg %p160
        %p722 = pneg %p157
        %p723 = pneg %p181
        %p724 = pneg %p178
        %p725 = pneg %p202
        %p726 = pneg %p199
        %p727 = pneg %p223
        %p728 = pneg %p220
        %p729 = pneg %p244
        %p730 = pneg %p241
        %p731 = pneg %p265
        %p732 = pneg %p262
        %p733 = pneg %p286
        %p734 = pneg %p283
        %p735 = pneg %p307
        %p736 = pneg %p304
        %p737 = pneg %p328
        %p738 = pneg %p325
        %p739 = pneg %p349
        %p740 = pneg %p346
        %p741 = pneg %p370
        %p742 = pneg %p367
        %p743 = pneg %p391
        %p744 = pneg %p388
        %p745 = pneg %p412
        %p746 = pneg %p409
        %p747 = pneg %p433
        %p748 = pneg %p430
        %p749 = pneg %p454
        %p750 = pneg %p451
        %p751 = pneg %p475
        %p752 = pneg %p472
        %p753 = pneg %p496
        %p754 = pneg %p493
        %p755 = pneg %p517
        %p756 = pneg %p514
        %p757 = pneg %p538
        %p758 = pneg %p535
        %p759 = pneg %p559
        %p760 = pneg %p556
        %p761 = pneg %p585
        %p762 = pneg %p582
        %s763 = sand.u32 %s572, 1
        %s764 = scalar_lea.sflag [#allocation4], %s763
        %s765 = sand.u32 %s572, 1
        %s766 = scalar_lea.vmem [#allocation3], %s765
        %p767 = scmp.lt.s32.totalorder %s40, 1
        %s768 = scalar_select %p767, %s40, 1
        %s769 = smul.addr %s768, 8
        %s770 = scalar_lea.vmem %s0, %s769
        %p771 = scmp.lt.s32.totalorder %s40, 1
        %s772 = scalar_select %p771, %s40, 1
        %s773 = smul.addr %s772, 8
        %s774 = scalar_lea.vmem %s1, %s773
        %p775 = scmp.lt.s32.totalorder %s40, 1
        %s776 = scalar_select %p775, %s40, 1
        %s777 = scalar_lea.vmem %s2, %s776
        %p778 = scmp.lt.s32.totalorder %s40, 1
        %s779 = scalar_select %p778, %s40, 1
        %s780 = smul.addr %s779, 8
        %s781 = scalar_lea.vmem %s3, %s780
        %v782 = vld [vmem:[%s770] sm:$0xff]
        %v783 = vld [vmem:[%s4] sm:$0xff]
        %v784 = vld [vmem:[%s4 + $0x8] sm:$0xff]
        %v785 = vld [vmem:[%s5] sm:$0x1]
        %v787 = vlaneseq
        %v788 = vshrl.u32 %v787, 7
        %v789 = vsub.s32 0, %v788
        %v790 = vrot.slane %v785, %v789
        %vm792 = vcmask 130048
        %v794 = vsel %vm792, %v782, 0
        %796 = vmatprep.subr.mxu0 0.0
        %797 = vmatpush1.msra.mxu0 %v783
        %798 = vmatprep.subr.mxu0 0.0
        %799 = vmatpush1.msra.mxu0 %v784
        %800 = vmatprep.subr.mxu0 0.0
        %801 = vmatpush1.msra.mxu0 0.0
        %802 = vmatprep.subr.mxu0 0.0
        %803 = vmatpush1.msra.mxu0 0.0
        %804 = vmatprep.subr.mxu0 0.0
        %805 = vmatpush1.msra.mxu0 0.0
        %806 = vmatprep.subr.mxu0 0.0
        %807 = vmatpush1.msra.mxu0 0.0
        %808 = vmatprep.subr.mxu0 0.0
        %809 = vmatpush1.msra.mxu0 0.0
        %810 = vmatprep.subr.mxu0 0.0
        %811 = vmatpush1.msra.mxu0 0.0
        %812 = vmatprep.subr.mxu0 0.0
        %813 = vmatpush1.msra.mxu0 0.0
        %814 = vmatprep.subr.mxu0 0.0
        %815 = vmatpush1.msra.mxu0 0.0
        %816 = vmatprep.subr.mxu0 0.0
        %817 = vmatpush1.msra.mxu0 0.0
        %818 = vmatprep.subr.mxu0 0.0
        %819 = vmatpush1.msra.mxu0 0.0
        %820 = vmatprep.subr.mxu0 0.0
        %821 = vmatpush1.msra.mxu0 0.0
        %822 = vmatprep.subr.mxu0 0.0
        %823 = vmatpush1.msra.mxu0 0.0
        %824 = vmatprep.subr.mxu0 0.0
        %825 = vmatpush1.msra.mxu0 0.0
        %826 = vmatprep.subr.mxu0 0.0
        %827 = vmatpush1.msra.mxu0 0.0
        %828 = vmatprep.subr.mxu0 0.0
        %829 = vmatpush1.msra.mxu0 0.0
        %830 = vmatprep.subr.mxu0 0.0
        %831 = vmatpush1.msra.mxu0 0.0
        %832 = vmatprep.subr.mxu0 0.0
        %833 = vmatpush1.msra.mxu0 0.0
        %834 = vmatprep.subr.mxu0 0.0
        %835 = vmatpush1.msra.mxu0 0.0
        %836 = vmatprep.subr.mxu0 0.0
        %837 = vmatpush1.msra.mxu0 0.0
        %838 = vmatprep.subr.mxu0 0.0
        %839 = vmatpush1.msra.mxu0 0.0
        %840 = vmatprep.subr.mxu0 0.0
        %841 = vmatpush1.msra.mxu0 0.0
        %842 = vmatprep.subr.mxu0 0.0
        %843 = vmatpush1.msra.mxu0 0.0
        %844 = vmatprep.subr.mxu0 0.0
        %845 = vmatpush1.msra.mxu0 0.0
        %846 = vmatprep.subr.mxu0 0.0
        %847 = vmatpush1.msra.mxu0 0.0
        %848 = vmatprep.subr.mxu0 0.0
        %849 = vmatpush1.msra.mxu0 0.0
        %850 = vmatprep.subr.mxu0 0.0
        %851 = vmatpush1.msra.mxu0 0.0
        %852 = vmatprep.subr.mxu0 0.0
        %853 = vmatpush1.msra.mxu0 0.0
        %854 = vmatprep.subr.mxu0 0.0
        %855 = vmatpush1.msra.mxu0 0.0
        %856 = vmatprep.subr.mxu0 0.0
        %857 = vmatpush1.msra.mxu0 0.0
        %858 = vmatprep.subr.mxu0 0.0
        %859 = vmatpush1.msra.mxu0 0.0
        %860 = vmatprep.mubr.f32.mxu0 0.0
        %861 = vmatmul.mubr.f32.gmra.mrb[0].mxu0 %v794
        %v862 = vpop.f32.mrb[0].mxu0
        %v863 = vadd.f32 %v790, %v862
        %v864 = vpop.f32.mrb[0].mxu0
        %865 = vdwg.mxu0
        %v866 = vmax.f32 %v863, 0.0
        %v867 = vld [vmem:[%s6] sm:$0x1]
        %v868 = vld [vmem:[%s7] sm:$0x1]
        %vm869 = vcmask 261120
        %v870 = vsel %vm869, %v866, 0.0
        %871 = vadd.xlane.f32.xlu0 %v870
        %v872 = vpop.xlane.xlu0 %871
        %v873 = vrcp.pop 32.0
        %v874 = vmul.f32 %v872, %v873
        %v875 = vsub.f32 %v866, %v874
        %v876 = vmul.f32 %v875, %v875
        %v877 = vsel %vm869, %v876, 0.0
        %878 = vadd.xlane.f32.xlu0 %v877
        %v879 = vpop.xlane.xlu0 %878
        %v880 = vmul.f32 %v879, %v873
        %v881 = vadd.f32 %v880, 1e-05
        %v882 = vrsqrt.pop %v881
        %v883 = vmul.f32 %v875, %v882
        %v885 = vlaneseq
        %v886 = vshrl.u32 %v885, 7
        %v887 = vsub.s32 0, %v886
        %v888 = vrot.slane %v867, %v887
        %v890 = vmul.f32 %v883, %v888
        %v892 = vlaneseq
        %v893 = vshrl.u32 %v892, 7
        %v894 = vsub.s32 0, %v893
        %v895 = vrot.slane %v868, %v894
        %v897 = vadd.f32 %v890, %v895
        %v898 = vld [vmem:[%s774] sm:$0xff]
        %v899 = vadd.f32 %v897, %v898
        %v900 = vld [vmem:[%s777] sm:$0x1]
        %v902 = vlaneseq
        %v903 = vshrl.u32 %v902, 7
        %v904 = vsub.s32 0, %v903
        %v905 = vrot.slane %v900, %v904
        %v907 = vld [vmem:[%s8] sm:$0xff]
        %v908 = vld [vmem:[%s8 + $0x8] sm:$0xff]
        %v909 = vld [vmem:[%s8 + $0x10] sm:$0xff]
        %v910 = vld [vmem:[%s8 + $0x18] sm:$0xff]
        %v911 = vld [vmem:[%s9] sm:$0x1]
        %v913 = vlaneseq
        %v914 = vshrl.u32 %v913, 7
        %v915 = vsub.s32 0, %v914
        %v916 = vrot.slane %v911, %v915
        %v919 = vsel %vm869, %v899, 0
        %921 = vmatprep.subr.mxu0 0.0
        %922 = vmatpush1.msra.mxu0 %v907
        %923 = vmatprep.subr.mxu0 0.0
        %924 = vmatpush1.msra.mxu0 %v908
        %925 = vmatprep.subr.mxu0 0.0
        %926 = vmatpush1.msra.mxu0 %v909
        %927 = vmatprep.subr.mxu0 0.0
        %928 = vmatpush1.msra.mxu0 %v910
        %929 = vmatprep.subr.mxu0 0.0
        %930 = vmatpush1.msra.mxu0 0.0
        %931 = vmatprep.subr.mxu0 0.0
        %932 = vmatpush1.msra.mxu0 0.0
        %933 = vmatprep.subr.mxu0 0.0
        %934 = vmatpush1.msra.mxu0 0.0
        %935 = vmatprep.subr.mxu0 0.0
        %936 = vmatpush1.msra.mxu0 0.0
        %937 = vmatprep.subr.mxu0 0.0
        %938 = vmatpush1.msra.mxu0 0.0
        %939 = vmatprep.subr.mxu0 0.0
        %940 = vmatpush1.msra.mxu0 0.0
        %941 = vmatprep.subr.mxu0 0.0
        %942 = vmatpush1.msra.mxu0 0.0
        %943 = vmatprep.subr.mxu0 0.0
        %944 = vmatpush1.msra.mxu0 0.0
        %945 = vmatprep.subr.mxu0 0.0
        %946 = vmatpush1.msra.mxu0 0.0
        %947 = vmatprep.subr.mxu0 0.0
        %948 = vmatpush1.msra.mxu0 0.0
        %949 = vmatprep.subr.mxu0 0.0
        %950 = vmatpush1.msra.mxu0 0.0
        %951 = vmatprep.subr.mxu0 0.0
        %952 = vmatpush1.msra.mxu0 0.0
        %953 = vmatprep.subr.mxu0 0.0
        %954 = vmatpush1.msra.mxu0 0.0
        %955 = vmatprep.subr.mxu0 0.0
        %956 = vmatpush1.msra.mxu0 0.0
        %957 = vmatprep.subr.mxu0 0.0
        %958 = vmatpush1.msra.mxu0 0.0
        %959 = vmatprep.subr.mxu0 0.0
        %960 = vmatpush1.msra.mxu0 0.0
        %961 = vmatprep.subr.mxu0 0.0
        %962 = vmatpush1.msra.mxu0 0.0
        %963 = vmatprep.subr.mxu0 0.0
        %964 = vmatpush1.msra.mxu0 0.0
        %965 = vmatprep.subr.mxu0 0.0
        %966 = vmatpush1.msra.mxu0 0.0
        %967 = vmatprep.subr.mxu0 0.0
        %968 = vmatpush1.msra.mxu0 0.0
        %969 = vmatprep.subr.mxu0 0.0
        %970 = vmatpush1.msra.mxu0 0.0
        %971 = vmatprep.subr.mxu0 0.0
        %972 = vmatpush1.msra.mxu0 0.0
        %973 = vmatprep.subr.mxu0 0.0
        %974 = vmatpush1.msra.mxu0 0.0
        %975 = vmatprep.subr.mxu0 0.0
        %976 = vmatpush1.msra.mxu0 0.0
        %977 = vmatprep.subr.mxu0 0.0
        %978 = vmatpush1.msra.mxu0 0.0
        %979 = vmatprep.subr.mxu0 0.0
        %980 = vmatpush1.msra.mxu0 0.0
        %981 = vmatprep.subr.mxu0 0.0
        %982 = vmatpush1.msra.mxu0 0.0
        %983 = vmatprep.subr.mxu0 0.0
        %984 = vmatpush1.msra.mxu0 0.0
        %985 = vmatprep.mubr.f32.mxu0 0.0
        %986 = vmatmul.mubr.f32.gmra.mrb[0].mxu0 %v919
        %v987 = vpop.f32.mrb[0].mxu0
        %v988 = vadd.f32 %v916, %v987
        %v989 = vpop.f32.mrb[0].mxu0
        %990 = vdwg.mxu0
        %992 = vrot.lane.b32.xlu0 %v988, 96
        %v993 = vpop.permute.xlu0 %992
        %vm994 = vcmask 64512
        %v995 = vsel %vm994, %v988, 0
        %v997 = vsel %vm994, %v993, 0
        %999 = vmatprep.subr.mxu0 0.0
        %1000 = vmatpush1.xpose.msra.mxu0 %v997
        %1001 = vmatprep.subr.mxu0 0.0
        %1002 = vmatpush1.xpose.msra.mxu0 0.0
        %1003 = vmatprep.subr.mxu0 0.0
        %1004 = vmatpush1.xpose.msra.mxu0 0.0
        %1005 = vmatprep.subr.mxu0 0.0
        %1006 = vmatpush1.xpose.msra.mxu0 0.0
        %1007 = vmatprep.subr.mxu0 0.0
        %1008 = vmatpush1.xpose.msra.mxu0 0.0
        %1009 = vmatprep.subr.mxu0 0.0
        %1010 = vmatpush1.xpose.msra.mxu0 0.0
        %1011 = vmatprep.subr.mxu0 0.0
        %1012 = vmatpush1.xpose.msra.mxu0 0.0
        %1013 = vmatprep.subr.mxu0 0.0
        %1014 = vmatpush1.xpose.msra.mxu0 0.0
        %1015 = vmatprep.subr.mxu0 0.0
        %1016 = vmatpush1.xpose.msra.mxu0 0.0
        %1017 = vmatprep.subr.mxu0 0.0
        %1018 = vmatpush1.xpose.msra.mxu0 0.0
        %1019 = vmatprep.subr.mxu0 0.0
        %1020 = vmatpush1.xpose.msra.mxu0 0.0
        %1021 = vmatprep.subr.mxu0 0.0
        %1022 = vmatpush1.xpose.msra.mxu0 0.0
        %1023 = vmatprep.subr.mxu0 0.0
        %1024 = vmatpush1.xpose.msra.mxu0 0.0
        %1025 = vmatprep.subr.mxu0 0.0
        %1026 = vmatpush1.xpose.msra.mxu0 0.0
        %1027 = vmatprep.subr.mxu0 0.0
        %1028 = vmatpush1.xpose.msra.mxu0 0.0
        %1029 = vmatprep.subr.mxu0 0.0
        %1030 = vmatpush1.xpose.msra.mxu0 0.0
        %1031 = vmatprep.subr.mxu0 0.0
        %1032 = vmatpush1.xpose.msra.mxu0 0.0
        %1033 = vmatprep.subr.mxu0 0.0
        %1034 = vmatpush1.xpose.msra.mxu0 0.0
        %1035 = vmatprep.subr.mxu0 0.0
        %1036 = vmatpush1.xpose.msra.mxu0 0.0
        %1037 = vmatprep.subr.mxu0 0.0
        %1038 = vmatpush1.xpose.msra.mxu0 0.0
        %1039 = vmatprep.subr.mxu0 0.0
        %1040 = vmatpush1.xpose.msra.mxu0 0.0
        %1041 = vmatprep.subr.mxu0 0.0
        %1042 = vmatpush1.xpose.msra.mxu0 0.0
        %1043 = vmatprep.subr.mxu0 0.0
        %1044 = vmatpush1.xpose.msra.mxu0 0.0
        %1045 = vmatprep.subr.mxu0 0.0
        %1046 = vmatpush1.xpose.msra.mxu0 0.0
        %1047 = vmatprep.subr.mxu0 0.0
        %1048 = vmatpush1.xpose.msra.mxu0 0.0
        %1049 = vmatprep.subr.mxu0 0.0
        %1050 = vmatpush1.xpose.msra.mxu0 0.0
        %1051 = vmatprep.subr.mxu0 0.0
        %1052 = vmatpush1.xpose.msra.mxu0 0.0
        %1053 = vmatprep.subr.mxu0 0.0
        %1054 = vmatpush1.xpose.msra.mxu0 0.0
        %1055 = vmatprep.subr.mxu0 0.0
        %1056 = vmatpush1.xpose.msra.mxu0 0.0
        %1057 = vmatprep.subr.mxu0 0.0
        %1058 = vmatpush1.xpose.msra.mxu0 0.0
        %1059 = vmatprep.subr.mxu0 0.0
        %1060 = vmatpush1.xpose.msra.mxu0 0.0
        %1061 = vmatprep.subr.mxu0 0.0
        %1062 = vmatpush1.xpose.msra.mxu0 0.0
        %1063 = vmatprep.mubr.f32.mxu0 0.0
        %1064 = vmatmul.mubr.f32.gmra.mrb[0].mxu0 %v995
        %v1065 = vpop.f32.mrb[0].mxu0
        %v1066 = vadd.f32 %v905, %v1065
        %v1067 = vpop.f32.mrb[0].mxu0
        %1068 = vdwg.mxu0
        %v1069 = vsel %vm994, %v1066, -inf
        %1070 = vmax.xlane.f32.xlu0 %v1069
        %v1071 = vpop.xlane.xlu0 %1070
        %v1072 = vsub.f32 %v1066, %v1071
        %v1073 = vmul.f32 %v1072, 1.442695
        %v1074 = vpow.pop %v1073
        %v1075 = vsel %vm994, %v1074, 0.0
        %1076 = vadd.xlane.f32.xlu0 %v1075
        %v1077 = vpop.xlane.xlu0 %1076
        %v1078 = vrcp.pop %v1077
        %v1079 = vmul.f32 %v1074, %v1078
        %1080 = vrot.lane.b32.xlu0 %v988, 64
        %v1081 = vpop.permute.xlu0 %1080
        %v1084 = vsel %vm994, %v1079, 0
        %1086 = vmatprep.subr.mxu0 0.0
        %1087 = vmatpush1.msra.mxu0 %v1081
        %1088 = vmatprep.subr.mxu0 0.0
        %1089 = vmatpush1.msra.mxu0 0.0
        %1090 = vmatprep.subr.mxu0 0.0
        %1091 = vmatpush1.msra.mxu0 0.0
        %1092 = vmatprep.subr.mxu0 0.0
        %1093 = vmatpush1.msra.mxu0 0.0
        %1094 = vmatprep.subr.mxu0 0.0
        %1095 = vmatpush1.msra.mxu0 0.0
        %1096 = vmatprep.subr.mxu0 0.0
        %1097 = vmatpush1.msra.mxu0 0.0
        %1098 = vmatprep.subr.mxu0 0.0
        %1099 = vmatpush1.msra.mxu0 0.0
        %1100 = vmatprep.subr.mxu0 0.0
        %1101 = vmatpush1.msra.mxu0 0.0
        %1102 = vmatprep.subr.mxu0 0.0
        %1103 = vmatpush1.msra.mxu0 0.0
        %1104 = vmatprep.subr.mxu0 0.0
        %1105 = vmatpush1.msra.mxu0 0.0
        %1106 = vmatprep.subr.mxu0 0.0
        %1107 = vmatpush1.msra.mxu0 0.0
        %1108 = vmatprep.subr.mxu0 0.0
        %1109 = vmatpush1.msra.mxu0 0.0
        %1110 = vmatprep.subr.mxu0 0.0
        %1111 = vmatpush1.msra.mxu0 0.0
        %1112 = vmatprep.subr.mxu0 0.0
        %1113 = vmatpush1.msra.mxu0 0.0
        %1114 = vmatprep.subr.mxu0 0.0
        %1115 = vmatpush1.msra.mxu0 0.0
        %1116 = vmatprep.subr.mxu0 0.0
        %1117 = vmatpush1.msra.mxu0 0.0
        %1118 = vmatprep.subr.mxu0 0.0
        %1119 = vmatpush1.msra.mxu0 0.0
        %1120 = vmatprep.subr.mxu0 0.0
        %1121 = vmatpush1.msra.mxu0 0.0
        %1122 = vmatprep.subr.mxu0 0.0
        %1123 = vmatpush1.msra.mxu0 0.0
        %1124 = vmatprep.subr.mxu0 0.0
        %1125 = vmatpush1.msra.mxu0 0.0
        %1126 = vmatprep.subr.mxu0 0.0
        %1127 = vmatpush1.msra.mxu0 0.0
        %1128 = vmatprep.subr.mxu0 0.0
        %1129 = vmatpush1.msra.mxu0 0.0
        %1130 = vmatprep.subr.mxu0 0.0
        %1131 = vmatpush1.msra.mxu0 0.0
        %1132 = vmatprep.subr.mxu0 0.0
        %1133 = vmatpush1.msra.mxu0 0.0
        %1134 = vmatprep.subr.mxu0 0.0
        %1135 = vmatpush1.msra.mxu0 0.0
        %1136 = vmatprep.subr.mxu0 0.0
        %1137 = vmatpush1.msra.mxu0 0.0
        %1138 = vmatprep.subr.mxu0 0.0
        %1139 = vmatpush1.msra.mxu0 0.0
        %1140 = vmatprep.subr.mxu0 0.0
        %1141 = vmatpush1.msra.mxu0 0.0
        %1142 = vmatprep.subr.mxu0 0.0
        %1143 = vmatpush1.msra.mxu0 0.0
        %1144 = vmatprep.subr.mxu0 0.0
        %1145 = vmatpush1.msra.mxu0 0.0
        %1146 = vmatprep.subr.mxu0 0.0
        %1147 = vmatpush1.msra.mxu0 0.0
        %1148 = vmatprep.subr.mxu0 0.0
        %1149 = vmatpush1.msra.mxu0 0.0
        %1150 = vmatprep.mubr.f32.mxu0 0.0
        %1151 = vmatmul.mubr.f32.gmra.mrb[0].mxu0 %v1084
        %v1152 = vpop.f32.mrb[0].mxu0
        %v1153 = vadd.f32 0.0, %v1152
        %v1154 = vpop.f32.mrb[0].mxu0
        %1155 = vdwg.mxu0
        %1156 = vrot.lane.b32.xlu0 %v988, 120
        %v1157 = vpop.permute.xlu0 %1156
        %1158 = vrot.lane.b32.xlu0 %v988, 88
        %v1159 = vpop.permute.xlu0 %1158
        %v1160 = vsel %vm994, %v1157, 0
        %v1162 = vsel %vm994, %v1159, 0
        %1164 = vmatprep.subr.mxu0 0.0
        %1165 = vmatpush1.xpose.msra.mxu0 %v1162
        %1166 = vmatprep.subr.mxu0 0.0
        %1167 = vmatpush1.xpose.msra.mxu0 0.0
        %1168 = vmatprep.subr.mxu0 0.0
        %1169 = vmatpush1.xpose.msra.mxu0 0.0
        %1170 = vmatprep.subr.mxu0 0.0
        %1171 = vmatpush1.xpose.msra.mxu0 0.0
        %1172 = vmatprep.subr.mxu0 0.0
        %1173 = vmatpush1.xpose.msra.mxu0 0.0
        %1174 = vmatprep.subr.mxu0 0.0
        %1175 = vmatpush1.xpose.msra.mxu0 0.0
        %1176 = vmatprep.subr.mxu0 0.0
        %1177 = vmatpush1.xpose.msra.mxu0 0.0
        %1178 = vmatprep.subr.mxu0 0.0
        %1179 = vmatpush1.xpose.msra.mxu0 0.0
        %1180 = vmatprep.subr.mxu0 0.0
        %1181 = vmatpush1.xpose.msra.mxu0 0.0
        %1182 = vmatprep.subr.mxu0 0.0
        %1183 = vmatpush1.xpose.msra.mxu0 0.0
        %1184 = vmatprep.subr.mxu0 0.0
        %1185 = vmatpush1.xpose.msra.mxu0 0.0
        %1186 = vmatprep.subr.mxu0 0.0
        %1187 = vmatpush1.xpose.msra.mxu0 0.0
        %1188 = vmatprep.subr.mxu0 0.0
        %1189 = vmatpush1.xpose.msra.mxu0 0.0
        %1190 = vmatprep.subr.mxu0 0.0
        %1191 = vmatpush1.xpose.msra.mxu0 0.0
        %1192 = vmatprep.subr.mxu0 0.0
        %1193 = vmatpush1.xpose.msra.mxu0 0.0
        %1194 = vmatprep.subr.mxu0 0.0
        %1195 = vmatpush1.xpose.msra.mxu0 0.0
        %1196 = vmatprep.subr.mxu0 0.0
        %1197 = vmatpush1.xpose.msra.mxu0 0.0
        %1198 = vmatprep.subr.mxu0 0.0
        %1199 = vmatpush1.xpose.msra.mxu0 0.0
        %1200 = vmatprep.subr.mxu0 0.0
        %1201 = vmatpush1.xpose.msra.mxu0 0.0
        %1202 = vmatprep.subr.mxu0 0.0
        %1203 = vmatpush1.xpose.msra.mxu0 0.0
        %1204 = vmatprep.subr.mxu0 0.0
        %1205 = vmatpush1.xpose.msra.mxu0 0.0
        %1206 = vmatprep.subr.mxu0 0.0
        %1207 = vmatpush1.xpose.msra.mxu0 0.0
        %1208 = vmatprep.subr.mxu0 0.0
        %1209 = vmatpush1.xpose.msra.mxu0 0.0
        %1210 = vmatprep.subr.mxu0 0.0
        %1211 = vmatpush1.xpose.msra.mxu0 0.0
        %1212 = vmatprep.subr.mxu0 0.0
        %1213 = vmatpush1.xpose.msra.mxu0 0.0
        %1214 = vmatprep.subr.mxu0 0.0
        %1215 = vmatpush1.xpose.msra.mxu0 0.0
        %1216 = vmatprep.subr.mxu0 0.0
        %1217 = vmatpush1.xpose.msra.mxu0 0.0
        %1218 = vmatprep.subr.mxu0 0.0
        %1219 = vmatpush1.xpose.msra.mxu0 0.0
        %1220 = vmatprep.subr.mxu0 0.0
        %1221 = vmatpush1.xpose.msra.mxu0 0.0
        %1222 = vmatprep.subr.mxu0 0.0
        %1223 = vmatpush1.xpose.msra.mxu0 0.0
        %1224 = vmatprep.subr.mxu0 0.0
        %1225 = vmatpush1.xpose.msra.mxu0 0.0
        %1226 = vmatprep.subr.mxu0 0.0
        %1227 = vmatpush1.xpose.msra.mxu0 0.0
        %1228 = vmatprep.mubr.f32.mxu0 0.0
        %1229 = vmatmul.mubr.f32.gmra.mrb[0].mxu0 %v1160
        %v1230 = vpop.f32.mrb[0].mxu0
        %v1231 = vadd.f32 %v905, %v1230
        %v1232 = vpop.f32.mrb[0].mxu0
        %1233 = vdwg.mxu0
        %v1234 = vsel %vm994, %v1231, -inf
        %1235 = vmax.xlane.f32.xlu0 %v1234
        %v1236 = vpop.xlane.xlu0 %1235
        %v1237 = vsub.f32 %v1231, %v1236
        %v1238 = vmul.f32 %v1237, 1.442695
        %v1239 = vpow.pop %v1238
        %v1240 = vsel %vm994, %v1239, 0.0
        %1241 = vadd.xlane.f32.xlu0 %v1240
        %v1242 = vpop.xlane.xlu0 %1241
        %v1243 = vrcp.pop %v1242
        %v1244 = vmul.f32 %v1239, %v1243
        %1245 = vrot.lane.b32.xlu0 %v988, 56
        %v1246 = vpop.permute.xlu0 %1245
        %v1249 = vsel %vm994, %v1244, 0
        %1251 = vmatprep.subr.mxu0 0.0
        %1252 = vmatpush1.msra.mxu0 %v1246
        %1253 = vmatprep.subr.mxu0 0.0
        %1254 = vmatpush1.msra.mxu0 0.0
        %1255 = vmatprep.subr.mxu0 0.0
        %1256 = vmatpush1.msra.mxu0 0.0
        %1257 = vmatprep.subr.mxu0 0.0
        %1258 = vmatpush1.msra.mxu0 0.0
        %1259 = vmatprep.subr.mxu0 0.0
        %1260 = vmatpush1.msra.mxu0 0.0
        %1261 = vmatprep.subr.mxu0 0.0
        %1262 = vmatpush1.msra.mxu0 0.0
        %1263 = vmatprep.subr.mxu0 0.0
        %1264 = vmatpush1.msra.mxu0 0.0
        %1265 = vmatprep.subr.mxu0 0.0
        %1266 = vmatpush1.msra.mxu0 0.0
        %1267 = vmatprep.subr.mxu0 0.0
        %1268 = vmatpush1.msra.mxu0 0.0
        %1269 = vmatprep.subr.mxu0 0.0
        %1270 = vmatpush1.msra.mxu0 0.0
        %1271 = vmatprep.subr.mxu0 0.0
        %1272 = vmatpush1.msra.mxu0 0.0
        %1273 = vmatprep.subr.mxu0 0.0
        %1274 = vmatpush1.msra.mxu0 0.0
        %1275 = vmatprep.subr.mxu0 0.0
        %1276 = vmatpush1.msra.mxu0 0.0
        %1277 = vmatprep.subr.mxu0 0.0
        %1278 = vmatpush1.msra.mxu0 0.0
        %1279 = vmatprep.subr.mxu0 0.0
        %1280 = vmatpush1.msra.mxu0 0.0
        %1281 = vmatprep.subr.mxu0 0.0
        %1282 = vmatpush1.msra.mxu0 0.0
        %1283 = vmatprep.subr.mxu0 0.0
        %1284 = vmatpush1.msra.mxu0 0.0
        %1285 = vmatprep.subr.mxu0 0.0
        %1286 = vmatpush1.msra.mxu0 0.0
        %1287 = vmatprep.subr.mxu0 0.0
        %1288 = vmatpush1.msra.mxu0 0.0
        %1289 = vmatprep.subr.mxu0 0.0
        %1290 = vmatpush1.msra.mxu0 0.0
        %1291 = vmatprep.subr.mxu0 0.0
        %1292 = vmatpush1.msra.mxu0 0.0
        %1293 = vmatprep.subr.mxu0 0.0
        %1294 = vmatpush1.msra.mxu0 0.0
        %1295 = vmatprep.subr.mxu0 0.0
        %1296 = vmatpush1.msra.mxu0 0.0
        %1297 = vmatprep.subr.mxu0 0.0
        %1298 = vmatpush1.msra.mxu0 0.0
        %1299 = vmatprep.subr.mxu0 0.0
        %1300 = vmatpush1.msra.mxu0 0.0
        %1301 = vmatprep.subr.mxu0 0.0
        %1302 = vmatpush1.msra.mxu0 0.0
        %1303 = vmatprep.subr.mxu0 0.0
        %1304 = vmatpush1.msra.mxu0 0.0
        %1305 = vmatprep.subr.mxu0 0.0
        %1306 = vmatpush1.msra.mxu0 0.0
        %1307 = vmatprep.subr.mxu0 0.0
        %1308 = vmatpush1.msra.mxu0 0.0
        %1309 = vmatprep.subr.mxu0 0.0
        %1310 = vmatpush1.msra.mxu0 0.0
        %1311 = vmatprep.subr.mxu0 0.0
        %1312 = vmatpush1.msra.mxu0 0.0
        %1313 = vmatprep.subr.mxu0 0.0
        %1314 = vmatpush1.msra.mxu0 0.0
        %1315 = vmatprep.mubr.f32.mxu0 0.0
        %1316 = vmatmul.mubr.f32.gmra.mrb[0].mxu0 %v1249
        %v1317 = vpop.f32.mrb[0].mxu0
        %v1318 = vadd.f32 0.0, %v1317
        %v1319 = vpop.f32.mrb[0].mxu0
        %1320 = vdwg.mxu0
        %1321 = vrot.lane.b32.xlu0 %v988, 112
        %v1322 = vpop.permute.xlu0 %1321
        %1323 = vrot.lane.b32.xlu0 %v988, 80
        %v1324 = vpop.permute.xlu0 %1323
        %v1325 = vsel %vm994, %v1322, 0
        %v1327 = vsel %vm994, %v1324, 0
        %1329 = vmatprep.subr.mxu0 0.0
        %1330 = vmatpush1.xpose.msra.mxu0 %v1327
        %1331 = vmatprep.subr.mxu0 0.0
        %1332 = vmatpush1.xpose.msra.mxu0 0.0
        %1333 = vmatprep.subr.mxu0 0.0
        %1334 = vmatpush1.xpose.msra.mxu0 0.0
        %1335 = vmatprep.subr.mxu0 0.0
        %1336 = vmatpush1.xpose.msra.mxu0 0.0
        %1337 = vmatprep.subr.mxu0 0.0
        %1338 = vmatpush1.xpose.msra.mxu0 0.0
        %1339 = vmatprep.subr.mxu0 0.0
        %1340 = vmatpush1.xpose.msra.mxu0 0.0
        %1341 = vmatprep.subr.mxu0 0.0
        %1342 = vmatpush1.xpose.msra.mxu0 0.0
        %1343 = vmatprep.subr.mxu0 0.0
        %1344 = vmatpush1.xpose.msra.mxu0 0.0
        %1345 = vmatprep.subr.mxu0 0.0
        %1346 = vmatpush1.xpose.msra.mxu0 0.0
        %1347 = vmatprep.subr.mxu0 0.0
        %1348 = vmatpush1.xpose.msra.mxu0 0.0
        %1349 = vmatprep.subr.mxu0 0.0
        %1350 = vmatpush1.xpose.msra.mxu0 0.0
        %1351 = vmatprep.subr.mxu0 0.0
        %1352 = vmatpush1.xpose.msra.mxu0 0.0
        %1353 = vmatprep.subr.mxu0 0.0
        %1354 = vmatpush1.xpose.msra.mxu0 0.0
        %1355 = vmatprep.subr.mxu0 0.0
        %1356 = vmatpush1.xpose.msra.mxu0 0.0
        %1357 = vmatprep.subr.mxu0 0.0
        %1358 = vmatpush1.xpose.msra.mxu0 0.0
        %1359 = vmatprep.subr.mxu0 0.0
        %1360 = vmatpush1.xpose.msra.mxu0 0.0
        %1361 = vmatprep.subr.mxu0 0.0
        %1362 = vmatpush1.xpose.msra.mxu0 0.0
        %1363 = vmatprep.subr.mxu0 0.0
        %1364 = vmatpush1.xpose.msra.mxu0 0.0
        %1365 = vmatprep.subr.mxu0 0.0
        %1366 = vmatpush1.xpose.msra.mxu0 0.0
        %1367 = vmatprep.subr.mxu0 0.0
        %1368 = vmatpush1.xpose.msra.mxu0 0.0
        %1369 = vmatprep.subr.mxu0 0.0
        %1370 = vmatpush1.xpose.msra.mxu0 0.0
        %1371 = vmatprep.subr.mxu0 0.0
        %1372 = vmatpush1.xpose.msra.mxu0 0.0
        %1373 = vmatprep.subr.mxu0 0.0
        %1374 = vmatpush1.xpose.msra.mxu0 0.0
        %1375 = vmatprep.subr.mxu0 0.0
        %1376 = vmatpush1.xpose.msra.mxu0 0.0
        %1377 = vmatprep.subr.mxu0 0.0
        %1378 = vmatpush1.xpose.msra.mxu0 0.0
        %1379 = vmatprep.subr.mxu0 0.0
        %1380 = vmatpush1.xpose.msra.mxu0 0.0
        %1381 = vmatprep.subr.mxu0 0.0
        %1382 = vmatpush1.xpose.msra.mxu0 0.0
        %1383 = vmatprep.subr.mxu0 0.0
        %1384 = vmatpush1.xpose.msra.mxu0 0.0
        %1385 = vmatprep.subr.mxu0 0.0
        %1386 = vmatpush1.xpose.msra.mxu0 0.0
        %1387 = vmatprep.subr.mxu0 0.0
        %1388 = vmatpush1.xpose.msra.mxu0 0.0
        %1389 = vmatprep.subr.mxu0 0.0
        %1390 = vmatpush1.xpose.msra.mxu0 0.0
        %1391 = vmatprep.subr.mxu0 0.0
        %1392 = vmatpush1.xpose.msra.mxu0 0.0
        %1393 = vmatprep.mubr.f32.mxu0 0.0
        %1394 = vmatmul.mubr.f32.gmra.mrb[0].mxu0 %v1325
        %v1395 = vpop.f32.mrb[0].mxu0
        %v1396 = vadd.f32 %v905, %v1395
        %v1397 = vpop.f32.mrb[0].mxu0
        %1398 = vdwg.mxu0
        %v1399 = vsel %vm994, %v1396, -inf
        %1400 = vmax.xlane.f32.xlu0 %v1399
        %v1401 = vpop.xlane.xlu0 %1400
        %v1402 = vsub.f32 %v1396, %v1401
        %v1403 = vmul.f32 %v1402, 1.442695
        %v1404 = vpow.pop %v1403
        %v1405 = vsel %vm994, %v1404, 0.0
        %1406 = vadd.xlane.f32.xlu0 %v1405
        %v1407 = vpop.xlane.xlu0 %1406
        %v1408 = vrcp.pop %v1407
        %v1409 = vmul.f32 %v1404, %v1408
        %1410 = vrot.lane.b32.xlu0 %v988, 48
        %v1411 = vpop.permute.xlu0 %1410
        %v1414 = vsel %vm994, %v1409, 0
        %1416 = vmatprep.subr.mxu0 0.0
        %1417 = vmatpush1.msra.mxu0 %v1411
        %1418 = vmatprep.subr.mxu0 0.0
        %1419 = vmatpush1.msra.mxu0 0.0
        %1420 = vmatprep.subr.mxu0 0.0
        %1421 = vmatpush1.msra.mxu0 0.0
        %1422 = vmatprep.subr.mxu0 0.0
        %1423 = vmatpush1.msra.mxu0 0.0
        %1424 = vmatprep.subr.mxu0 0.0
        %1425 = vmatpush1.msra.mxu0 0.0
        %1426 = vmatprep.subr.mxu0 0.0
        %1427 = vmatpush1.msra.mxu0 0.0
        %1428 = vmatprep.subr.mxu0 0.0
        %1429 = vmatpush1.msra.mxu0 0.0
        %1430 = vmatprep.subr.mxu0 0.0
        %1431 = vmatpush1.msra.mxu0 0.0
        %1432 = vmatprep.subr.mxu0 0.0
        %1433 = vmatpush1.msra.mxu0 0.0
        %1434 = vmatprep.subr.mxu0 0.0
        %1435 = vmatpush1.msra.mxu0 0.0
        %1436 = vmatprep.subr.mxu0 0.0
        %1437 = vmatpush1.msra.mxu0 0.0
        %1438 = vmatprep.subr.mxu0 0.0
        %1439 = vmatpush1.msra.mxu0 0.0
        %1440 = vmatprep.subr.mxu0 0.0
        %1441 = vmatpush1.msra.mxu0 0.0
        %1442 = vmatprep.subr.mxu0 0.0
        %1443 = vmatpush1.msra.mxu0 0.0
        %1444 = vmatprep.subr.mxu0 0.0
        %1445 = vmatpush1.msra.mxu0 0.0
        %1446 = vmatprep.subr.mxu0 0.0
        %1447 = vmatpush1.msra.mxu0 0.0
        %1448 = vmatprep.subr.mxu0 0.0
        %1449 = vmatpush1.msra.mxu0 0.0
        %1450 = vmatprep.subr.mxu0 0.0
        %1451 = vmatpush1.msra.mxu0 0.0
        %1452 = vmatprep.subr.mxu0 0.0
        %1453 = vmatpush1.msra.mxu0 0.0
        %1454 = vmatprep.subr.mxu0 0.0
        %1455 = vmatpush1.msra.mxu0 0.0
        %1456 = vmatprep.subr.mxu0 0.0
        %1457 = vmatpush1.msra.mxu0 0.0
        %1458 = vmatprep.subr.mxu0 0.0
        %1459 = vmatpush1.msra.mxu0 0.0
        %1460 = vmatprep.subr.mxu0 0.0
        %1461 = vmatpush1.msra.mxu0 0.0
        %1462 = vmatprep.subr.mxu0 0.0
        %1463 = vmatpush1.msra.mxu0 0.0
        %1464 = vmatprep.subr.mxu0 0.0
        %1465 = vmatpush1.msra.mxu0 0.0
        %1466 = vmatprep.subr.mxu0 0.0
        %1467 = vmatpush1.msra.mxu0 0.0
        %1468 = vmatprep.subr.mxu0 0.0
        %1469 = vmatpush1.msra.mxu0 0.0
        %1470 = vmatprep.subr.mxu0 0.0
        %1471 = vmatpush1.msra.mxu0 0.0
        %1472 = vmatprep.subr.mxu0 0.0
        %1473 = vmatpush1.msra.mxu0 0.0
        %1474 = vmatprep.subr.mxu0 0.0
        %1475 = vmatpush1.msra.mxu0 0.0
        %1476 = vmatprep.subr.mxu0 0.0
        %1477 = vmatpush1.msra.mxu0 0.0
        %1478 = vmatprep.subr.mxu0 0.0
        %1479 = vmatpush1.msra.mxu0 0.0
        %1480 = vmatprep.mubr.f32.mxu0 0.0
        %1481 = vmatmul.mubr.f32.gmra.mrb[0].mxu0 %v1414
        %v1482 = vpop.f32.mrb[0].mxu0
        %v1483 = vadd.f32 0.0, %v1482
        %v1484 = vpop.f32.mrb[0].mxu0
        %1485 = vdwg.mxu0
        %1486 = vrot.lane.b32.xlu0 %v988, 104
        %v1487 = vpop.permute.xlu0 %1486
        %1488 = vrot.lane.b32.xlu0 %v988, 72
        %v1489 = vpop.permute.xlu0 %1488
        %v1490 = vsel %vm994, %v1487, 0
        %v1492 = vsel %vm994, %v1489, 0
        %1494 = vmatprep.subr.mxu0 0.0
        %1495 = vmatpush1.xpose.msra.mxu0 %v1492
        %1496 = vmatprep.subr.mxu0 0.0
        %1497 = vmatpush1.xpose.msra.mxu0 0.0
        %1498 = vmatprep.subr.mxu0 0.0
        %1499 = vmatpush1.xpose.msra.mxu0 0.0
        %1500 = vmatprep.subr.mxu0 0.0
        %1501 = vmatpush1.xpose.msra.mxu0 0.0
        %1502 = vmatprep.subr.mxu0 0.0
        %1503 = vmatpush1.xpose.msra.mxu0 0.0
        %1504 = vmatprep.subr.mxu0 0.0
        %1505 = vmatpush1.xpose.msra.mxu0 0.0
        %1506 = vmatprep.subr.mxu0 0.0
        %1507 = vmatpush1.xpose.msra.mxu0 0.0
        %1508 = vmatprep.subr.mxu0 0.0
        %1509 = vmatpush1.xpose.msra.mxu0 0.0
        %1510 = vmatprep.subr.mxu0 0.0
        %1511 = vmatpush1.xpose.msra.mxu0 0.0
        %1512 = vmatprep.subr.mxu0 0.0
        %1513 = vmatpush1.xpose.msra.mxu0 0.0
        %1514 = vmatprep.subr.mxu0 0.0
        %1515 = vmatpush1.xpose.msra.mxu0 0.0
        %1516 = vmatprep.subr.mxu0 0.0
        %1517 = vmatpush1.xpose.msra.mxu0 0.0
        %1518 = vmatprep.subr.mxu0 0.0
        %1519 = vmatpush1.xpose.msra.mxu0 0.0
        %1520 = vmatprep.subr.mxu0 0.0
        %1521 = vmatpush1.xpose.msra.mxu0 0.0
        %1522 = vmatprep.subr.mxu0 0.0
        %1523 = vmatpush1.xpose.msra.mxu0 0.0
        %1524 = vmatprep.subr.mxu0 0.0
        %1525 = vmatpush1.xpose.msra.mxu0 0.0
        %1526 = vmatprep.subr.mxu0 0.0
        %1527 = vmatpush1.xpose.msra.mxu0 0.0
        %1528 = vmatprep.subr.mxu0 0.0
        %1529 = vmatpush1.xpose.msra.mxu0 0.0
        %1530 = vmatprep.subr.mxu0 0.0
        %1531 = vmatpush1.xpose.msra.mxu0 0.0
        %1532 = vmatprep.subr.mxu0 0.0
        %1533 = vmatpush1.xpose.msra.mxu0 0.0
        %1534 = vmatprep.subr.mxu0 0.0
        %1535 = vmatpush1.xpose.msra.mxu0 0.0
        %1536 = vmatprep.subr.mxu0 0.0
        %1537 = vmatpush1.xpose.msra.mxu0 0.0
        %1538 = vmatprep.subr.mxu0 0.0
        %1539 = vmatpush1.xpose.msra.mxu0 0.0
        %1540 = vmatprep.subr.mxu0 0.0
        %1541 = vmatpush1.xpose.msra.mxu0 0.0
        %1542 = vmatprep.subr.mxu0 0.0
        %1543 = vmatpush1.xpose.msra.mxu0 0.0
        %1544 = vmatprep.subr.mxu0 0.0
        %1545 = vmatpush1.xpose.msra.mxu0 0.0
        %1546 = vmatprep.subr.mxu0 0.0
        %1547 = vmatpush1.xpose.msra.mxu0 0.0
        %1548 = vmatprep.subr.mxu0 0.0
        %1549 = vmatpush1.xpose.msra.mxu0 0.0
        %1550 = vmatprep.subr.mxu0 0.0
        %1551 = vmatpush1.xpose.msra.mxu0 0.0
        %1552 = vmatprep.subr.mxu0 0.0
        %1553 = vmatpush1.xpose.msra.mxu0 0.0
        %1554 = vmatprep.subr.mxu0 0.0
        %1555 = vmatpush1.xpose.msra.mxu0 0.0
        %1556 = vmatprep.subr.mxu0 0.0
        %1557 = vmatpush1.xpose.msra.mxu0 0.0
        %1558 = vmatprep.mubr.f32.mxu0 0.0
        %1559 = vmatmul.mubr.f32.gmra.mrb[0].mxu0 %v1490
        %v1560 = vpop.f32.mrb[0].mxu0
        %v1561 = vadd.f32 %v905, %v1560
        %v1562 = vpop.f32.mrb[0].mxu0
        %1563 = vdwg.mxu0
        %v1564 = vsel %vm994, %v1561, -inf
        %1565 = vmax.xlane.f32.xlu0 %v1564
        %v1566 = vpop.xlane.xlu0 %1565
        %v1567 = vsub.f32 %v1561, %v1566
        %v1568 = vmul.f32 %v1567, 1.442695
        %v1569 = vpow.pop %v1568
        %v1570 = vsel %vm994, %v1569, 0.0
        %1571 = vadd.xlane.f32.xlu0 %v1570
        %v1572 = vpop.xlane.xlu0 %1571
        %v1573 = vrcp.pop %v1572
        %v1574 = vmul.f32 %v1569, %v1573
        %1575 = vrot.lane.b32.xlu0 %v988, 40
        %v1576 = vpop.permute.xlu0 %1575
        %v1579 = vsel %vm994, %v1574, 0
        %1581 = vmatprep.subr.mxu0 0.0
        %1582 = vmatpush1.msra.mxu0 %v1576
        %1583 = vmatprep.subr.mxu0 0.0
        %1584 = vmatpush1.msra.mxu0 0.0
        %1585 = vmatprep.subr.mxu0 0.0
        %1586 = vmatpush1.msra.mxu0 0.0
        %1587 = vmatprep.subr.mxu0 0.0
        %1588 = vmatpush1.msra.mxu0 0.0
        %1589 = vmatprep.subr.mxu0 0.0
        %1590 = vmatpush1.msra.mxu0 0.0
        %1591 = vmatprep.subr.mxu0 0.0
        %1592 = vmatpush1.msra.mxu0 0.0
        %1593 = vmatprep.subr.mxu0 0.0
        %1594 = vmatpush1.msra.mxu0 0.0
        %1595 = vmatprep.subr.mxu0 0.0
        %1596 = vmatpush1.msra.mxu0 0.0
        %1597 = vmatprep.subr.mxu0 0.0
        %1598 = vmatpush1.msra.mxu0 0.0
        %1599 = vmatprep.subr.mxu0 0.0
        %1600 = vmatpush1.msra.mxu0 0.0
        %1601 = vmatprep.subr.mxu0 0.0
        %1602 = vmatpush1.msra.mxu0 0.0
        %1603 = vmatprep.subr.mxu0 0.0
        %1604 = vmatpush1.msra.mxu0 0.0
        %1605 = vmatprep.subr.mxu0 0.0
        %1606 = vmatpush1.msra.mxu0 0.0
        %1607 = vmatprep.subr.mxu0 0.0
        %1608 = vmatpush1.msra.mxu0 0.0
        %1609 = vmatprep.subr.mxu0 0.0
        %1610 = vmatpush1.msra.mxu0 0.0
        %1611 = vmatprep.subr.mxu0 0.0
        %1612 = vmatpush1.msra.mxu0 0.0
        %1613 = vmatprep.subr.mxu0 0.0
        %1614 = vmatpush1.msra.mxu0 0.0
        %1615 = vmatprep.subr.mxu0 0.0
        %1616 = vmatpush1.msra.mxu0 0.0
        %1617 = vmatprep.subr.mxu0 0.0
        %1618 = vmatpush1.msra.mxu0 0.0
        %1619 = vmatprep.subr.mxu0 0.0
        %1620 = vmatpush1.msra.mxu0 0.0
        %1621 = vmatprep.subr.mxu0 0.0
        %1622 = vmatpush1.msra.mxu0 0.0
        %1623 = vmatprep.subr.mxu0 0.0
        %1624 = vmatpush1.msra.mxu0 0.0
        %1625 = vmatprep.subr.mxu0 0.0
        %1626 = vmatpush1.msra.mxu0 0.0
        %1627 = vmatprep.subr.mxu0 0.0
        %1628 = vmatpush1.msra.mxu0 0.0
        %1629 = vmatprep.subr.mxu0 0.0
        %1630 = vmatpush1.msra.mxu0 0.0
        %1631 = vmatprep.subr.mxu0 0.0
        %1632 = vmatpush1.msra.mxu0 0.0
        %1633 = vmatprep.subr.mxu0 0.0
        %1634 = vmatpush1.msra.mxu0 0.0
        %1635 = vmatprep.subr.mxu0 0.0
        %1636 = vmatpush1.msra.mxu0 0.0
        %1637 = vmatprep.subr.mxu0 0.0
        %1638 = vmatpush1.msra.mxu0 0.0
        %1639 = vmatprep.subr.mxu0 0.0
        %1640 = vmatpush1.msra.mxu0 0.0
        %1641 = vmatprep.subr.mxu0 0.0
        %1642 = vmatpush1.msra.mxu0 0.0
        %1643 = vmatprep.subr.mxu0 0.0
        %1644 = vmatpush1.msra.mxu0 0.0
        %1645 = vmatprep.mubr.f32.mxu0 0.0
        %1646 = vmatmul.mubr.f32.gmra.mrb[0].mxu0 %v1579
        %v1647 = vpop.f32.mrb[0].mxu0
        %v1648 = vadd.f32 0.0, %v1647
        %v1649 = vpop.f32.mrb[0].mxu0
        %1650 = vdwg.mxu0
        %1652 = vrot.lane.b32.xlu0 %v1318, 8
        %v1653 = vpop.permute.xlu0 %1652
        %1656 = vrot.lane.b32.xlu0 %v1483, 16
        %v1657 = vpop.permute.xlu0 %1656
        %1660 = vrot.lane.b32.xlu0 %v1648, 24
        %v1661 = vpop.permute.xlu0 %1660
        %v1663 = vsel %vm994, %v1153, %v1653
        %v1664 = vsel %vm792, %v1663, %v1657
        %vm1665 = vcmask 195584
        %v1666 = vsel %vm1665, %v1664, %v1661
        %v1667 = vld [vmem:[%s10] sm:$0xff]
        %v1668 = vld [vmem:[%s10 + $0x8] sm:$0xff]
        %v1669 = vld [vmem:[%s10 + $0x10] sm:$0xff]
        %v1670 = vld [vmem:[%s10 + $0x18] sm:$0xff]
        %v1671 = vld [vmem:[%s11] sm:$0x1]
        %v1673 = vlaneseq
        %v1674 = vshrl.u32 %v1673, 7
        %v1675 = vsub.s32 0, %v1674
        %v1676 = vrot.slane %v1671, %v1675
        %v1679 = vsel %vm869, %v1666, 0
        %1681 = vmatprep.subr.mxu0 0.0
        %1682 = vmatpush1.msra.mxu0 %v1667
        %1683 = vmatprep.subr.mxu0 0.0
        %1684 = vmatpush1.msra.mxu0 %v1668
        %1685 = vmatprep.subr.mxu0 0.0
        %1686 = vmatpush1.msra.mxu0 %v1669
        %1687 = vmatprep.subr.mxu0 0.0
        %1688 = vmatpush1.msra.mxu0 %v1670
        %1689 = vmatprep.subr.mxu0 0.0
        %1690 = vmatpush1.msra.mxu0 0.0
        %1691 = vmatprep.subr.mxu0 0.0
        %1692 = vmatpush1.msra.mxu0 0.0
        %1693 = vmatprep.subr.mxu0 0.0
        %1694 = vmatpush1.msra.mxu0 0.0
        %1695 = vmatprep.subr.mxu0 0.0
        %1696 = vmatpush1.msra.mxu0 0.0
        %1697 = vmatprep.subr.mxu0 0.0
        %1698 = vmatpush1.msra.mxu0 0.0
        %1699 = vmatprep.subr.mxu0 0.0
        %1700 = vmatpush1.msra.mxu0 0.0
        %1701 = vmatprep.subr.mxu0 0.0
        %1702 = vmatpush1.msra.mxu0 0.0
        %1703 = vmatprep.subr.mxu0 0.0
        %1704 = vmatpush1.msra.mxu0 0.0
        %1705 = vmatprep.subr.mxu0 0.0
        %1706 = vmatpush1.msra.mxu0 0.0
        %1707 = vmatprep.subr.mxu0 0.0
        %1708 = vmatpush1.msra.mxu0 0.0
        %1709 = vmatprep.subr.mxu0 0.0
        %1710 = vmatpush1.msra.mxu0 0.0
        %1711 = vmatprep.subr.mxu0 0.0
        %1712 = vmatpush1.msra.mxu0 0.0
        %1713 = vmatprep.subr.mxu0 0.0
        %1714 = vmatpush1.msra.mxu0 0.0
        %1715 = vmatprep.subr.mxu0 0.0
        %1716 = vmatpush1.msra.mxu0 0.0
        %1717 = vmatprep.subr.mxu0 0.0
        %1718 = vmatpush1.msra.mxu0 0.0
        %1719 = vmatprep.subr.mxu0 0.0
        %1720 = vmatpush1.msra.mxu0 0.0
        %1721 = vmatprep.subr.mxu0 0.0
        %1722 = vmatpush1.msra.mxu0 0.0
        %1723 = vmatprep.subr.mxu0 0.0
        %1724 = vmatpush1.msra.mxu0 0.0
        %1725 = vmatprep.subr.mxu0 0.0
        %1726 = vmatpush1.msra.mxu0 0.0
        %1727 = vmatprep.subr.mxu0 0.0
        %1728 = vmatpush1.msra.mxu0 0.0
        %1729 = vmatprep.subr.mxu0 0.0
        %1730 = vmatpush1.msra.mxu0 0.0
        %1731 = vmatprep.subr.mxu0 0.0
        %1732 = vmatpush1.msra.mxu0 0.0
        %1733 = vmatprep.subr.mxu0 0.0
        %1734 = vmatpush1.msra.mxu0 0.0
        %1735 = vmatprep.subr.mxu0 0.0
        %1736 = vmatpush1.msra.mxu0 0.0
        %1737 = vmatprep.subr.mxu0 0.0
        %1738 = vmatpush1.msra.mxu0 0.0
        %1739 = vmatprep.subr.mxu0 0.0
        %1740 = vmatpush1.msra.mxu0 0.0
        %1741 = vmatprep.subr.mxu0 0.0
        %1742 = vmatpush1.msra.mxu0 0.0
        %1743 = vmatprep.subr.mxu0 0.0
        %1744 = vmatpush1.msra.mxu0 0.0
        %1745 = vmatprep.mubr.f32.mxu0 0.0
        %1746 = vmatmul.mubr.f32.gmra.mrb[0].mxu0 %v1679
        %v1747 = vpop.f32.mrb[0].mxu0
        %v1748 = vadd.f32 %v1676, %v1747
        %v1749 = vpop.f32.mrb[0].mxu0
        %1750 = vdwg.mxu0
        %v1751 = vadd.f32 %v899, %v1748
        %v1752 = vld [vmem:[%s12] sm:$0x1]
        %v1753 = vld [vmem:[%s13] sm:$0x1]
        %v1754 = vsel %vm869, %v1751, 0.0
        %1755 = vadd.xlane.f32.xlu0 %v1754
        %v1756 = vpop.xlane.xlu0 %1755
        %v1757 = vmul.f32 %v1756, %v873
        %v1758 = vsub.f32 %v1751, %v1757
        %v1759 = vmul.f32 %v1758, %v1758
        %v1760 = vsel %vm869, %v1759, 0.0
        %1761 = vadd.xlane.f32.xlu0 %v1760
        %v1762 = vpop.xlane.xlu0 %1761
        %v1763 = vmul.f32 %v1762, %v873
        %v1764 = vadd.f32 %v1763, 1e-05
        %v1765 = vrsqrt.pop %v1764
        %v1766 = vmul.f32 %v1758, %v1765
        %v1768 = vlaneseq
        %v1769 = vshrl.u32 %v1768, 7
        %v1770 = vsub.s32 0, %v1769
        %v1771 = vrot.slane %v1752, %v1770
        %v1773 = vmul.f32 %v1766, %v1771
        %v1775 = vlaneseq
        %v1776 = vshrl.u32 %v1775, 7
        %v1777 = vsub.s32 0, %v1776
        %v1778 = vrot.slane %v1753, %v1777
        %v1780 = vadd.f32 %v1773, %v1778
        %v1781 = vld [vmem:[%s14] sm:$0xff]
        %v1782 = vld [vmem:[%s14 + $0x8] sm:$0xff]
        %v1783 = vld [vmem:[%s14 + $0x10] sm:$0xff]
        %v1784 = vld [vmem:[%s14 + $0x18] sm:$0xff]
        %v1785 = vld [vmem:[%s14 + $0x20] sm:$0xff]
        %v1786 = vld [vmem:[%s14 + $0x28] sm:$0xff]
        %v1787 = vld [vmem:[%s14 + $0x30] sm:$0xff]
        %v1788 = vld [vmem:[%s14 + $0x38] sm:$0xff]
        %v1789 = vld [vmem:[%s14 + $0x40] sm:$0xff]
        %v1790 = vld [vmem:[%s14 + $0x48] sm:$0xff]
        %v1791 = vld [vmem:[%s14 + $0x50] sm:$0xff]
        %v1792 = vld [vmem:[%s14 + $0x58] sm:$0xff]
        %v1793 = vld [vmem:[%s14 + $0x60] sm:$0xff]
        %v1794 = vld [vmem:[%s14 + $0x68] sm:$0xff]
        %v1795 = vld [vmem:[%s14 + $0x70] sm:$0xff]
        %v1796 = vld [vmem:[%s14 + $0x78] sm:$0xff]
        %v1797 = vld [vmem:[%s15] sm:$0xf]
        %v1799 = vlaneseq
        %v1800 = vshrl.u32 %v1799, 7
        %v1801 = vsub.s32 0, %v1800
        %v1802 = vrot.slane %v1797, %v1801
        %v1803 = vlaneseq
        %v1804 = vshrl.u32 %v1803, 7
        %v1805 = vsub.s32 1, %v1804
        %v1806 = vrot.slane %v1797, %v1805
        %v1807 = vlaneseq
        %v1808 = vshrl.u32 %v1807, 7
        %v1809 = vsub.s32 2, %v1808
        %v1810 = vrot.slane %v1797, %v1809
        %v1811 = vlaneseq
        %v1812 = vshrl.u32 %v1811, 7
        %v1813 = vsub.s32 3, %v1812
        %v1814 = vrot.slane %v1797, %v1813
        %v1820 = vsel %vm869, %v1780, 0
        %1822 = vmatprep.subr.mxu0 %v1782
        %1823 = vmatpush1.msra.mxu0 %v1781
        %1824 = vmatprep.subr.mxu0 %v1786
        %1825 = vmatpush1.msra.mxu0 %v1785
        %1826 = vmatprep.subr.mxu0 %v1790
        %1827 = vmatpush1.msra.mxu0 %v1789
        %1828 = vmatprep.subr.mxu0 %v1794
        %1829 = vmatpush1.msra.mxu0 %v1793
        %1830 = vmatprep.subr.mxu0 0.0
        %1831 = vmatpush1.msra.mxu0 0.0
        %1832 = vmatprep.subr.mxu0 0.0
        %1833 = vmatpush1.msra.mxu0 0.0
        %1834 = vmatprep.subr.mxu0 0.0
        %1835 = vmatpush1.msra.mxu0 0.0
        %1836 = vmatprep.subr.mxu0 0.0
        %1837 = vmatpush1.msra.mxu0 0.0
        %1838 = vmatprep.subr.mxu0 0.0
        %1839 = vmatpush1.msra.mxu0 0.0
        %1840 = vmatprep.subr.mxu0 0.0
        %1841 = vmatpush1.msra.mxu0 0.0
        %1842 = vmatprep.subr.mxu0 0.0
        %1843 = vmatpush1.msra.mxu0 0.0
        %1844 = vmatprep.subr.mxu0 0.0
        %1845 = vmatpush1.msra.mxu0 0.0
        %1846 = vmatprep.subr.mxu0 0.0
        %1847 = vmatpush1.msra.mxu0 0.0
        %1848 = vmatprep.subr.mxu0 0.0
        %1849 = vmatpush1.msra.mxu0 0.0
        %1850 = vmatprep.subr.mxu0 0.0
        %1851 = vmatpush1.msra.mxu0 0.0
        %1852 = vmatprep.subr.mxu0 0.0
        %1853 = vmatpush1.msra.mxu0 0.0
        %1854 = vmatprep.subr.mxu0 0.0
        %1855 = vmatpush1.msra.mxu0 0.0
        %1856 = vmatprep.subr.mxu0 0.0
        %1857 = vmatpush1.msra.mxu0 0.0
        %1858 = vmatprep.subr.mxu0 0.0
        %1859 = vmatpush1.msra.mxu0 0.0
        %1860 = vmatprep.subr.mxu0 0.0
        %1861 = vmatpush1.msra.mxu0 0.0
        %1862 = vmatprep.subr.mxu0 0.0
        %1863 = vmatpush1.msra.mxu0 0.0
        %1864 = vmatprep.subr.mxu0 0.0
        %1865 = vmatpush1.msra.mxu0 0.0
        %1866 = vmatprep.subr.mxu0 0.0
        %1867 = vmatpush1.msra.mxu0 0.0
        %1868 = vmatprep.subr.mxu0 0.0
        %1869 = vmatpush1.msra.mxu0 0.0
        %1870 = vmatprep.subr.mxu0 0.0
        %1871 = vmatpush1.msra.mxu0 0.0
        %1872 = vmatprep.subr.mxu0 0.0
        %1873 = vmatpush1.msra.mxu0 0.0
        %1874 = vmatprep.subr.mxu0 0.0
        %1875 = vmatpush1.msra.mxu0 0.0
        %1876 = vmatprep.subr.mxu0 0.0
        %1877 = vmatpush1.msra.mxu0 0.0
        %1878 = vmatprep.subr.mxu0 0.0
        %1879 = vmatpush1.msra.mxu0 0.0
        %1880 = vmatprep.subr.mxu0 0.0
        %1881 = vmatpush1.msra.mxu0 0.0
        %1882 = vmatprep.subr.mxu0 0.0
        %1883 = vmatpush1.msra.mxu0 0.0
        %1884 = vmatprep.subr.mxu0 0.0
        %1885 = vmatpush1.msra.mxu0 0.0
        %1886 = vmatprep.mubr.f32.mxu0 0.0
        %1887 = vmatmul.mubr.f32.gmra.mrb[0].mxu0 %v1820
        %v1888 = vpop.f32.mrb[0].mxu0
        %v1889 = vadd.f32 %v1802, %v1888
        %v1890 = vpop.f32.mrb[0].mxu0
        %v1891 = vadd.f32 %v1806, %v1890
        %1892 = vdwg.mxu0
        %1893 = vmatprep.subr.mxu0 %v1784
        %1894 = vmatpush1.msra.mxu0 %v1783
        %1895 = vmatprep.subr.mxu0 %v1788
        %1896 = vmatpush1.msra.mxu0 %v1787
        %1897 = vmatprep.subr.mxu0 %v1792
        %1898 = vmatpush1.msra.mxu0 %v1791
        %1899 = vmatprep.subr.mxu0 %v1796
        %1900 = vmatpush1.msra.mxu0 %v1795
        %1901 = vmatprep.subr.mxu0 0.0
        %1902 = vmatpush1.msra.mxu0 0.0
        %1903 = vmatprep.subr.mxu0 0.0
        %1904 = vmatpush1.msra.mxu0 0.0
        %1905 = vmatprep.subr.mxu0 0.0
        %1906 = vmatpush1.msra.mxu0 0.0
        %1907 = vmatprep.subr.mxu0 0.0
        %1908 = vmatpush1.msra.mxu0 0.0
        %1909 = vmatprep.subr.mxu0 0.0
        %1910 = vmatpush1.msra.mxu0 0.0
        %1911 = vmatprep.subr.mxu0 0.0
        %1912 = vmatpush1.msra.mxu0 0.0
        %1913 = vmatprep.subr.mxu0 0.0
        %1914 = vmatpush1.msra.mxu0 0.0
        %1915 = vmatprep.subr.mxu0 0.0
        %1916 = vmatpush1.msra.mxu0 0.0
        %1917 = vmatprep.subr.mxu0 0.0
        %1918 = vmatpush1.msra.mxu0 0.0
        %1919 = vmatprep.subr.mxu0 0.0
        %1920 = vmatpush1.msra.mxu0 0.0
        %1921 = vmatprep.subr.mxu0 0.0
        %1922 = vmatpush1.msra.mxu0 0.0
        %1923 = vmatprep.subr.mxu0 0.0
        %1924 = vmatpush1.msra.mxu0 0.0
        %1925 = vmatprep.subr.mxu0 0.0
        %1926 = vmatpush1.msra.mxu0 0.0
        %1927 = vmatprep.subr.mxu0 0.0
        %1928 = vmatpush1.msra.mxu0 0.0
        %1929 = vmatprep.subr.mxu0 0.0
        %1930 = vmatpush1.msra.mxu0 0.0
        %1931 = vmatprep.subr.mxu0 0.0
        %1932 = vmatpush1.msra.mxu0 0.0
        %1933 = vmatprep.subr.mxu0 0.0
        %1934 = vmatpush1.msra.mxu0 0.0
        %1935 = vmatprep.subr.mxu0 0.0
        %1936 = vmatpush1.msra.mxu0 0.0
        %1937 = vmatprep.subr.mxu0 0.0
        %1938 = vmatpush1.msra.mxu0 0.0
        %1939 = vmatprep.subr.mxu0 0.0
        %1940 = vmatpush1.msra.mxu0 0.0
        %1941 = vmatprep.subr.mxu0 0.0
        %1942 = vmatpush1.msra.mxu0 0.0
        %1943 = vmatprep.subr.mxu0 0.0
        %1944 = vmatpush1.msra.mxu0 0.0
        %1945 = vmatprep.subr.mxu0 0.0
        %1946 = vmatpush1.msra.mxu0 0.0
        %1947 = vmatprep.subr.mxu0 0.0
        %1948 = vmatpush1.msra.mxu0 0.0
        %1949 = vmatprep.subr.mxu0 0.0
        %1950 = vmatpush1.msra.mxu0 0.0
        %1951 = vmatprep.subr.mxu0 0.0
        %1952 = vmatpush1.msra.mxu0 0.0
        %1953 = vmatprep.subr.mxu0 0.0
        %1954 = vmatpush1.msra.mxu0 0.0
        %1955 = vmatprep.subr.mxu0 0.0
        %1956 = vmatpush1.msra.mxu0 0.0
        %1957 = vmatprep.mubr.f32.mxu0 0.0
        %1958 = vmatmul.mubr.f32.gmra.mrb[0].mxu0 %v1820
        %v1959 = vpop.f32.mrb[0].mxu0
        %v1960 = vadd.f32 %v1810, %v1959
        %v1961 = vpop.f32.mrb[0].mxu0
        %v1962 = vadd.f32 %v1814, %v1961
        %1963 = vdwg.mxu0
        %v1964 = vmax.f32 %v1889, 0.0
        %v1965 = vmax.f32 %v1891, 0.0
        %v1966 = vmax.f32 %v1960, 0.0
        %v1967 = vmax.f32 %v1962, 0.0
        %v1968 = vld [vmem:[%s16] sm:$0xff]
        %v1969 = vld [vmem:[%s16 + $0x8] sm:$0xff]
        %v1970 = vld [vmem:[%s16 + $0x10] sm:$0xff]
        %v1971 = vld [vmem:[%s16 + $0x18] sm:$0xff]
        %v1972 = vld [vmem:[%s16 + $0x20] sm:$0xff]
        %v1973 = vld [vmem:[%s16 + $0x28] sm:$0xff]
        %v1974 = vld [vmem:[%s16 + $0x30] sm:$0xff]
        %v1975 = vld [vmem:[%s16 + $0x38] sm:$0xff]
        %v1976 = vld [vmem:[%s16 + $0x40] sm:$0xff]
        %v1977 = vld [vmem:[%s16 + $0x48] sm:$0xff]
        %v1978 = vld [vmem:[%s16 + $0x50] sm:$0xff]
        %v1979 = vld [vmem:[%s16 + $0x58] sm:$0xff]
        %v1980 = vld [vmem:[%s16 + $0x60] sm:$0xff]
        %v1981 = vld [vmem:[%s16 + $0x68] sm:$0xff]
        %v1982 = vld [vmem:[%s16 + $0x70] sm:$0xff]
        %v1983 = vld [vmem:[%s16 + $0x78] sm:$0xff]
        %v1984 = vld [vmem:[%s16 + $0x80] sm:$0xff]
        %v1985 = vld [vmem:[%s16 + $0x88] sm:$0xff]
        %v1986 = vld [vmem:[%s16 + $0x90] sm:$0xff]
        %v1987 = vld [vmem:[%s16 + $0x98] sm:$0xff]
        %v1988 = vld [vmem:[%s16 + $0xa0] sm:$0xff]
        %v1989 = vld [vmem:[%s16 + $0xa8] sm:$0xff]
        %v1990 = vld [vmem:[%s16 + $0xb0] sm:$0xff]
        %v1991 = vld [vmem:[%s16 + $0xb8] sm:$0xff]
        %v1992 = vld [vmem:[%s16 + $0xc0] sm:$0xff]
        %v1993 = vld [vmem:[%s16 + $0xc8] sm:$0xff]
        %v1994 = vld [vmem:[%s16 + $0xd0] sm:$0xff]
        %v1995 = vld [vmem:[%s16 + $0xd8] sm:$0xff]
        %v1996 = vld [vmem:[%s16 + $0xe0] sm:$0xff]
        %v1997 = vld [vmem:[%s16 + $0xe8] sm:$0xff]
        %v1998 = vld [vmem:[%s16 + $0xf0] sm:$0xff]
        %v1999 = vld [vmem:[%s16 + $0xf8] sm:$0xff]
        %v2000 = vld [vmem:[%s16 + $0x100] sm:$0xff]
        %v2001 = vld [vmem:[%s16 + $0x108] sm:$0xff]
        %v2002 = vld [vmem:[%s16 + $0x110] sm:$0xff]
        %v2003 = vld [vmem:[%s16 + $0x118] sm:$0xff]
        %v2004 = vld [vmem:[%s16 + $0x120] sm:$0xff]
        %v2005 = vld [vmem:[%s16 + $0x128] sm:$0xff]
        %v2006 = vld [vmem:[%s16 + $0x130] sm:$0xff]
        %v2007 = vld [vmem:[%s16 + $0x138] sm:$0xff]
        %v2008 = vld [vmem:[%s16 + $0x140] sm:$0xff]
        %v2009 = vld [vmem:[%s16 + $0x148] sm:$0xff]
        %v2010 = vld [vmem:[%s16 + $0x150] sm:$0xff]
        %v2011 = vld [vmem:[%s16 + $0x158] sm:$0xff]
        %v2012 = vld [vmem:[%s16 + $0x160] sm:$0xff]
        %v2013 = vld [vmem:[%s16 + $0x168] sm:$0xff]
        %v2014 = vld [vmem:[%s16 + $0x170] sm:$0xff]
        %v2015 = vld [vmem:[%s16 + $0x178] sm:$0xff]
        %v2016 = vld [vmem:[%s16 + $0x180] sm:$0xff]
        %v2017 = vld [vmem:[%s16 + $0x188] sm:$0xff]
        %v2018 = vld [vmem:[%s16 + $0x190] sm:$0xff]
        %v2019 = vld [vmem:[%s16 + $0x198] sm:$0xff]
        %v2020 = vld [vmem:[%s16 + $0x1a0] sm:$0xff]
        %v2021 = vld [vmem:[%s16 + $0x1a8] sm:$0xff]
        %v2022 = vld [vmem:[%s16 + $0x1b0] sm:$0xff]
        %v2023 = vld [vmem:[%s16 + $0x1b8] sm:$0xff]
        %v2024 = vld [vmem:[%s16 + $0x1c0] sm:$0xff]
        %v2025 = vld [vmem:[%s16 + $0x1c8] sm:$0xff]
        %v2026 = vld [vmem:[%s16 + $0x1d0] sm:$0xff]
        %v2027 = vld [vmem:[%s16 + $0x1d8] sm:$0xff]
        %v2028 = vld [vmem:[%s16 + $0x1e0] sm:$0xff]
        %v2029 = vld [vmem:[%s16 + $0x1e8] sm:$0xff]
        %v2030 = vld [vmem:[%s16 + $0x1f0] sm:$0xff]
        %v2031 = vld [vmem:[%s16 + $0x1f8] sm:$0xff]
        %v2032 = vld [vmem:[%s17] sm:$0x1]
        %v2034 = vlaneseq
        %v2035 = vshrl.u32 %v2034, 7
        %v2036 = vsub.s32 0, %v2035
        %v2037 = vrot.slane %v2032, %v2036
        %2039 = vmatprep.subr.mxu0 0.0
        %2040 = vmatpush1.msra.mxu0 %v1968
        %2041 = vmatprep.subr.mxu0 0.0
        %2042 = vmatpush1.msra.mxu0 %v1969
        %2043 = vmatprep.subr.mxu0 0.0
        %2044 = vmatpush1.msra.mxu0 %v1970
        %2045 = vmatprep.subr.mxu0 0.0
        %2046 = vmatpush1.msra.mxu0 %v1971
        %2047 = vmatprep.subr.mxu0 0.0
        %2048 = vmatpush1.msra.mxu0 %v1972
        %2049 = vmatprep.subr.mxu0 0.0
        %2050 = vmatpush1.msra.mxu0 %v1973
        %2051 = vmatprep.subr.mxu0 0.0
        %2052 = vmatpush1.msra.mxu0 %v1974
        %2053 = vmatprep.subr.mxu0 0.0
        %2054 = vmatpush1.msra.mxu0 %v1975
        %2055 = vmatprep.subr.mxu0 0.0
        %2056 = vmatpush1.msra.mxu0 %v1976
        %2057 = vmatprep.subr.mxu0 0.0
        %2058 = vmatpush1.msra.mxu0 %v1977
        %2059 = vmatprep.subr.mxu0 0.0
        %2060 = vmatpush1.msra.mxu0 %v1978
        %2061 = vmatprep.subr.mxu0 0.0
        %2062 = vmatpush1.msra.mxu0 %v1979
        %2063 = vmatprep.subr.mxu0 0.0
        %2064 = vmatpush1.msra.mxu0 %v1980
        %2065 = vmatprep.subr.mxu0 0.0
        %2066 = vmatpush1.msra.mxu0 %v1981
        %2067 = vmatprep.subr.mxu0 0.0
        %2068 = vmatpush1.msra.mxu0 %v1982
        %2069 = vmatprep.subr.mxu0 0.0
        %2070 = vmatpush1.msra.mxu0 %v1983
        %2071 = vmatprep.subr.mxu0 0.0
        %2072 = vmatpush1.msra.mxu0 %v1984
        %2073 = vmatprep.subr.mxu0 0.0
        %2074 = vmatpush1.msra.mxu0 %v1985
        %2075 = vmatprep.subr.mxu0 0.0
        %2076 = vmatpush1.msra.mxu0 %v1986
        %2077 = vmatprep.subr.mxu0 0.0
        %2078 = vmatpush1.msra.mxu0 %v1987
        %2079 = vmatprep.subr.mxu0 0.0
        %2080 = vmatpush1.msra.mxu0 %v1988
        %2081 = vmatprep.subr.mxu0 0.0
        %2082 = vmatpush1.msra.mxu0 %v1989
        %2083 = vmatprep.subr.mxu0 0.0
        %2084 = vmatpush1.msra.mxu0 %v1990
        %2085 = vmatprep.subr.mxu0 0.0
        %2086 = vmatpush1.msra.mxu0 %v1991
        %2087 = vmatprep.subr.mxu0 0.0
        %2088 = vmatpush1.msra.mxu0 %v1992
        %2089 = vmatprep.subr.mxu0 0.0
        %2090 = vmatpush1.msra.mxu0 %v1993
        %2091 = vmatprep.subr.mxu0 0.0
        %2092 = vmatpush1.msra.mxu0 %v1994
        %2093 = vmatprep.subr.mxu0 0.0
        %2094 = vmatpush1.msra.mxu0 %v1995
        %2095 = vmatprep.subr.mxu0 0.0
        %2096 = vmatpush1.msra.mxu0 %v1996
        %2097 = vmatprep.subr.mxu0 0.0
        %2098 = vmatpush1.msra.mxu0 %v1997
        %2099 = vmatprep.subr.mxu0 0.0
        %2100 = vmatpush1.msra.mxu0 %v1998
        %2101 = vmatprep.subr.mxu0 0.0
        %2102 = vmatpush1.msra.mxu0 %v1999
        %2103 = vmatprep.mubr.f32.mxu0 %v1965
        %2104 = vmatmul.mubr.f32.gmra.mrb[0].mxu0 %v1964
        %v2105 = vpop.f32.mrb[0].mxu0
        %v2106 = vadd.f32 %v2037, %v2105
        %v2107 = vpop.f32.mrb[0].mxu0
        %2108 = vdwg.mxu0
        %2109 = vmatprep.subr.mxu0 0.0
        %2110 = vmatpush1.msra.mxu0 %v2000
        %2111 = vmatprep.subr.mxu0 0.0
        %2112 = vmatpush1.msra.mxu0 %v2001
        %2113 = vmatprep.subr.mxu0 0.0
        %2114 = vmatpush1.msra.mxu0 %v2002
        %2115 = vmatprep.subr.mxu0 0.0
        %2116 = vmatpush1.msra.mxu0 %v2003
        %2117 = vmatprep.subr.mxu0 0.0
        %2118 = vmatpush1.msra.mxu0 %v2004
        %2119 = vmatprep.subr.mxu0 0.0
        %2120 = vmatpush1.msra.mxu0 %v2005
        %2121 = vmatprep.subr.mxu0 0.0
        %2122 = vmatpush1.msra.mxu0 %v2006
        %2123 = vmatprep.subr.mxu0 0.0
        %2124 = vmatpush1.msra.mxu0 %v2007
        %2125 = vmatprep.subr.mxu0 0.0
        %2126 = vmatpush1.msra.mxu0 %v2008
        %2127 = vmatprep.subr.mxu0 0.0
        %2128 = vmatpush1.msra.mxu0 %v2009
        %2129 = vmatprep.subr.mxu0 0.0
        %2130 = vmatpush1.msra.mxu0 %v2010
        %2131 = vmatprep.subr.mxu0 0.0
        %2132 = vmatpush1.msra.mxu0 %v2011
        %2133 = vmatprep.subr.mxu0 0.0
        %2134 = vmatpush1.msra.mxu0 %v2012
        %2135 = vmatprep.subr.mxu0 0.0
        %2136 = vmatpush1.msra.mxu0 %v2013
        %2137 = vmatprep.subr.mxu0 0.0
        %2138 = vmatpush1.msra.mxu0 %v2014
        %2139 = vmatprep.subr.mxu0 0.0
        %2140 = vmatpush1.msra.mxu0 %v2015
        %2141 = vmatprep.subr.mxu0 0.0
        %2142 = vmatpush1.msra.mxu0 %v2016
        %2143 = vmatprep.subr.mxu0 0.0
        %2144 = vmatpush1.msra.mxu0 %v2017
        %2145 = vmatprep.subr.mxu0 0.0
        %2146 = vmatpush1.msra.mxu0 %v2018
        %2147 = vmatprep.subr.mxu0 0.0
        %2148 = vmatpush1.msra.mxu0 %v2019
        %2149 = vmatprep.subr.mxu0 0.0
        %2150 = vmatpush1.msra.mxu0 %v2020
        %2151 = vmatprep.subr.mxu0 0.0
        %2152 = vmatpush1.msra.mxu0 %v2021
        %2153 = vmatprep.subr.mxu0 0.0
        %2154 = vmatpush1.msra.mxu0 %v2022
        %2155 = vmatprep.subr.mxu0 0.0
        %2156 = vmatpush1.msra.mxu0 %v2023
        %2157 = vmatprep.subr.mxu0 0.0
        %2158 = vmatpush1.msra.mxu0 %v2024
        %2159 = vmatprep.subr.mxu0 0.0
        %2160 = vmatpush1.msra.mxu0 %v2025
        %2161 = vmatprep.subr.mxu0 0.0
        %2162 = vmatpush1.msra.mxu0 %v2026
        %2163 = vmatprep.subr.mxu0 0.0
        %2164 = vmatpush1.msra.mxu0 %v2027
        %2165 = vmatprep.subr.mxu0 0.0
        %2166 = vmatpush1.msra.mxu0 %v2028
        %2167 = vmatprep.subr.mxu0 0.0
        %2168 = vmatpush1.msra.mxu0 %v2029
        %2169 = vmatprep.subr.mxu0 0.0
        %2170 = vmatpush1.msra.mxu0 %v2030
        %2171 = vmatprep.subr.mxu0 0.0
        %2172 = vmatpush1.msra.mxu0 %v2031
        %2173 = vmatprep.mubr.f32.mxu0 %v1967
        %2174 = vmatmul.mubr.f32.gmra.mrb[0].mxu0 %v1966
        %v2175 = vpop.f32.mrb[0].mxu0
        %v2176 = vadd.f32 %v2106, %v2175
        %v2177 = vpop.f32.mrb[0].mxu0
        %2178 = vdwg.mxu0
        %v2179 = vadd.f32 %v1780, %v2176
        %v2180 = vld [vmem:[%s18] sm:$0x1]
        %v2181 = vld [vmem:[%s19] sm:$0x1]
        %v2182 = vsel %vm869, %v2179, 0.0
        %2183 = vadd.xlane.f32.xlu0 %v2182
        %v2184 = vpop.xlane.xlu0 %2183
        %v2185 = vmul.f32 %v2184, %v873
        %v2186 = vsub.f32 %v2179, %v2185
        %v2187 = vmul.f32 %v2186, %v2186
        %v2188 = vsel %vm869, %v2187, 0.0
        %2189 = vadd.xlane.f32.xlu0 %v2188
        %v2190 = vpop.xlane.xlu0 %2189
        %v2191 = vmul.f32 %v2190, %v873
        %v2192 = vadd.f32 %v2191, 1e-05
        %v2193 = vrsqrt.pop %v2192
        %v2194 = vmul.f32 %v2186, %v2193
        %v2196 = vlaneseq
        %v2197 = vshrl.u32 %v2196, 7
        %v2198 = vsub.s32 0, %v2197
        %v2199 = vrot.slane %v2180, %v2198
        %v2201 = vmul.f32 %v2194, %v2199
        %v2203 = vlaneseq
        %v2204 = vshrl.u32 %v2203, 7
        %v2205 = vsub.s32 0, %v2204
        %v2206 = vrot.slane %v2181, %v2205
        %v2208 = vadd.f32 %v2201, %v2206
        %s2209 = scalar_lea.vmem %s8, 32
        %v2210 = vld [vmem:[%s2209] sm:$0xff]
        %v2211 = vld [vmem:[%s2209 + $0x8] sm:$0xff]
        %v2212 = vld [vmem:[%s2209 + $0x10] sm:$0xff]
        %v2213 = vld [vmem:[%s2209 + $0x18] sm:$0xff]
        %s2214 = scalar_lea.vmem %s9, 1
        %v2215 = vld [vmem:[%s2214] sm:$0x1]
        %v2217 = vlaneseq
        %v2218 = vshrl.u32 %v2217, 7
        %v2219 = vsub.s32 0, %v2218
        %v2220 = vrot.slane %v2215, %v2219
        %v2223 = vsel %vm869, %v2208, 0
        %2225 = vmatprep.subr.mxu0 0.0
        %2226 = vmatpush1.msra.mxu0 %v2210
        %2227 = vmatprep.subr.mxu0 0.0
        %2228 = vmatpush1.msra.mxu0 %v2211
        %2229 = vmatprep.subr.mxu0 0.0
        %2230 = vmatpush1.msra.mxu0 %v2212
        %2231 = vmatprep.subr.mxu0 0.0
        %2232 = vmatpush1.msra.mxu0 %v2213
        %2233 = vmatprep.subr.mxu0 0.0
        %2234 = vmatpush1.msra.mxu0 0.0
        %2235 = vmatprep.subr.mxu0 0.0
        %2236 = vmatpush1.msra.mxu0 0.0
        %2237 = vmatprep.subr.mxu0 0.0
        %2238 = vmatpush1.msra.mxu0 0.0
        %2239 = vmatprep.subr.mxu0 0.0
        %2240 = vmatpush1.msra.mxu0 0.0
        %2241 = vmatprep.subr.mxu0 0.0
        %2242 = vmatpush1.msra.mxu0 0.0
        %2243 = vmatprep.subr.mxu0 0.0
        %2244 = vmatpush1.msra.mxu0 0.0
        %2245 = vmatprep.subr.mxu0 0.0
        %2246 = vmatpush1.msra.mxu0 0.0
        %2247 = vmatprep.subr.mxu0 0.0
        %2248 = vmatpush1.msra.mxu0 0.0
        %2249 = vmatprep.subr.mxu0 0.0
        %2250 = vmatpush1.msra.mxu0 0.0
        %2251 = vmatprep.subr.mxu0 0.0
        %2252 = vmatpush1.msra.mxu0 0.0
        %2253 = vmatprep.subr.mxu0 0.0
        %2254 = vmatpush1.msra.mxu0 0.0
        %2255 = vmatprep.subr.mxu0 0.0
        %2256 = vmatpush1.msra.mxu0 0.0
        %2257 = vmatprep.subr.mxu0 0.0
        %2258 = vmatpush1.msra.mxu0 0.0
        %2259 = vmatprep.subr.mxu0 0.0
        %2260 = vmatpush1.msra.mxu0 0.0
        %2261 = vmatprep.subr.mxu0 0.0
        %2262 = vmatpush1.msra.mxu0 0.0
        %2263 = vmatprep.subr.mxu0 0.0
        %2264 = vmatpush1.msra.mxu0 0.0
        %2265 = vmatprep.subr.mxu0 0.0
        %2266 = vmatpush1.msra.mxu0 0.0
        %2267 = vmatprep.subr.mxu0 0.0
        %2268 = vmatpush1.msra.mxu0 0.0
        %2269 = vmatprep.subr.mxu0 0.0
        %2270 = vmatpush1.msra.mxu0 0.0
        %2271 = vmatprep.subr.mxu0 0.0
        %2272 = vmatpush1.msra.mxu0 0.0
        %2273 = vmatprep.subr.mxu0 0.0
        %2274 = vmatpush1.msra.mxu0 0.0
        %2275 = vmatprep.subr.mxu0 0.0
        %2276 = vmatpush1.msra.mxu0 0.0
        %2277 = vmatprep.subr.mxu0 0.0
        %2278 = vmatpush1.msra.mxu0 0.0
        %2279 = vmatprep.subr.mxu0 0.0
        %2280 = vmatpush1.msra.mxu0 0.0
        %2281 = vmatprep.subr.mxu0 0.0
        %2282 = vmatpush1.msra.mxu0 0.0
        %2283 = vmatprep.subr.mxu0 0.0
        %2284 = vmatpush1.msra.mxu0 0.0
        %2285 = vmatprep.subr.mxu0 0.0
        %2286 = vmatpush1.msra.mxu0 0.0
        %2287 = vmatprep.subr.mxu0 0.0
        %2288 = vmatpush1.msra.mxu0 0.0
        %2289 = vmatprep.mubr.f32.mxu0 0.0
        %2290 = vmatmul.mubr.f32.gmra.mrb[0].mxu0 %v2223
        %v2291 = vpop.f32.mrb[0].mxu0
        %v2292 = vadd.f32 %v2220, %v2291
        %v2293 = vpop.f32.mrb[0].mxu0
        %2294 = vdwg.mxu0
        %2296 = vrot.lane.b32.xlu0 %v2292, 96
        %v2297 = vpop.permute.xlu0 %2296
        %v2298 = vsel %vm994, %v2292, 0
        %v2300 = vsel %vm994, %v2297, 0
        %2302 = vmatprep.subr.mxu0 0.0
        %2303 = vmatpush1.xpose.msra.mxu0 %v2300
        %2304 = vmatprep.subr.mxu0 0.0
        %2305 = vmatpush1.xpose.msra.mxu0 0.0
        %2306 = vmatprep.subr.mxu0 0.0
        %2307 = vmatpush1.xpose.msra.mxu0 0.0
        %2308 = vmatprep.subr.mxu0 0.0
        %2309 = vmatpush1.xpose.msra.mxu0 0.0
        %2310 = vmatprep.subr.mxu0 0.0
        %2311 = vmatpush1.xpose.msra.mxu0 0.0
        %2312 = vmatprep.subr.mxu0 0.0
        %2313 = vmatpush1.xpose.msra.mxu0 0.0
        %2314 = vmatprep.subr.mxu0 0.0
        %2315 = vmatpush1.xpose.msra.mxu0 0.0
        %2316 = vmatprep.subr.mxu0 0.0
        %2317 = vmatpush1.xpose.msra.mxu0 0.0
        %2318 = vmatprep.subr.mxu0 0.0
        %2319 = vmatpush1.xpose.msra.mxu0 0.0
        %2320 = vmatprep.subr.mxu0 0.0
        %2321 = vmatpush1.xpose.msra.mxu0 0.0
        %2322 = vmatprep.subr.mxu0 0.0
        %2323 = vmatpush1.xpose.msra.mxu0 0.0
        %2324 = vmatprep.subr.mxu0 0.0
        %2325 = vmatpush1.xpose.msra.mxu0 0.0
        %2326 = vmatprep.subr.mxu0 0.0
        %2327 = vmatpush1.xpose.msra.mxu0 0.0
        %2328 = vmatprep.subr.mxu0 0.0
        %2329 = vmatpush1.xpose.msra.mxu0 0.0
        %2330 = vmatprep.subr.mxu0 0.0
        %2331 = vmatpush1.xpose.msra.mxu0 0.0
        %2332 = vmatprep.subr.mxu0 0.0
        %2333 = vmatpush1.xpose.msra.mxu0 0.0
        %2334 = vmatprep.subr.mxu0 0.0
        %2335 = vmatpush1.xpose.msra.mxu0 0.0
        %2336 = vmatprep.subr.mxu0 0.0
        %2337 = vmatpush1.xpose.msra.mxu0 0.0
        %2338 = vmatprep.subr.mxu0 0.0
        %2339 = vmatpush1.xpose.msra.mxu0 0.0
        %2340 = vmatprep.subr.mxu0 0.0
        %2341 = vmatpush1.xpose.msra.mxu0 0.0
        %2342 = vmatprep.subr.mxu0 0.0
        %2343 = vmatpush1.xpose.msra.mxu0 0.0
        %2344 = vmatprep.subr.mxu0 0.0
        %2345 = vmatpush1.xpose.msra.mxu0 0.0
        %2346 = vmatprep.subr.mxu0 0.0
        %2347 = vmatpush1.xpose.msra.mxu0 0.0
        %2348 = vmatprep.subr.mxu0 0.0
        %2349 = vmatpush1.xpose.msra.mxu0 0.0
        %2350 = vmatprep.subr.mxu0 0.0
        %2351 = vmatpush1.xpose.msra.mxu0 0.0
        %2352 = vmatprep.subr.mxu0 0.0
        %2353 = vmatpush1.xpose.msra.mxu0 0.0
        %2354 = vmatprep.subr.mxu0 0.0
        %2355 = vmatpush1.xpose.msra.mxu0 0.0
        %2356 = vmatprep.subr.mxu0 0.0
        %2357 = vmatpush1.xpose.msra.mxu0 0.0
        %2358 = vmatprep.subr.mxu0 0.0
        %2359 = vmatpush1.xpose.msra.mxu0 0.0
        %2360 = vmatprep.subr.mxu0 0.0
        %2361 = vmatpush1.xpose.msra.mxu0 0.0
        %2362 = vmatprep.subr.mxu0 0.0
        %2363 = vmatpush1.xpose.msra.mxu0 0.0
        %2364 = vmatprep.subr.mxu0 0.0
        %2365 = vmatpush1.xpose.msra.mxu0 0.0
        %2366 = vmatprep.mubr.f32.mxu0 0.0
        %2367 = vmatmul.mubr.f32.gmra.mrb[0].mxu0 %v2298
        %v2368 = vpop.f32.mrb[0].mxu0
        %v2369 = vadd.f32 %v905, %v2368
        %v2370 = vpop.f32.mrb[0].mxu0
        %2371 = vdwg.mxu0
        %v2372 = vsel %vm994, %v2369, -inf
        %2373 = vmax.xlane.f32.xlu0 %v2372
        %v2374 = vpop.xlane.xlu0 %2373
        %v2375 = vsub.f32 %v2369, %v2374
        %v2376 = vmul.f32 %v2375, 1.442695
        %v2377 = vpow.pop %v2376
        %v2378 = vsel %vm994, %v2377, 0.0
        %2379 = vadd.xlane.f32.xlu0 %v2378
        %v2380 = vpop.xlane.xlu0 %2379
        %v2381 = vrcp.pop %v2380
        %v2382 = vmul.f32 %v2377, %v2381
        %2383 = vrot.lane.b32.xlu0 %v2292, 64
        %v2384 = vpop.permute.xlu0 %2383
        %v2387 = vsel %vm994, %v2382, 0
        %2389 = vmatprep.subr.mxu0 0.0
        %2390 = vmatpush1.msra.mxu0 %v2384
        %2391 = vmatprep.subr.mxu0 0.0
        %2392 = vmatpush1.msra.mxu0 0.0
        %2393 = vmatprep.subr.mxu0 0.0
        %2394 = vmatpush1.msra.mxu0 0.0
        %2395 = vmatprep.subr.mxu0 0.0
        %2396 = vmatpush1.msra.mxu0 0.0
        %2397 = vmatprep.subr.mxu0 0.0
        %2398 = vmatpush1.msra.mxu0 0.0
        %2399 = vmatprep.subr.mxu0 0.0
        %2400 = vmatpush1.msra.mxu0 0.0
        %2401 = vmatprep.subr.mxu0 0.0
        %2402 = vmatpush1.msra.mxu0 0.0
        %2403 = vmatprep.subr.mxu0 0.0
        %2404 = vmatpush1.msra.mxu0 0.0
        %2405 = vmatprep.subr.mxu0 0.0
        %2406 = vmatpush1.msra.mxu0 0.0
        %2407 = vmatprep.subr.mxu0 0.0
        %2408 = vmatpush1.msra.mxu0 0.0
        %2409 = vmatprep.subr.mxu0 0.0
        %2410 = vmatpush1.msra.mxu0 0.0
        %2411 = vmatprep.subr.mxu0 0.0
        %2412 = vmatpush1.msra.mxu0 0.0
        %2413 = vmatprep.subr.mxu0 0.0
        %2414 = vmatpush1.msra.mxu0 0.0
        %2415 = vmatprep.subr.mxu0 0.0
        %2416 = vmatpush1.msra.mxu0 0.0
        %2417 = vmatprep.subr.mxu0 0.0
        %2418 = vmatpush1.msra.mxu0 0.0
        %2419 = vmatprep.subr.mxu0 0.0
        %2420 = vmatpush1.msra.mxu0 0.0
        %2421 = vmatprep.subr.mxu0 0.0
        %2422 = vmatpush1.msra.mxu0 0.0
        %2423 = vmatprep.subr.mxu0 0.0
        %2424 = vmatpush1.msra.mxu0 0.0
        %2425 = vmatprep.subr.mxu0 0.0
        %2426 = vmatpush1.msra.mxu0 0.0
        %2427 = vmatprep.subr.mxu0 0.0
        %2428 = vmatpush1.msra.mxu0 0.0
        %2429 = vmatprep.subr.mxu0 0.0
        %2430 = vmatpush1.msra.mxu0 0.0
        %2431 = vmatprep.subr.mxu0 0.0
        %2432 = vmatpush1.msra.mxu0 0.0
        %2433 = vmatprep.subr.mxu0 0.0
        %2434 = vmatpush1.msra.mxu0 0.0
        %2435 = vmatprep.subr.mxu0 0.0
        %2436 = vmatpush1.msra.mxu0 0.0
        %2437 = vmatprep.subr.mxu0 0.0
        %2438 = vmatpush1.msra.mxu0 0.0
        %2439 = vmatprep.subr.mxu0 0.0
        %2440 = vmatpush1.msra.mxu0 0.0
        %2441 = vmatprep.subr.mxu0 0.0
        %2442 = vmatpush1.msra.mxu0 0.0
        %2443 = vmatprep.subr.mxu0 0.0
        %2444 = vmatpush1.msra.mxu0 0.0
        %2445 = vmatprep.subr.mxu0 0.0
        %2446 = vmatpush1.msra.mxu0 0.0
        %2447 = vmatprep.subr.mxu0 0.0
        %2448 = vmatpush1.msra.mxu0 0.0
        %2449 = vmatprep.subr.mxu0 0.0
        %2450 = vmatpush1.msra.mxu0 0.0
        %2451 = vmatprep.subr.mxu0 0.0
        %2452 = vmatpush1.msra.mxu0 0.0
        %2453 = vmatprep.mubr.f32.mxu0 0.0
        %2454 = vmatmul.mubr.f32.gmra.mrb[0].mxu0 %v2387
        %v2455 = vpop.f32.mrb[0].mxu0
        %v2456 = vadd.f32 0.0, %v2455
        %v2457 = vpop.f32.mrb[0].mxu0
        %2458 = vdwg.mxu0
        %2459 = vrot.lane.b32.xlu0 %v2292, 120
        %v2460 = vpop.permute.xlu0 %2459
        %2461 = vrot.lane.b32.xlu0 %v2292, 88
        %v2462 = vpop.permute.xlu0 %2461
        %v2463 = vsel %vm994, %v2460, 0
        %v2465 = vsel %vm994, %v2462, 0
        %2467 = vmatprep.subr.mxu0 0.0
        %2468 = vmatpush1.xpose.msra.mxu0 %v2465
        %2469 = vmatprep.subr.mxu0 0.0
        %2470 = vmatpush1.xpose.msra.mxu0 0.0
        %2471 = vmatprep.subr.mxu0 0.0
        %2472 = vmatpush1.xpose.msra.mxu0 0.0
        %2473 = vmatprep.subr.mxu0 0.0
        %2474 = vmatpush1.xpose.msra.mxu0 0.0
        %2475 = vmatprep.subr.mxu0 0.0
        %2476 = vmatpush1.xpose.msra.mxu0 0.0
        %2477 = vmatprep.subr.mxu0 0.0
        %2478 = vmatpush1.xpose.msra.mxu0 0.0
        %2479 = vmatprep.subr.mxu0 0.0
        %2480 = vmatpush1.xpose.msra.mxu0 0.0
        %2481 = vmatprep.subr.mxu0 0.0
        %2482 = vmatpush1.xpose.msra.mxu0 0.0
        %2483 = vmatprep.subr.mxu0 0.0
        %2484 = vmatpush1.xpose.msra.mxu0 0.0
        %2485 = vmatprep.subr.mxu0 0.0
        %2486 = vmatpush1.xpose.msra.mxu0 0.0
        %2487 = vmatprep.subr.mxu0 0.0
        %2488 = vmatpush1.xpose.msra.mxu0 0.0
        %2489 = vmatprep.subr.mxu0 0.0
        %2490 = vmatpush1.xpose.msra.mxu0 0.0
        %2491 = vmatprep.subr.mxu0 0.0
        %2492 = vmatpush1.xpose.msra.mxu0 0.0
        %2493 = vmatprep.subr.mxu0 0.0
        %2494 = vmatpush1.xpose.msra.mxu0 0.0
        %2495 = vmatprep.subr.mxu0 0.0
        %2496 = vmatpush1.xpose.msra.mxu0 0.0
        %2497 = vmatprep.subr.mxu0 0.0
        %2498 = vmatpush1.xpose.msra.mxu0 0.0
        %2499 = vmatprep.subr.mxu0 0.0
        %2500 = vmatpush1.xpose.msra.mxu0 0.0
        %2501 = vmatprep.subr.mxu0 0.0
        %2502 = vmatpush1.xpose.msra.mxu0 0.0
        %2503 = vmatprep.subr.mxu0 0.0
        %2504 = vmatpush1.xpose.msra.mxu0 0.0
        %2505 = vmatprep.subr.mxu0 0.0
        %2506 = vmatpush1.xpose.msra.mxu0 0.0
        %2507 = vmatprep.subr.mxu0 0.0
        %2508 = vmatpush1.xpose.msra.mxu0 0.0
        %2509 = vmatprep.subr.mxu0 0.0
        %2510 = vmatpush1.xpose.msra.mxu0 0.0
        %2511 = vmatprep.subr.mxu0 0.0
        %2512 = vmatpush1.xpose.msra.mxu0 0.0
        %2513 = vmatprep.subr.mxu0 0.0
        %2514 = vmatpush1.xpose.msra.mxu0 0.0
        %2515 = vmatprep.subr.mxu0 0.0
        %2516 = vmatpush1.xpose.msra.mxu0 0.0
        %2517 = vmatprep.subr.mxu0 0.0
        %2518 = vmatpush1.xpose.msra.mxu0 0.0
        %2519 = vmatprep.subr.mxu0 0.0
        %2520 = vmatpush1.xpose.msra.mxu0 0.0
        %2521 = vmatprep.subr.mxu0 0.0
        %2522 = vmatpush1.xpose.msra.mxu0 0.0
        %2523 = vmatprep.subr.mxu0 0.0
        %2524 = vmatpush1.xpose.msra.mxu0 0.0
        %2525 = vmatprep.subr.mxu0 0.0
        %2526 = vmatpush1.xpose.msra.mxu0 0.0
        %2527 = vmatprep.subr.mxu0 0.0
        %2528 = vmatpush1.xpose.msra.mxu0 0.0
        %2529 = vmatprep.subr.mxu0 0.0
        %2530 = vmatpush1.xpose.msra.mxu0 0.0
        %2531 = vmatprep.mubr.f32.mxu0 0.0
        %2532 = vmatmul.mubr.f32.gmra.mrb[0].mxu0 %v2463
        %v2533 = vpop.f32.mrb[0].mxu0
        %v2534 = vadd.f32 %v905, %v2533
        %v2535 = vpop.f32.mrb[0].mxu0
        %2536 = vdwg.mxu0
        %v2537 = vsel %vm994, %v2534, -inf
        %2538 = vmax.xlane.f32.xlu0 %v2537
        %v2539 = vpop.xlane.xlu0 %2538
        %v2540 = vsub.f32 %v2534, %v2539
        %v2541 = vmul.f32 %v2540, 1.442695
        %v2542 = vpow.pop %v2541
        %v2543 = vsel %vm994, %v2542, 0.0
        %2544 = vadd.xlane.f32.xlu0 %v2543
        %v2545 = vpop.xlane.xlu0 %2544
        %v2546 = vrcp.pop %v2545
        %v2547 = vmul.f32 %v2542, %v2546
        %2548 = vrot.lane.b32.xlu0 %v2292, 56
        %v2549 = vpop.permute.xlu0 %2548
        %v2552 = vsel %vm994, %v2547, 0
        %2554 = vmatprep.subr.mxu0 0.0
        %2555 = vmatpush1.msra.mxu0 %v2549
        %2556 = vmatprep.subr.mxu0 0.0
        %2557 = vmatpush1.msra.mxu0 0.0
        %2558 = vmatprep.subr.mxu0 0.0
        %2559 = vmatpush1.msra.mxu0 0.0
        %2560 = vmatprep.subr.mxu0 0.0
        %2561 = vmatpush1.msra.mxu0 0.0
        %2562 = vmatprep.subr.mxu0 0.0
        %2563 = vmatpush1.msra.mxu0 0.0
        %2564 = vmatprep.subr.mxu0 0.0
        %2565 = vmatpush1.msra.mxu0 0.0
        %2566 = vmatprep.subr.mxu0 0.0
        %2567 = vmatpush1.msra.mxu0 0.0
        %2568 = vmatprep.subr.mxu0 0.0
        %2569 = vmatpush1.msra.mxu0 0.0
        %2570 = vmatprep.subr.mxu0 0.0
        %2571 = vmatpush1.msra.mxu0 0.0
        %2572 = vmatprep.subr.mxu0 0.0
        %2573 = vmatpush1.msra.mxu0 0.0
        %2574 = vmatprep.subr.mxu0 0.0
        %2575 = vmatpush1.msra.mxu0 0.0
        %2576 = vmatprep.subr.mxu0 0.0
        %2577 = vmatpush1.msra.mxu0 0.0
        %2578 = vmatprep.subr.mxu0 0.0
        %2579 = vmatpush1.msra.mxu0 0.0
        %2580 = vmatprep.subr.mxu0 0.0
        %2581 = vmatpush1.msra.mxu0 0.0
        %2582 = vmatprep.subr.mxu0 0.0
        %2583 = vmatpush1.msra.mxu0 0.0
        %2584 = vmatprep.subr.mxu0 0.0
        %2585 = vmatpush1.msra.mxu0 0.0
        %2586 = vmatprep.subr.mxu0 0.0
        %2587 = vmatpush1.msra.mxu0 0.0
        %2588 = vmatprep.subr.mxu0 0.0
        %2589 = vmatpush1.msra.mxu0 0.0
        %2590 = vmatprep.subr.mxu0 0.0
        %2591 = vmatpush1.msra.mxu0 0.0
        %2592 = vmatprep.subr.mxu0 0.0
        %2593 = vmatpush1.msra.mxu0 0.0
        %2594 = vmatprep.subr.mxu0 0.0
        %2595 = vmatpush1.msra.mxu0 0.0
        %2596 = vmatprep.subr.mxu0 0.0
        %2597 = vmatpush1.msra.mxu0 0.0
        %2598 = vmatprep.subr.mxu0 0.0
        %2599 = vmatpush1.msra.mxu0 0.0
        %2600 = vmatprep.subr.mxu0 0.0
        %2601 = vmatpush1.msra.mxu0 0.0
        %2602 = vmatprep.subr.mxu0 0.0
        %2603 = vmatpush1.msra.mxu0 0.0
        %2604 = vmatprep.subr.mxu0 0.0
        %2605 = vmatpush1.msra.mxu0 0.0
        %2606 = vmatprep.subr.mxu0 0.0
        %2607 = vmatpush1.msra.mxu0 0.0
        %2608 = vmatprep.subr.mxu0 0.0
        %2609 = vmatpush1.msra.mxu0 0.0
        %2610 = vmatprep.subr.mxu0 0.0
        %2611 = vmatpush1.msra.mxu0 0.0
        %2612 = vmatprep.subr.mxu0 0.0
        %2613 = vmatpush1.msra.mxu0 0.0
        %2614 = vmatprep.subr.mxu0 0.0
        %2615 = vmatpush1.msra.mxu0 0.0
        %2616 = vmatprep.subr.mxu0 0.0
        %2617 = vmatpush1.msra.mxu0 0.0
        %2618 = vmatprep.mubr.f32.mxu0 0.0
        %2619 = vmatmul.mubr.f32.gmra.mrb[0].mxu0 %v2552
        %v2620 = vpop.f32.mrb[0].mxu0
        %v2621 = vadd.f32 0.0, %v2620
        %v2622 = vpop.f32.mrb[0].mxu0
        %2623 = vdwg.mxu0
        %2624 = vrot.lane.b32.xlu0 %v2292, 112
        %v2625 = vpop.permute.xlu0 %2624
        %2626 = vrot.lane.b32.xlu0 %v2292, 80
        %v2627 = vpop.permute.xlu0 %2626
        %v2628 = vsel %vm994, %v2625, 0
        %v2630 = vsel %vm994, %v2627, 0
        %2632 = vmatprep.subr.mxu0 0.0
        %2633 = vmatpush1.xpose.msra.mxu0 %v2630
        %2634 = vmatprep.subr.mxu0 0.0
        %2635 = vmatpush1.xpose.msra.mxu0 0.0
        %2636 = vmatprep.subr.mxu0 0.0
        %2637 = vmatpush1.xpose.msra.mxu0 0.0
        %2638 = vmatprep.subr.mxu0 0.0
        %2639 = vmatpush1.xpose.msra.mxu0 0.0
        %2640 = vmatprep.subr.mxu0 0.0
        %2641 = vmatpush1.xpose.msra.mxu0 0.0
        %2642 = vmatprep.subr.mxu0 0.0
        %2643 = vmatpush1.xpose.msra.mxu0 0.0
        %2644 = vmatprep.subr.mxu0 0.0
        %2645 = vmatpush1.xpose.msra.mxu0 0.0
        %2646 = vmatprep.subr.mxu0 0.0
        %2647 = vmatpush1.xpose.msra.mxu0 0.0
        %2648 = vmatprep.subr.mxu0 0.0
        %2649 = vmatpush1.xpose.msra.mxu0 0.0
        %2650 = vmatprep.subr.mxu0 0.0
        %2651 = vmatpush1.xpose.msra.mxu0 0.0
        %2652 = vmatprep.subr.mxu0 0.0
        %2653 = vmatpush1.xpose.msra.mxu0 0.0
        %2654 = vmatprep.subr.mxu0 0.0
        %2655 = vmatpush1.xpose.msra.mxu0 0.0
        %2656 = vmatprep.subr.mxu0 0.0
        %2657 = vmatpush1.xpose.msra.mxu0 0.0
        %2658 = vmatprep.subr.mxu0 0.0
        %2659 = vmatpush1.xpose.msra.mxu0 0.0
        %2660 = vmatprep.subr.mxu0 0.0
        %2661 = vmatpush1.xpose.msra.mxu0 0.0
        %2662 = vmatprep.subr.mxu0 0.0
        %2663 = vmatpush1.xpose.msra.mxu0 0.0
        %2664 = vmatprep.subr.mxu0 0.0
        %2665 = vmatpush1.xpose.msra.mxu0 0.0
        %2666 = vmatprep.subr.mxu0 0.0
        %2667 = vmatpush1.xpose.msra.mxu0 0.0
        %2668 = vmatprep.subr.mxu0 0.0
        %2669 = vmatpush1.xpose.msra.mxu0 0.0
        %2670 = vmatprep.subr.mxu0 0.0
        %2671 = vmatpush1.xpose.msra.mxu0 0.0
        %2672 = vmatprep.subr.mxu0 0.0
        %2673 = vmatpush1.xpose.msra.mxu0 0.0
        %2674 = vmatprep.subr.mxu0 0.0
        %2675 = vmatpush1.xpose.msra.mxu0 0.0
        %2676 = vmatprep.subr.mxu0 0.0
        %2677 = vmatpush1.xpose.msra.mxu0 0.0
        %2678 = vmatprep.subr.mxu0 0.0
        %2679 = vmatpush1.xpose.msra.mxu0 0.0
        %2680 = vmatprep.subr.mxu0 0.0
        %2681 = vmatpush1.xpose.msra.mxu0 0.0
        %2682 = vmatprep.subr.mxu0 0.0
        %2683 = vmatpush1.xpose.msra.mxu0 0.0
        %2684 = vmatprep.subr.mxu0 0.0
        %2685 = vmatpush1.xpose.msra.mxu0 0.0
        %2686 = vmatprep.subr.mxu0 0.0
        %2687 = vmatpush1.xpose.msra.mxu0 0.0
        %2688 = vmatprep.subr.mxu0 0.0
        %2689 = vmatpush1.xpose.msra.mxu0 0.0
        %2690 = vmatprep.subr.mxu0 0.0
        %2691 = vmatpush1.xpose.msra.mxu0 0.0
        %2692 = vmatprep.subr.mxu0 0.0
        %2693 = vmatpush1.xpose.msra.mxu0 0.0
        %2694 = vmatprep.subr.mxu0 0.0
        %2695 = vmatpush1.xpose.msra.mxu0 0.0
        %2696 = vmatprep.mubr.f32.mxu0 0.0
        %2697 = vmatmul.mubr.f32.gmra.mrb[0].mxu0 %v2628
        %v2698 = vpop.f32.mrb[0].mxu0
        %v2699 = vadd.f32 %v905, %v2698
        %v2700 = vpop.f32.mrb[0].mxu0
        %2701 = vdwg.mxu0
        %v2702 = vsel %vm994, %v2699, -inf
        %2703 = vmax.xlane.f32.xlu0 %v2702
        %v2704 = vpop.xlane.xlu0 %2703
        %v2705 = vsub.f32 %v2699, %v2704
        %v2706 = vmul.f32 %v2705, 1.442695
        %v2707 = vpow.pop %v2706
        %v2708 = vsel %vm994, %v2707, 0.0
        %2709 = vadd.xlane.f32.xlu0 %v2708
        %v2710 = vpop.xlane.xlu0 %2709
        %v2711 = vrcp.pop %v2710
        %v2712 = vmul.f32 %v2707, %v2711
        %2713 = vrot.lane.b32.xlu0 %v2292, 48
        %v2714 = vpop.permute.xlu0 %2713
        %v2717 = vsel %vm994, %v2712, 0
        %2719 = vmatprep.subr.mxu0 0.0
        %2720 = vmatpush1.msra.mxu0 %v2714
        %2721 = vmatprep.subr.mxu0 0.0
        %2722 = vmatpush1.msra.mxu0 0.0
        %2723 = vmatprep.subr.mxu0 0.0
        %2724 = vmatpush1.msra.mxu0 0.0
        %2725 = vmatprep.subr.mxu0 0.0
        %2726 = vmatpush1.msra.mxu0 0.0
        %2727 = vmatprep.subr.mxu0 0.0
        %2728 = vmatpush1.msra.mxu0 0.0
        %2729 = vmatprep.subr.mxu0 0.0
        %2730 = vmatpush1.msra.mxu0 0.0
        %2731 = vmatprep.subr.mxu0 0.0
        %2732 = vmatpush1.msra.mxu0 0.0
        %2733 = vmatprep.subr.mxu0 0.0
        %2734 = vmatpush1.msra.mxu0 0.0
        %2735 = vmatprep.subr.mxu0 0.0
        %2736 = vmatpush1.msra.mxu0 0.0
        %2737 = vmatprep.subr.mxu0 0.0
        %2738 = vmatpush1.msra.mxu0 0.0
        %2739 = vmatprep.subr.mxu0 0.0
        %2740 = vmatpush1.msra.mxu0 0.0
        %2741 = vmatprep.subr.mxu0 0.0
        %2742 = vmatpush1.msra.mxu0 0.0
        %2743 = vmatprep.subr.mxu0 0.0
        %2744 = vmatpush1.msra.mxu0 0.0
        %2745 = vmatprep.subr.mxu0 0.0
        %2746 = vmatpush1.msra.mxu0 0.0
        %2747 = vmatprep.subr.mxu0 0.0
        %2748 = vmatpush1.msra.mxu0 0.0
        %2749 = vmatprep.subr.mxu0 0.0
        %2750 = vmatpush1.msra.mxu0 0.0
        %2751 = vmatprep.subr.mxu0 0.0
        %2752 = vmatpush1.msra.mxu0 0.0
        %2753 = vmatprep.subr.mxu0 0.0
        %2754 = vmatpush1.msra.mxu0 0.0
        %2755 = vmatprep.subr.mxu0 0.0
        %2756 = vmatpush1.msra.mxu0 0.0
        %2757 = vmatprep.subr.mxu0 0.0
        %2758 = vmatpush1.msra.mxu0 0.0
        %2759 = vmatprep.subr.mxu0 0.0
        %2760 = vmatpush1.msra.mxu0 0.0
        %2761 = vmatprep.subr.mxu0 0.0
        %2762 = vmatpush1.msra.mxu0 0.0
        %2763 = vmatprep.subr.mxu0 0.0
        %2764 = vmatpush1.msra.mxu0 0.0
        %2765 = vmatprep.subr.mxu0 0.0
        %2766 = vmatpush1.msra.mxu0 0.0
        %2767 = vmatprep.subr.mxu0 0.0
        %2768 = vmatpush1.msra.mxu0 0.0
        %2769 = vmatprep.subr.mxu0 0.0
        %2770 = vmatpush1.msra.mxu0 0.0
        %2771 = vmatprep.subr.mxu0 0.0
        %2772 = vmatpush1.msra.mxu0 0.0
        %2773 = vmatprep.subr.mxu0 0.0
        %2774 = vmatpush1.msra.mxu0 0.0
        %2775 = vmatprep.subr.mxu0 0.0
        %2776 = vmatpush1.msra.mxu0 0.0
        %2777 = vmatprep.subr.mxu0 0.0
        %2778 = vmatpush1.msra.mxu0 0.0
        %2779 = vmatprep.subr.mxu0 0.0
        %2780 = vmatpush1.msra.mxu0 0.0
        %2781 = vmatprep.subr.mxu0 0.0
        %2782 = vmatpush1.msra.mxu0 0.0
        %2783 = vmatprep.mubr.f32.mxu0 0.0
        %2784 = vmatmul.mubr.f32.gmra.mrb[0].mxu0 %v2717
        %v2785 = vpop.f32.mrb[0].mxu0
        %v2786 = vadd.f32 0.0, %v2785
        %v2787 = vpop.f32.mrb[0].mxu0
        %2788 = vdwg.mxu0
        %2789 = vrot.lane.b32.xlu0 %v2292, 104
        %v2790 = vpop.permute.xlu0 %2789
        %2791 = vrot.lane.b32.xlu0 %v2292, 72
        %v2792 = vpop.permute.xlu0 %2791
        %v2793 = vsel %vm994, %v2790, 0
        %v2795 = vsel %vm994, %v2792, 0
        %2797 = vmatprep.subr.mxu0 0.0
        %2798 = vmatpush1.xpose.msra.mxu0 %v2795
        %2799 = vmatprep.subr.mxu0 0.0
        %2800 = vmatpush1.xpose.msra.mxu0 0.0
        %2801 = vmatprep.subr.mxu0 0.0
        %2802 = vmatpush1.xpose.msra.mxu0 0.0
        %2803 = vmatprep.subr.mxu0 0.0
        %2804 = vmatpush1.xpose.msra.mxu0 0.0
        %2805 = vmatprep.subr.mxu0 0.0
        %2806 = vmatpush1.xpose.msra.mxu0 0.0
        %2807 = vmatprep.subr.mxu0 0.0
        %2808 = vmatpush1.xpose.msra.mxu0 0.0
        %2809 = vmatprep.subr.mxu0 0.0
        %2810 = vmatpush1.xpose.msra.mxu0 0.0
        %2811 = vmatprep.subr.mxu0 0.0
        %2812 = vmatpush1.xpose.msra.mxu0 0.0
        %2813 = vmatprep.subr.mxu0 0.0
        %2814 = vmatpush1.xpose.msra.mxu0 0.0
        %2815 = vmatprep.subr.mxu0 0.0
        %2816 = vmatpush1.xpose.msra.mxu0 0.0
        %2817 = vmatprep.subr.mxu0 0.0
        %2818 = vmatpush1.xpose.msra.mxu0 0.0
        %2819 = vmatprep.subr.mxu0 0.0
        %2820 = vmatpush1.xpose.msra.mxu0 0.0
        %2821 = vmatprep.subr.mxu0 0.0
        %2822 = vmatpush1.xpose.msra.mxu0 0.0
        %2823 = vmatprep.subr.mxu0 0.0
        %2824 = vmatpush1.xpose.msra.mxu0 0.0
        %2825 = vmatprep.subr.mxu0 0.0
        %2826 = vmatpush1.xpose.msra.mxu0 0.0
        %2827 = vmatprep.subr.mxu0 0.0
        %2828 = vmatpush1.xpose.msra.mxu0 0.0
        %2829 = vmatprep.subr.mxu0 0.0
        %2830 = vmatpush1.xpose.msra.mxu0 0.0
        %2831 = vmatprep.subr.mxu0 0.0
        %2832 = vmatpush1.xpose.msra.mxu0 0.0
        %2833 = vmatprep.subr.mxu0 0.0
        %2834 = vmatpush1.xpose.msra.mxu0 0.0
        %2835 = vmatprep.subr.mxu0 0.0
        %2836 = vmatpush1.xpose.msra.mxu0 0.0
        %2837 = vmatprep.subr.mxu0 0.0
        %2838 = vmatpush1.xpose.msra.mxu0 0.0
        %2839 = vmatprep.subr.mxu0 0.0
        %2840 = vmatpush1.xpose.msra.mxu0 0.0
        %2841 = vmatprep.subr.mxu0 0.0
        %2842 = vmatpush1.xpose.msra.mxu0 0.0
        %2843 = vmatprep.subr.mxu0 0.0
        %2844 = vmatpush1.xpose.msra.mxu0 0.0
        %2845 = vmatprep.subr.mxu0 0.0
        %2846 = vmatpush1.xpose.msra.mxu0 0.0
        %2847 = vmatprep.subr.mxu0 0.0
        %2848 = vmatpush1.xpose.msra.mxu0 0.0
        %2849 = vmatprep.subr.mxu0 0.0
        %2850 = vmatpush1.xpose.msra.mxu0 0.0
        %2851 = vmatprep.subr.mxu0 0.0
        %2852 = vmatpush1.xpose.msra.mxu0 0.0
        %2853 = vmatprep.subr.mxu0 0.0
        %2854 = vmatpush1.xpose.msra.mxu0 0.0
        %2855 = vmatprep.subr.mxu0 0.0
        %2856 = vmatpush1.xpose.msra.mxu0 0.0
        %2857 = vmatprep.subr.mxu0 0.0
        %2858 = vmatpush1.xpose.msra.mxu0 0.0
        %2859 = vmatprep.subr.mxu0 0.0
        %2860 = vmatpush1.xpose.msra.mxu0 0.0
        %2861 = vmatprep.mubr.f32.mxu0 0.0
        %2862 = vmatmul.mubr.f32.gmra.mrb[0].mxu0 %v2793
        %v2863 = vpop.f32.mrb[0].mxu0
        %v2864 = vadd.f32 %v905, %v2863
        %v2865 = vpop.f32.mrb[0].mxu0
        %2866 = vdwg.mxu0
        %v2867 = vsel %vm994, %v2864, -inf
        %2868 = vmax.xlane.f32.xlu0 %v2867
        %v2869 = vpop.xlane.xlu0 %2868
        %v2870 = vsub.f32 %v2864, %v2869
        %v2871 = vmul.f32 %v2870, 1.442695
        %v2872 = vpow.pop %v2871
        %v2873 = vsel %vm994, %v2872, 0.0
        %2874 = vadd.xlane.f32.xlu0 %v2873
        %v2875 = vpop.xlane.xlu0 %2874
        %v2876 = vrcp.pop %v2875
        %v2877 = vmul.f32 %v2872, %v2876
        %2878 = vrot.lane.b32.xlu0 %v2292, 40
        %v2879 = vpop.permute.xlu0 %2878
        %v2882 = vsel %vm994, %v2877, 0
        %2884 = vmatprep.subr.mxu0 0.0
        %2885 = vmatpush1.msra.mxu0 %v2879
        %2886 = vmatprep.subr.mxu0 0.0
        %2887 = vmatpush1.msra.mxu0 0.0
        %2888 = vmatprep.subr.mxu0 0.0
        %2889 = vmatpush1.msra.mxu0 0.0
        %2890 = vmatprep.subr.mxu0 0.0
        %2891 = vmatpush1.msra.mxu0 0.0
        %2892 = vmatprep.subr.mxu0 0.0
        %2893 = vmatpush1.msra.mxu0 0.0
        %2894 = vmatprep.subr.mxu0 0.0
        %2895 = vmatpush1.msra.mxu0 0.0
        %2896 = vmatprep.subr.mxu0 0.0
        %2897 = vmatpush1.msra.mxu0 0.0
        %2898 = vmatprep.subr.mxu0 0.0
        %2899 = vmatpush1.msra.mxu0 0.0
        %2900 = vmatprep.subr.mxu0 0.0
        %2901 = vmatpush1.msra.mxu0 0.0
        %2902 = vmatprep.subr.mxu0 0.0
        %2903 = vmatpush1.msra.mxu0 0.0
        %2904 = vmatprep.subr.mxu0 0.0
        %2905 = vmatpush1.msra.mxu0 0.0
        %2906 = vmatprep.subr.mxu0 0.0
        %2907 = vmatpush1.msra.mxu0 0.0
        %2908 = vmatprep.subr.mxu0 0.0
        %2909 = vmatpush1.msra.mxu0 0.0
        %2910 = vmatprep.subr.mxu0 0.0
        %2911 = vmatpush1.msra.mxu0 0.0
        %2912 = vmatprep.subr.mxu0 0.0
        %2913 = vmatpush1.msra.mxu0 0.0
        %2914 = vmatprep.subr.mxu0 0.0
        %2915 = vmatpush1.msra.mxu0 0.0
        %2916 = vmatprep.subr.mxu0 0.0
        %2917 = vmatpush1.msra.mxu0 0.0
        %2918 = vmatprep.subr.mxu0 0.0
        %2919 = vmatpush1.msra.mxu0 0.0
        %2920 = vmatprep.subr.mxu0 0.0
        %2921 = vmatpush1.msra.mxu0 0.0
        %2922 = vmatprep.subr.mxu0 0.0
        %2923 = vmatpush1.msra.mxu0 0.0
        %2924 = vmatprep.subr.mxu0 0.0
        %2925 = vmatpush1.msra.mxu0 0.0
        %2926 = vmatprep.subr.mxu0 0.0
        %2927 = vmatpush1.msra.mxu0 0.0
        %2928 = vmatprep.subr.mxu0 0.0
        %2929 = vmatpush1.msra.mxu0 0.0
        %2930 = vmatprep.subr.mxu0 0.0
        %2931 = vmatpush1.msra.mxu0 0.0
        %2932 = vmatprep.subr.mxu0 0.0
        %2933 = vmatpush1.msra.mxu0 0.0
        %2934 = vmatprep.subr.mxu0 0.0
        %2935 = vmatpush1.msra.mxu0 0.0
        %2936 = vmatprep.subr.mxu0 0.0
        %2937 = vmatpush1.msra.mxu0 0.0
        %2938 = vmatprep.subr.mxu0 0.0
        %2939 = vmatpush1.msra.mxu0 0.0
        %2940 = vmatprep.subr.mxu0 0.0
        %2941 = vmatpush1.msra.mxu0 0.0
        %2942 = vmatprep.subr.mxu0 0.0
        %2943 = vmatpush1.msra.mxu0 0.0
        %2944 = vmatprep.subr.mxu0 0.0
        %2945 = vmatpush1.msra.mxu0 0.0
        %2946 = vmatprep.subr.mxu0 0.0
        %2947 = vmatpush1.msra.mxu0 0.0
        %2948 = vmatprep.mubr.f32.mxu0 0.0
        %2949 = vmatmul.mubr.f32.gmra.mrb[0].mxu0 %v2882
        %v2950 = vpop.f32.mrb[0].mxu0
        %v2951 = vadd.f32 0.0, %v2950
        %v2952 = vpop.f32.mrb[0].mxu0
        %2953 = vdwg.mxu0
        %2955 = vrot.lane.b32.xlu0 %v2621, 8
        %v2956 = vpop.permute.xlu0 %2955
        %2959 = vrot.lane.b32.xlu0 %v2786, 16
        %v2960 = vpop.permute.xlu0 %2959
        %2963 = vrot.lane.b32.xlu0 %v2951, 24
        %v2964 = vpop.permute.xlu0 %2963
        %v2966 = vsel %vm994, %v2456, %v2956
        %v2967 = vsel %vm792, %v2966, %v2960
        %v2968 = vsel %vm1665, %v2967, %v2964
        %s2969 = scalar_lea.vmem %s10, 32
        %v2970 = vld [vmem:[%s2969] sm:$0xff]
        %v2971 = vld [vmem:[%s2969 + $0x8] sm:$0xff]
        %v2972 = vld [vmem:[%s2969 + $0x10] sm:$0xff]
        %v2973 = vld [vmem:[%s2969 + $0x18] sm:$0xff]
        %s2974 = scalar_lea.vmem %s11, 1
        %v2975 = vld [vmem:[%s2974] sm:$0x1]
        %v2977 = vlaneseq
        %v2978 = vshrl.u32 %v2977, 7
        %v2979 = vsub.s32 0, %v2978
        %v2980 = vrot.slane %v2975, %v2979
        %v2983 = vsel %vm869, %v2968, 0
        %2985 = vmatprep.subr.mxu0 0.0
        %2986 = vmatpush1.msra.mxu0 %v2970
        %2987 = vmatprep.subr.mxu0 0.0
        %2988 = vmatpush1.msra.mxu0 %v2971
        %2989 = vmatprep.subr.mxu0 0.0
        %2990 = vmatpush1.msra.mxu0 %v2972
        %2991 = vmatprep.subr.mxu0 0.0
        %2992 = vmatpush1.msra.mxu0 %v2973
        %2993 = vmatprep.subr.mxu0 0.0
        %2994 = vmatpush1.msra.mxu0 0.0
        %2995 = vmatprep.subr.mxu0 0.0
        %2996 = vmatpush1.msra.mxu0 0.0
        %2997 = vmatprep.subr.mxu0 0.0
        %2998 = vmatpush1.msra.mxu0 0.0
        %2999 = vmatprep.subr.mxu0 0.0
        %3000 = vmatpush1.msra.mxu0 0.0
        %3001 = vmatprep.subr.mxu0 0.0
        %3002 = vmatpush1.msra.mxu0 0.0
        %3003 = vmatprep.subr.mxu0 0.0
        %3004 = vmatpush1.msra.mxu0 0.0
        %3005 = vmatprep.subr.mxu0 0.0
        %3006 = vmatpush1.msra.mxu0 0.0
        %3007 = vmatprep.subr.mxu0 0.0
        %3008 = vmatpush1.msra.mxu0 0.0
        %3009 = vmatprep.subr.mxu0 0.0
        %3010 = vmatpush1.msra.mxu0 0.0
        %3011 = vmatprep.subr.mxu0 0.0
        %3012 = vmatpush1.msra.mxu0 0.0
        %3013 = vmatprep.subr.mxu0 0.0
        %3014 = vmatpush1.msra.mxu0 0.0
        %3015 = vmatprep.subr.mxu0 0.0
        %3016 = vmatpush1.msra.mxu0 0.0
        %3017 = vmatprep.subr.mxu0 0.0
        %3018 = vmatpush1.msra.mxu0 0.0
        %3019 = vmatprep.subr.mxu0 0.0
        %3020 = vmatpush1.msra.mxu0 0.0
        %3021 = vmatprep.subr.mxu0 0.0
        %3022 = vmatpush1.msra.mxu0 0.0
        %3023 = vmatprep.subr.mxu0 0.0
        %3024 = vmatpush1.msra.mxu0 0.0
        %3025 = vmatprep.subr.mxu0 0.0
        %3026 = vmatpush1.msra.mxu0 0.0
        %3027 = vmatprep.subr.mxu0 0.0
        %3028 = vmatpush1.msra.mxu0 0.0
        %3029 = vmatprep.subr.mxu0 0.0
        %3030 = vmatpush1.msra.mxu0 0.0
        %3031 = vmatprep.subr.mxu0 0.0
        %3032 = vmatpush1.msra.mxu0 0.0
        %3033 = vmatprep.subr.mxu0 0.0
        %3034 = vmatpush1.msra.mxu0 0.0
        %3035 = vmatprep.subr.mxu0 0.0
        %3036 = vmatpush1.msra.mxu0 0.0
        %3037 = vmatprep.subr.mxu0 0.0
        %3038 = vmatpush1.msra.mxu0 0.0
        %3039 = vmatprep.subr.mxu0 0.0
        %3040 = vmatpush1.msra.mxu0 0.0
        %3041 = vmatprep.subr.mxu0 0.0
        %3042 = vmatpush1.msra.mxu0 0.0
        %3043 = vmatprep.subr.mxu0 0.0
        %3044 = vmatpush1.msra.mxu0 0.0
        %3045 = vmatprep.subr.mxu0 0.0
        %3046 = vmatpush1.msra.mxu0 0.0
        %3047 = vmatprep.subr.mxu0 0.0
        %3048 = vmatpush1.msra.mxu0 0.0
        %3049 = vmatprep.mubr.f32.mxu0 0.0
        %3050 = vmatmul.mubr.f32.gmra.mrb[0].mxu0 %v2983
        %v3051 = vpop.f32.mrb[0].mxu0
        %v3052 = vadd.f32 %v2980, %v3051
        %v3053 = vpop.f32.mrb[0].mxu0
        %3054 = vdwg.mxu0
        %v3055 = vadd.f32 %v2208, %v3052
        %s3056 = scalar_lea.vmem %s12, 1
        %v3057 = vld [vmem:[%s3056] sm:$0x1]
        %s3058 = scalar_lea.vmem %s13, 1
        %v3059 = vld [vmem:[%s3058] sm:$0x1]
        %v3060 = vsel %vm869, %v3055, 0.0
        %3061 = vadd.xlane.f32.xlu0 %v3060
        %v3062 = vpop.xlane.xlu0 %3061
        %v3063 = vmul.f32 %v3062, %v873
        %v3064 = vsub.f32 %v3055, %v3063
        %v3065 = vmul.f32 %v3064, %v3064
        %v3066 = vsel %vm869, %v3065, 0.0
        %3067 = vadd.xlane.f32.xlu0 %v3066
        %v3068 = vpop.xlane.xlu0 %3067
        %v3069 = vmul.f32 %v3068, %v873
        %v3070 = vadd.f32 %v3069, 1e-05
        %v3071 = vrsqrt.pop %v3070
        %v3072 = vmul.f32 %v3064, %v3071
        %v3074 = vlaneseq
        %v3075 = vshrl.u32 %v3074, 7
        %v3076 = vsub.s32 0, %v3075
        %v3077 = vrot.slane %v3057, %v3076
        %v3079 = vmul.f32 %v3072, %v3077
        %v3081 = vlaneseq
        %v3082 = vshrl.u32 %v3081, 7
        %v3083 = vsub.s32 0, %v3082
        %v3084 = vrot.slane %v3059, %v3083
        %v3086 = vadd.f32 %v3079, %v3084
        %s3087 = scalar_lea.vmem %s14, 128
        %v3088 = vld [vmem:[%s3087] sm:$0xff]
        %v3089 = vld [vmem:[%s3087 + $0x8] sm:$0xff]
        %v3090 = vld [vmem:[%s3087 + $0x10] sm:$0xff]
        %v3091 = vld [vmem:[%s3087 + $0x18] sm:$0xff]
        %v3092 = vld [vmem:[%s3087 + $0x20] sm:$0xff]
        %v3093 = vld [vmem:[%s3087 + $0x28] sm:$0xff]
        %v3094 = vld [vmem:[%s3087 + $0x30] sm:$0xff]
        %v3095 = vld [vmem:[%s3087 + $0x38] sm:$0xff]
        %v3096 = vld [vmem:[%s3087 + $0x40] sm:$0xff]
        %v3097 = vld [vmem:[%s3087 + $0x48] sm:$0xff]
        %v3098 = vld [vmem:[%s3087 + $0x50] sm:$0xff]
        %v3099 = vld [vmem:[%s3087 + $0x58] sm:$0xff]
        %v3100 = vld [vmem:[%s3087 + $0x60] sm:$0xff]
        %v3101 = vld [vmem:[%s3087 + $0x68] sm:$0xff]
        %v3102 = vld [vmem:[%s3087 + $0x70] sm:$0xff]
        %v3103 = vld [vmem:[%s3087 + $0x78] sm:$0xff]
        %s3104 = scalar_lea.vmem %s15, 4
        %v3105 = vld [vmem:[%s3104] sm:$0xf]
        %v3107 = vlaneseq
        %v3108 = vshrl.u32 %v3107, 7
        %v3109 = vsub.s32 0, %v3108
        %v3110 = vrot.slane %v3105, %v3109
        %v3111 = vlaneseq
        %v3112 = vshrl.u32 %v3111, 7
        %v3113 = vsub.s32 1, %v3112
        %v3114 = vrot.slane %v3105, %v3113
        %v3115 = vlaneseq
        %v3116 = vshrl.u32 %v3115, 7
        %v3117 = vsub.s32 2, %v3116
        %v3118 = vrot.slane %v3105, %v3117
        %v3119 = vlaneseq
        %v3120 = vshrl.u32 %v3119, 7
        %v3121 = vsub.s32 3, %v3120
        %v3122 = vrot.slane %v3105, %v3121
        %v3128 = vsel %vm869, %v3086, 0
        %3130 = vmatprep.subr.mxu0 %v3089
        %3131 = vmatpush1.msra.mxu0 %v3088
        %3132 = vmatprep.subr.mxu0 %v3093
        %3133 = vmatpush1.msra.mxu0 %v3092
        %3134 = vmatprep.subr.mxu0 %v3097
        %3135 = vmatpush1.msra.mxu0 %v3096
        %3136 = vmatprep.subr.mxu0 %v3101
        %3137 = vmatpush1.msra.mxu0 %v3100
        %3138 = vmatprep.subr.mxu0 0.0
        %3139 = vmatpush1.msra.mxu0 0.0
        %3140 = vmatprep.subr.mxu0 0.0
        %3141 = vmatpush1.msra.mxu0 0.0
        %3142 = vmatprep.subr.mxu0 0.0
        %3143 = vmatpush1.msra.mxu0 0.0
        %3144 = vmatprep.subr.mxu0 0.0
        %3145 = vmatpush1.msra.mxu0 0.0
        %3146 = vmatprep.subr.mxu0 0.0
        %3147 = vmatpush1.msra.mxu0 0.0
        %3148 = vmatprep.subr.mxu0 0.0
        %3149 = vmatpush1.msra.mxu0 0.0
        %3150 = vmatprep.subr.mxu0 0.0
        %3151 = vmatpush1.msra.mxu0 0.0
        %3152 = vmatprep.subr.mxu0 0.0
        %3153 = vmatpush1.msra.mxu0 0.0
        %3154 = vmatprep.subr.mxu0 0.0
        %3155 = vmatpush1.msra.mxu0 0.0
        %3156 = vmatprep.subr.mxu0 0.0
        %3157 = vmatpush1.msra.mxu0 0.0
        %3158 = vmatprep.subr.mxu0 0.0
        %3159 = vmatpush1.msra.mxu0 0.0
        %3160 = vmatprep.subr.mxu0 0.0
        %3161 = vmatpush1.msra.mxu0 0.0
        %3162 = vmatprep.subr.mxu0 0.0
        %3163 = vmatpush1.msra.mxu0 0.0
        %3164 = vmatprep.subr.mxu0 0.0
        %3165 = vmatpush1.msra.mxu0 0.0
        %3166 = vmatprep.subr.mxu0 0.0
        %3167 = vmatpush1.msra.mxu0 0.0
        %3168 = vmatprep.subr.mxu0 0.0
        %3169 = vmatpush1.msra.mxu0 0.0
        %3170 = vmatprep.subr.mxu0 0.0
        %3171 = vmatpush1.msra.mxu0 0.0
        %3172 = vmatprep.subr.mxu0 0.0
        %3173 = vmatpush1.msra.mxu0 0.0
        %3174 = vmatprep.subr.mxu0 0.0
        %3175 = vmatpush1.msra.mxu0 0.0
        %3176 = vmatprep.subr.mxu0 0.0
        %3177 = vmatpush1.msra.mxu0 0.0
        %3178 = vmatprep.subr.mxu0 0.0
        %3179 = vmatpush1.msra.mxu0 0.0
        %3180 = vmatprep.subr.mxu0 0.0
        %3181 = vmatpush1.msra.mxu0 0.0
        %3182 = vmatprep.subr.mxu0 0.0
        %3183 = vmatpush1.msra.mxu0 0.0
        %3184 = vmatprep.subr.mxu0 0.0
        %3185 = vmatpush1.msra.mxu0 0.0
        %3186 = vmatprep.subr.mxu0 0.0
        %3187 = vmatpush1.msra.mxu0 0.0
        %3188 = vmatprep.subr.mxu0 0.0
        %3189 = vmatpush1.msra.mxu0 0.0
        %3190 = vmatprep.subr.mxu0 0.0
        %3191 = vmatpush1.msra.mxu0 0.0
        %3192 = vmatprep.subr.mxu0 0.0
        %3193 = vmatpush1.msra.mxu0 0.0
        %3194 = vmatprep.mubr.f32.mxu0 0.0
        %3195 = vmatmul.mubr.f32.gmra.mrb[0].mxu0 %v3128
        %v3196 = vpop.f32.mrb[0].mxu0
        %v3197 = vadd.f32 %v3110, %v3196
        %v3198 = vpop.f32.mrb[0].mxu0
        %v3199 = vadd.f32 %v3114, %v3198
        %3200 = vdwg.mxu0
        %3201 = vmatprep.subr.mxu0 %v3091
        %3202 = vmatpush1.msra.mxu0 %v3090
        %3203 = vmatprep.subr.mxu0 %v3095
        %3204 = vmatpush1.msra.mxu0 %v3094
        %3205 = vmatprep.subr.mxu0 %v3099
        %3206 = vmatpush1.msra.mxu0 %v3098
        %3207 = vmatprep.subr.mxu0 %v3103
        %3208 = vmatpush1.msra.mxu0 %v3102
        %3209 = vmatprep.subr.mxu0 0.0
        %3210 = vmatpush1.msra.mxu0 0.0
        %3211 = vmatprep.subr.mxu0 0.0
        %3212 = vmatpush1.msra.mxu0 0.0
        %3213 = vmatprep.subr.mxu0 0.0
        %3214 = vmatpush1.msra.mxu0 0.0
        %3215 = vmatprep.subr.mxu0 0.0
        %3216 = vmatpush1.msra.mxu0 0.0
        %3217 = vmatprep.subr.mxu0 0.0
        %3218 = vmatpush1.msra.mxu0 0.0
        %3219 = vmatprep.subr.mxu0 0.0
        %3220 = vmatpush1.msra.mxu0 0.0
        %3221 = vmatprep.subr.mxu0 0.0
        %3222 = vmatpush1.msra.mxu0 0.0
        %3223 = vmatprep.subr.mxu0 0.0
        %3224 = vmatpush1.msra.mxu0 0.0
        %3225 = vmatprep.subr.mxu0 0.0
        %3226 = vmatpush1.msra.mxu0 0.0
        %3227 = vmatprep.subr.mxu0 0.0
        %3228 = vmatpush1.msra.mxu0 0.0
        %3229 = vmatprep.subr.mxu0 0.0
        %3230 = vmatpush1.msra.mxu0 0.0
        %3231 = vmatprep.subr.mxu0 0.0
        %3232 = vmatpush1.msra.mxu0 0.0
        %3233 = vmatprep.subr.mxu0 0.0
        %3234 = vmatpush1.msra.mxu0 0.0
        %3235 = vmatprep.subr.mxu0 0.0
        %3236 = vmatpush1.msra.mxu0 0.0
        %3237 = vmatprep.subr.mxu0 0.0
        %3238 = vmatpush1.msra.mxu0 0.0
        %3239 = vmatprep.subr.mxu0 0.0
        %3240 = vmatpush1.msra.mxu0 0.0
        %3241 = vmatprep.subr.mxu0 0.0
        %3242 = vmatpush1.msra.mxu0 0.0
        %3243 = vmatprep.subr.mxu0 0.0
        %3244 = vmatpush1.msra.mxu0 0.0
        %3245 = vmatprep.subr.mxu0 0.0
        %3246 = vmatpush1.msra.mxu0 0.0
        %3247 = vmatprep.subr.mxu0 0.0
        %3248 = vmatpush1.msra.mxu0 0.0
        %3249 = vmatprep.subr.mxu0 0.0
        %3250 = vmatpush1.msra.mxu0 0.0
        %3251 = vmatprep.subr.mxu0 0.0
        %3252 = vmatpush1.msra.mxu0 0.0
        %3253 = vmatprep.subr.mxu0 0.0
        %3254 = vmatpush1.msra.mxu0 0.0
        %3255 = vmatprep.subr.mxu0 0.0
        %3256 = vmatpush1.msra.mxu0 0.0
        %3257 = vmatprep.subr.mxu0 0.0
        %3258 = vmatpush1.msra.mxu0 0.0
        %3259 = vmatprep.subr.mxu0 0.0
        %3260 = vmatpush1.msra.mxu0 0.0
        %3261 = vmatprep.subr.mxu0 0.0
        %3262 = vmatpush1.msra.mxu0 0.0
        %3263 = vmatprep.subr.mxu0 0.0
        %3264 = vmatpush1.msra.mxu0 0.0
        %3265 = vmatprep.mubr.f32.mxu0 0.0
        %3266 = vmatmul.mubr.f32.gmra.mrb[0].mxu0 %v3128
        %v3267 = vpop.f32.mrb[0].mxu0
        %v3268 = vadd.f32 %v3118, %v3267
        %v3269 = vpop.f32.mrb[0].mxu0
        %v3270 = vadd.f32 %v3122, %v3269
        %3271 = vdwg.mxu0
        %v3272 = vmax.f32 %v3197, 0.0
        %v3273 = vmax.f32 %v3199, 0.0
        %v3274 = vmax.f32 %v3268, 0.0
        %v3275 = vmax.f32 %v3270, 0.0
        %s3276 = scalar_lea.vmem %s16, 512
        %v3277 = vld [vmem:[%s3276] sm:$0xff]
        %v3278 = vld [vmem:[%s3276 + $0x8] sm:$0xff]
        %v3279 = vld [vmem:[%s3276 + $0x10] sm:$0xff]
        %v3280 = vld [vmem:[%s3276 + $0x18] sm:$0xff]
        %v3281 = vld [vmem:[%s3276 + $0x20] sm:$0xff]
        %v3282 = vld [vmem:[%s3276 + $0x28] sm:$0xff]
        %v3283 = vld [vmem:[%s3276 + $0x30] sm:$0xff]
        %v3284 = vld [vmem:[%s3276 + $0x38] sm:$0xff]
        %v3285 = vld [vmem:[%s3276 + $0x40] sm:$0xff]
        %v3286 = vld [vmem:[%s3276 + $0x48] sm:$0xff]
        %v3287 = vld [vmem:[%s3276 + $0x50] sm:$0xff]
        %v3288 = vld [vmem:[%s3276 + $0x58] sm:$0xff]
        %v3289 = vld [vmem:[%s3276 + $0x60] sm:$0xff]
        %v3290 = vld [vmem:[%s3276 + $0x68] sm:$0xff]
        %v3291 = vld [vmem:[%s3276 + $0x70] sm:$0xff]
        %v3292 = vld [vmem:[%s3276 + $0x78] sm:$0xff]
        %v3293 = vld [vmem:[%s3276 + $0x80] sm:$0xff]
        %v3294 = vld [vmem:[%s3276 + $0x88] sm:$0xff]
        %v3295 = vld [vmem:[%s3276 + $0x90] sm:$0xff]
        %v3296 = vld [vmem:[%s3276 + $0x98] sm:$0xff]
        %v3297 = vld [vmem:[%s3276 + $0xa0] sm:$0xff]
        %v3298 = vld [vmem:[%s3276 + $0xa8] sm:$0xff]
        %v3299 = vld [vmem:[%s3276 + $0xb0] sm:$0xff]
        %v3300 = vld [vmem:[%s3276 + $0xb8] sm:$0xff]
        %v3301 = vld [vmem:[%s3276 + $0xc0] sm:$0xff]
        %v3302 = vld [vmem:[%s3276 + $0xc8] sm:$0xff]
        %v3303 = vld [vmem:[%s3276 + $0xd0] sm:$0xff]
        %v3304 = vld [vmem:[%s3276 + $0xd8] sm:$0xff]
        %v3305 = vld [vmem:[%s3276 + $0xe0] sm:$0xff]
        %v3306 = vld [vmem:[%s3276 + $0xe8] sm:$0xff]
        %v3307 = vld [vmem:[%s3276 + $0xf0] sm:$0xff]
        %v3308 = vld [vmem:[%s3276 + $0xf8] sm:$0xff]
        %v3309 = vld [vmem:[%s3276 + $0x100] sm:$0xff]
        %v3310 = vld [vmem:[%s3276 + $0x108] sm:$0xff]
        %v3311 = vld [vmem:[%s3276 + $0x110] sm:$0xff]
        %v3312 = vld [vmem:[%s3276 + $0x118] sm:$0xff]
        %v3313 = vld [vmem:[%s3276 + $0x120] sm:$0xff]
        %v3314 = vld [vmem:[%s3276 + $0x128] sm:$0xff]
        %v3315 = vld [vmem:[%s3276 + $0x130] sm:$0xff]
        %v3316 = vld [vmem:[%s3276 + $0x138] sm:$0xff]
        %v3317 = vld [vmem:[%s3276 + $0x140] sm:$0xff]
        %v3318 = vld [vmem:[%s3276 + $0x148] sm:$0xff]
        %v3319 = vld [vmem:[%s3276 + $0x150] sm:$0xff]
        %v3320 = vld [vmem:[%s3276 + $0x158] sm:$0xff]
        %v3321 = vld [vmem:[%s3276 + $0x160] sm:$0xff]
        %v3322 = vld [vmem:[%s3276 + $0x168] sm:$0xff]
        %v3323 = vld [vmem:[%s3276 + $0x170] sm:$0xff]
        %v3324 = vld [vmem:[%s3276 + $0x178] sm:$0xff]
        %v3325 = vld [vmem:[%s3276 + $0x180] sm:$0xff]
        %v3326 = vld [vmem:[%s3276 + $0x188] sm:$0xff]
        %v3327 = vld [vmem:[%s3276 + $0x190] sm:$0xff]
        %v3328 = vld [vmem:[%s3276 + $0x198] sm:$0xff]
        %v3329 = vld [vmem:[%s3276 + $0x1a0] sm:$0xff]
        %v3330 = vld [vmem:[%s3276 + $0x1a8] sm:$0xff]
        %v3331 = vld [vmem:[%s3276 + $0x1b0] sm:$0xff]
        %v3332 = vld [vmem:[%s3276 + $0x1b8] sm:$0xff]
        %v3333 = vld [vmem:[%s3276 + $0x1c0] sm:$0xff]
        %v3334 = vld [vmem:[%s3276 + $0x1c8] sm:$0xff]
        %v3335 = vld [vmem:[%s3276 + $0x1d0] sm:$0xff]
        %v3336 = vld [vmem:[%s3276 + $0x1d8] sm:$0xff]
        %v3337 = vld [vmem:[%s3276 + $0x1e0] sm:$0xff]
        %v3338 = vld [vmem:[%s3276 + $0x1e8] sm:$0xff]
        %v3339 = vld [vmem:[%s3276 + $0x1f0] sm:$0xff]
        %v3340 = vld [vmem:[%s3276 + $0x1f8] sm:$0xff]
        %s3341 = scalar_lea.vmem %s17, 1
        %v3342 = vld [vmem:[%s3341] sm:$0x1]
        %v3344 = vlaneseq
        %v3345 = vshrl.u32 %v3344, 7
        %v3346 = vsub.s32 0, %v3345
        %v3347 = vrot.slane %v3342, %v3346
        %3349 = vmatprep.subr.mxu0 0.0
        %3350 = vmatpush1.msra.mxu0 %v3277
        %3351 = vmatprep.subr.mxu0 0.0
        %3352 = vmatpush1.msra.mxu0 %v3278
        %3353 = vmatprep.subr.mxu0 0.0
        %3354 = vmatpush1.msra.mxu0 %v3279
        %3355 = vmatprep.subr.mxu0 0.0
        %3356 = vmatpush1.msra.mxu0 %v3280
        %3357 = vmatprep.subr.mxu0 0.0
        %3358 = vmatpush1.msra.mxu0 %v3281
        %3359 = vmatprep.subr.mxu0 0.0
        %3360 = vmatpush1.msra.mxu0 %v3282
        %3361 = vmatprep.subr.mxu0 0.0
        %3362 = vmatpush1.msra.mxu0 %v3283
        %3363 = vmatprep.subr.mxu0 0.0
        %3364 = vmatpush1.msra.mxu0 %v3284
        %3365 = vmatprep.subr.mxu0 0.0
        %3366 = vmatpush1.msra.mxu0 %v3285
        %3367 = vmatprep.subr.mxu0 0.0
        %3368 = vmatpush1.msra.mxu0 %v3286
        %3369 = vmatprep.subr.mxu0 0.0
        %3370 = vmatpush1.msra.mxu0 %v3287
        %3371 = vmatprep.subr.mxu0 0.0
        %3372 = vmatpush1.msra.mxu0 %v3288
        %3373 = vmatprep.subr.mxu0 0.0
        %3374 = vmatpush1.msra.mxu0 %v3289
        %3375 = vmatprep.subr.mxu0 0.0
        %3376 = vmatpush1.msra.mxu0 %v3290
        %3377 = vmatprep.subr.mxu0 0.0
        %3378 = vmatpush1.msra.mxu0 %v3291
        %3379 = vmatprep.subr.mxu0 0.0
        %3380 = vmatpush1.msra.mxu0 %v3292
        %3381 = vmatprep.subr.mxu0 0.0
        %3382 = vmatpush1.msra.mxu0 %v3293
        %3383 = vmatprep.subr.mxu0 0.0
        %3384 = vmatpush1.msra.mxu0 %v3294
        %3385 = vmatprep.subr.mxu0 0.0
        %3386 = vmatpush1.msra.mxu0 %v3295
        %3387 = vmatprep.subr.mxu0 0.0
        %3388 = vmatpush1.msra.mxu0 %v3296
        %3389 = vmatprep.subr.mxu0 0.0
        %3390 = vmatpush1.msra.mxu0 %v3297
        %3391 = vmatprep.subr.mxu0 0.0
        %3392 = vmatpush1.msra.mxu0 %v3298
        %3393 = vmatprep.subr.mxu0 0.0
        %3394 = vmatpush1.msra.mxu0 %v3299
        %3395 = vmatprep.subr.mxu0 0.0
        %3396 = vmatpush1.msra.mxu0 %v3300
        %3397 = vmatprep.subr.mxu0 0.0
        %3398 = vmatpush1.msra.mxu0 %v3301
        %3399 = vmatprep.subr.mxu0 0.0
        %3400 = vmatpush1.msra.mxu0 %v3302
        %3401 = vmatprep.subr.mxu0 0.0
        %3402 = vmatpush1.msra.mxu0 %v3303
        %3403 = vmatprep.subr.mxu0 0.0
        %3404 = vmatpush1.msra.mxu0 %v3304
        %3405 = vmatprep.subr.mxu0 0.0
        %3406 = vmatpush1.msra.mxu0 %v3305
        %3407 = vmatprep.subr.mxu0 0.0
        %3408 = vmatpush1.msra.mxu0 %v3306
        %3409 = vmatprep.subr.mxu0 0.0
        %3410 = vmatpush1.msra.mxu0 %v3307
        %3411 = vmatprep.subr.mxu0 0.0
        %3412 = vmatpush1.msra.mxu0 %v3308
        %3413 = vmatprep.mubr.f32.mxu0 %v3273
        %3414 = vmatmul.mubr.f32.gmra.mrb[0].mxu0 %v3272
        %v3415 = vpop.f32.mrb[0].mxu0
        %v3416 = vadd.f32 %v3347, %v3415
        %v3417 = vpop.f32.mrb[0].mxu0
        %3418 = vdwg.mxu0
        %3419 = vmatprep.subr.mxu0 0.0
        %3420 = vmatpush1.msra.mxu0 %v3309
        %3421 = vmatprep.subr.mxu0 0.0
        %3422 = vmatpush1.msra.mxu0 %v3310
        %3423 = vmatprep.subr.mxu0 0.0
        %3424 = vmatpush1.msra.mxu0 %v3311
        %3425 = vmatprep.subr.mxu0 0.0
        %3426 = vmatpush1.msra.mxu0 %v3312
        %3427 = vmatprep.subr.mxu0 0.0
        %3428 = vmatpush1.msra.mxu0 %v3313
        %3429 = vmatprep.subr.mxu0 0.0
        %3430 = vmatpush1.msra.mxu0 %v3314
        %3431 = vmatprep.subr.mxu0 0.0
        %3432 = vmatpush1.msra.mxu0 %v3315
        %3433 = vmatprep.subr.mxu0 0.0
        %3434 = vmatpush1.msra.mxu0 %v3316
        %3435 = vmatprep.subr.mxu0 0.0
        %3436 = vmatpush1.msra.mxu0 %v3317
        %3437 = vmatprep.subr.mxu0 0.0
        %3438 = vmatpush1.msra.mxu0 %v3318
        %3439 = vmatprep.subr.mxu0 0.0
        %3440 = vmatpush1.msra.mxu0 %v3319
        %3441 = vmatprep.subr.mxu0 0.0
        %3442 = vmatpush1.msra.mxu0 %v3320
        %3443 = vmatprep.subr.mxu0 0.0
        %3444 = vmatpush1.msra.mxu0 %v3321
        %3445 = vmatprep.subr.mxu0 0.0
        %3446 = vmatpush1.msra.mxu0 %v3322
        %3447 = vmatprep.subr.mxu0 0.0
        %3448 = vmatpush1.msra.mxu0 %v3323
        %3449 = vmatprep.subr.mxu0 0.0
        %3450 = vmatpush1.msra.mxu0 %v3324
        %3451 = vmatprep.subr.mxu0 0.0
        %3452 = vmatpush1.msra.mxu0 %v3325
        %3453 = vmatprep.subr.mxu0 0.0
        %3454 = vmatpush1.msra.mxu0 %v3326
        %3455 = vmatprep.subr.mxu0 0.0
        %3456 = vmatpush1.msra.mxu0 %v3327
        %3457 = vmatprep.subr.mxu0 0.0
        %3458 = vmatpush1.msra.mxu0 %v3328
        %3459 = vmatprep.subr.mxu0 0.0
        %3460 = vmatpush1.msra.mxu0 %v3329
        %3461 = vmatprep.subr.mxu0 0.0
        %3462 = vmatpush1.msra.mxu0 %v3330
        %3463 = vmatprep.subr.mxu0 0.0
        %3464 = vmatpush1.msra.mxu0 %v3331
        %3465 = vmatprep.subr.mxu0 0.0
        %3466 = vmatpush1.msra.mxu0 %v3332
        %3467 = vmatprep.subr.mxu0 0.0
        %3468 = vmatpush1.msra.mxu0 %v3333
        %3469 = vmatprep.subr.mxu0 0.0
        %3470 = vmatpush1.msra.mxu0 %v3334
        %3471 = vmatprep.subr.mxu0 0.0
        %3472 = vmatpush1.msra.mxu0 %v3335
        %3473 = vmatprep.subr.mxu0 0.0
        %3474 = vmatpush1.msra.mxu0 %v3336
        %3475 = vmatprep.subr.mxu0 0.0
        %3476 = vmatpush1.msra.mxu0 %v3337
        %3477 = vmatprep.subr.mxu0 0.0
        %3478 = vmatpush1.msra.mxu0 %v3338
        %3479 = vmatprep.subr.mxu0 0.0
        %3480 = vmatpush1.msra.mxu0 %v3339
        %3481 = vmatprep.subr.mxu0 0.0
        %3482 = vmatpush1.msra.mxu0 %v3340
        %3483 = vmatprep.mubr.f32.mxu0 %v3275
        %3484 = vmatmul.mubr.f32.gmra.mrb[0].mxu0 %v3274
        %v3485 = vpop.f32.mrb[0].mxu0
        %v3486 = vadd.f32 %v3416, %v3485
        %v3487 = vpop.f32.mrb[0].mxu0
        %3488 = vdwg.mxu0
        %v3489 = vadd.f32 %v3086, %v3486
        %s3490 = scalar_lea.vmem %s18, 1
        %v3491 = vld [vmem:[%s3490] sm:$0x1]
        %s3492 = scalar_lea.vmem %s19, 1
        %v3493 = vld [vmem:[%s3492] sm:$0x1]
        %v3494 = vsel %vm869, %v3489, 0.0
        %3495 = vadd.xlane.f32.xlu0 %v3494
        %v3496 = vpop.xlane.xlu0 %3495
        %v3497 = vmul.f32 %v3496, %v873
        %v3498 = vsub.f32 %v3489, %v3497
        %v3499 = vmul.f32 %v3498, %v3498
        %v3500 = vsel %vm869, %v3499, 0.0
        %3501 = vadd.xlane.f32.xlu0 %v3500
        %v3502 = vpop.xlane.xlu0 %3501
        %v3503 = vmul.f32 %v3502, %v873
        %v3504 = vadd.f32 %v3503, 1e-05
        %v3505 = vrsqrt.pop %v3504
        %v3506 = vmul.f32 %v3498, %v3505
        %v3508 = vlaneseq
        %v3509 = vshrl.u32 %v3508, 7
        %v3510 = vsub.s32 0, %v3509
        %v3511 = vrot.slane %v3491, %v3510
        %v3513 = vmul.f32 %v3506, %v3511
        %v3515 = vlaneseq
        %v3516 = vshrl.u32 %v3515, 7
        %v3517 = vsub.s32 0, %v3516
        %v3518 = vrot.slane %v3493, %v3517
        %v3520 = vadd.f32 %v3513, %v3518
        %v3521 = vld [vmem:[%s20] sm:$0x1]
        %v3523 = vlaneseq
        %v3524 = vshrl.u32 %v3523, 7
        %v3525 = vsub.s32 0, %v3524
        %v3526 = vrot.slane %v3521, %v3525
        %v3528 = vmul.f32 %v3520, %v3526
        %v3529 = vsel %vm869, %v3528, 0.0
        %3530 = vadd.xlane.f32.xlu0 %v3529
        %v3531 = vpop.xlane.xlu0 %3530
        %v3532 = vld [vmem:[#allocation2] sm:$0x1]
        %v3534 = vlaneseq
        %v3535 = vshrl.u32 %v3534, 7
        %v3536 = vsub.s32 0, %v3535
        %v3537 = vrot.slane %v3532, %v3536
        %v3539 = vadd.f32 %v3531, %v3537
        %v3540 = vld [vmem:[%s781] sm:$0xff]
        %v3541 = vadd.f32 %v3539, %v3540
        %vm3542 = vcmask 7168
        %v3543 = vsel %vm3542, %v3541, -inf
        %v3544 = vrot.slane %v3543, 4
        %v3545 = vmax.f32 %v3543, %v3544
        %v3546 = vrot.slane %v3545, 2
        %v3547 = vmax.f32 %v3545, %v3546
        %v3548 = vrot.slane %v3547, 1
        %v3549 = vmax.f32 %v3547, %v3548
        %v3550 = vsub.f32 %v3541, %v3549
        %v3551 = vmul.f32 %v3550, 1.442695
        %v3552 = vpow.pop %v3551
        %v3553 = vsel %vm3542, %v3552, 0.0
        %v3554 = vrot.slane %v3553, 4
        %v3555 = vadd.f32 %v3553, %v3554
        %v3556 = vrot.slane %v3555, 2
        %v3557 = vadd.f32 %v3555, %v3556
        %v3558 = vrot.slane %v3557, 1
        %v3559 = vadd.f32 %v3557, %v3558
        %v3560 = vrcp.pop %v3559
        %v3561 = vmul.f32 %v3552, %v3560
        %3563 = vset.pattern.permute.xlu0 0
        %3564 = vperm.xlu0 %3563, %v3561
        %v3565 = vpop.permute.xlu0 %3564
        %v3567 = vmul.f32 %v3565, %v3520
        %v3568 = vsel %vm869, %v3567, 0.0
        %v3569 = vrot.slane %v3568, 4
        %v3570 = vadd.f32 %v3568, %v3569
        %v3571 = vrot.slane %v3570, 2
        %v3572 = vadd.f32 %v3570, %v3571
        %v3573 = vrot.slane %v3572, 1
        %v3574 = vadd.f32 %v3572, %v3573
        %v3575 = vld [vmem:[%s22] sm:$0xff]
        %v3576 = vld [vmem:[%s22 + $0x8] sm:$0xff]
        %v3577 = vld [vmem:[%s22 + $0x10] sm:$0xff]
        %v3578 = vld [vmem:[%s22 + $0x18] sm:$0xff]
        %v3579 = vld [vmem:[%s23] sm:$0x1]
        %v3581 = vsel %vm869, %v3574, 0
        %3583 = vmatprep.subr.mxu0 0.0
        %3584 = vmatpush1.msra.mxu0 %v3575
        %3585 = vmatprep.subr.mxu0 0.0
        %3586 = vmatpush1.msra.mxu0 %v3576
        %3587 = vmatprep.subr.mxu0 0.0
        %3588 = vmatpush1.msra.mxu0 %v3577
        %3589 = vmatprep.subr.mxu0 0.0
        %3590 = vmatpush1.msra.mxu0 %v3578
        %3591 = vmatprep.subr.mxu0 0.0
        %3592 = vmatpush1.msra.mxu0 0.0
        %3593 = vmatprep.subr.mxu0 0.0
        %3594 = vmatpush1.msra.mxu0 0.0
        %3595 = vmatprep.subr.mxu0 0.0
        %3596 = vmatpush1.msra.mxu0 0.0
        %3597 = vmatprep.subr.mxu0 0.0
        %3598 = vmatpush1.msra.mxu0 0.0
        %3599 = vmatprep.subr.mxu0 0.0
        %3600 = vmatpush1.msra.mxu0 0.0
        %3601 = vmatprep.subr.mxu0 0.0
        %3602 = vmatpush1.msra.mxu0 0.0
        %3603 = vmatprep.subr.mxu0 0.0
        %3604 = vmatpush1.msra.mxu0 0.0
        %3605 = vmatprep.subr.mxu0 0.0
        %3606 = vmatpush1.msra.mxu0 0.0
        %3607 = vmatprep.subr.mxu0 0.0
        %3608 = vmatpush1.msra.mxu0 0.0
        %3609 = vmatprep.subr.mxu0 0.0
        %3610 = vmatpush1.msra.mxu0 0.0
        %3611 = vmatprep.subr.mxu0 0.0
        %3612 = vmatpush1.msra.mxu0 0.0
        %3613 = vmatprep.subr.mxu0 0.0
        %3614 = vmatpush1.msra.mxu0 0.0
        %3615 = vmatprep.subr.mxu0 0.0
        %3616 = vmatpush1.msra.mxu0 0.0
        %3617 = vmatprep.subr.mxu0 0.0
        %3618 = vmatpush1.msra.mxu0 0.0
        %3619 = vmatprep.subr.mxu0 0.0
        %3620 = vmatpush1.msra.mxu0 0.0
        %3621 = vmatprep.subr.mxu0 0.0
        %3622 = vmatpush1.msra.mxu0 0.0
        %3623 = vmatprep.subr.mxu0 0.0
        %3624 = vmatpush1.msra.mxu0 0.0
        %3625 = vmatprep.subr.mxu0 0.0
        %3626 = vmatpush1.msra.mxu0 0.0
        %3627 = vmatprep.subr.mxu0 0.0
        %3628 = vmatpush1.msra.mxu0 0.0
        %3629 = vmatprep.subr.mxu0 0.0
        %3630 = vmatpush1.msra.mxu0 0.0
        %3631 = vmatprep.subr.mxu0 0.0
        %3632 = vmatpush1.msra.mxu0 0.0
        %3633 = vmatprep.subr.mxu0 0.0
        %3634 = vmatpush1.msra.mxu0 0.0
        %3635 = vmatprep.subr.mxu0 0.0
        %3636 = vmatpush1.msra.mxu0 0.0
        %3637 = vmatprep.subr.mxu0 0.0
        %3638 = vmatpush1.msra.mxu0 0.0
        %3639 = vmatprep.subr.mxu0 0.0
        %3640 = vmatpush1.msra.mxu0 0.0
        %3641 = vmatprep.subr.mxu0 0.0
        %3642 = vmatpush1.msra.mxu0 0.0
        %3643 = vmatprep.subr.mxu0 0.0
        %3644 = vmatpush1.msra.mxu0 0.0
        %3645 = vmatprep.subr.mxu0 0.0
        %3646 = vmatpush1.msra.mxu0 0.0
        %3647 = vmatprep.mubr.f32.mxu0 0.0
        %3648 = vmatmul.mubr.f32.gmra.mrb[0].mxu0 %v3581
        %v3649 = vpop.f32.mrb[0].mxu0
        %v3650 = vadd.f32 %v3579, %v3649
        %v3651 = vpop.f32.mrb[0].mxu0
        %3652 = vdwg.mxu0
        %3653 = vst [vmem:[%s766] sm:$0x1] %v3650
        %s3654 = sand.u32 %s572, 1
        %s3655 = scalar_lea.sflag [#allocation4], %s3654
        %s3656 = sand.u32 %s572, 1
        %s3657 = scalar_lea.vmem [#allocation3], %s3656
        // Predicated region
        $region117: #{forward.1} parent=115 // pred_check
          %p3658 = pneg %p582
        $region118: #{forward.1} parent=115 // pred_check_branch
          %3660 = sbr.rel (%p3658) target = $region120
        $region119: #{forward.1} parent=115 // pred_region
          %s3662 = ssub.s32 16, 16
          %3663 = vsyncadd %s3655, %s3662
          %s3664 = smul.addr %s40, 16
          %s3665 = scalar_lea.hbm %s24, %s3664
          %s3667 = sshll.u32 %s3657, 4
          %s3668 = int_to_ptr.vmem [resolvable:$true] %s3667
          %3670 = dma.vmem_to_hbm [thread:$0]  %s3668, 16, %s3665, %s3655
        $region120: #{forward.1} parent=115 // pred_fallthru
          _
      $region116: #{forward.1} parent=5 // pred_fallthru
        _
      %p3671 = scmp.le.s32.totalorder 2, %s35
      // Predicated region
      $region121: #{forward.1} parent=5 // pred_check
        %p3672 = pneg %p3671
      $region122: #{forward.1} parent=5 // pred_check_branch
        %3674 = sbr.rel (%p3672) target = $region124
      $region123: #{forward.1} parent=5 // pred_region
        %s3675 = ssub.s32 %s35, 2
        // Predicated region
        $region125: #{forward.1} parent=123 // pred_check
          %p3676 = pneg %p588
        $region126: #{forward.1} parent=123 // pred_check_branch
          %3678 = sbr.rel (%p3676) target = $region128
        $region127: #{forward.1} parent=123 // pred_region
          %s3679 = sand.u32 %s573, 1
          %s3680 = scalar_lea.sflag [#allocation4], %s3679
          %s3681 = sand.u32 %s573, 1
          %s3682 = scalar_lea.vmem [#allocation3], %s3681
          %3683 = dma.done %s3680, 16
        $region128: #{forward.1} parent=123 // pred_fallthru
          _
      $region124: #{forward.1} parent=5 // pred_fallthru
        _
    $region6: #{forward.1} parent=1 // loop_footer
      %s39 = sadd.s32 1, %s35
    $region7: #{forward.1} parent=1 // loop_footer_branch
      %34 = sbr.rel target = $region3
    $region8: #{forward.1} parent=1 // loop_exit
      _
    %3684 = vsyncpa [#allocation4], 1
    %s3685 = scalar_lea.sflag [#allocation4], 1
    %3686 = vsyncpa %s3685, 1

</llo_original>
